<compile_context>
chip_gen: v7x
topology: tpu7x:2x2x1
jax: 0.10.0
libtpu: 0.0.40
codegen_flags: <defaults>
</compile_context>

<pallas_src>
import functools
import math

import jax
import jax.numpy as jnp
from jax.experimental import pallas as pl
from jax.experimental.pallas import tpu as pltpu


_PER_LAYER_REFS = 12  # wqkv, bqkv, wo, bo, g1, b1, w1, bf1, w2, bf2, g2, b2


# ----------------------------- Pallas kernel ------------------------------

def _layernorm(x, g, b, eps):
    """LayerNorm over the last dim (f32 statistics)."""
    mean = jnp.mean(x, axis=-1, keepdims=True)
    var = jnp.mean(jnp.square(x - mean), axis=-1, keepdims=True)
    return (x - mean) * jax.lax.rsqrt(var + eps) * g + b


def _fused_forward_kernel(*refs, nhead, num_layers, ln_eps, norm_eps):
    """Whole TransformerEmbeddingGenerator forward for ONE batch element.

    refs = (x, w_in, b_in, [12 refs per encoder layer] * num_layers,
            w_out, b_out, o)
    x block: (1, S, input_dim); o block: (1, 1, input_dim).
    """
    x_ref = refs[0]
    w_in_ref, b_in_ref = refs[1], refs[2]
    lrefs = refs[3:3 + _PER_LAYER_REFS * num_layers]
    w_out_ref = refs[3 + _PER_LAYER_REFS * num_layers]
    b_out_ref = refs[4 + _PER_LAYER_REFS * num_layers]
    o_ref = refs[-1]

    x = x_ref[0].astype(jnp.float32)                            # (S, in_dim)
    S = x.shape[0]

    # --- input projection ---
    h = jnp.dot(x, w_in_ref[...],
                preferred_element_type=jnp.float32) + b_in_ref[...]   # (S, D)
    D = h.shape[1]
    dh = D // nhead
    scale = 1.0 / math.sqrt(dh)

    # --- encoder layers (post-norm, ReLU FFN, fused MHA) ---
    for l in range(num_layers):
        (wqkv_ref, bqkv_ref, wo_ref, bo_ref, g1_ref, be1_ref,
         w1_ref, bf1_ref, w2_ref, bf2_ref, g2_ref, be2_ref) = lrefs[
            l * _PER_LAYER_REFS:(l + 1) * _PER_LAYER_REFS]

        qkv = jnp.dot(h, wqkv_ref[...],
                      preferred_element_type=jnp.float32) + bqkv_ref[...]  # (S, 3D)
        wo = wo_ref[...]                                                    # (D, D)

        attn = jnp.zeros((S, D), jnp.float32)
        for hd in range(nhead):                                 # static unroll
            qh = qkv[:, hd * dh:(hd + 1) * dh]                  # (S, dh)
            kh = qkv[:, D + hd * dh:D + (hd + 1) * dh]
            vh = qkv[:, 2 * D + hd * dh:2 * D + (hd + 1) * dh]
            s = jax.lax.dot_general(qh, kh, (((1,), (1,)), ((), ())),
                                    preferred_element_type=jnp.float32) * scale
            m = jnp.max(s, axis=-1, keepdims=True)
            p = jnp.exp(s - m)
            p = p * pl.reciprocal(jnp.sum(p, axis=-1, keepdims=True),
                                  approx=True)
            oh = jnp.dot(p, vh, preferred_element_type=jnp.float32)   # (S, dh)
            # merge heads via partial out-projection sums (no lane concat)
            attn = attn + jnp.dot(oh, wo[hd * dh:(hd + 1) * dh, :],
                                  preferred_element_type=jnp.float32)
        attn = attn + bo_ref[...]

        # residual + LayerNorm 1
        h = _layernorm(h + attn, g1_ref[...], be1_ref[...], ln_eps)

        # FFN + residual + LayerNorm 2
        ff = jnp.dot(h, w1_ref[...],
                     preferred_element_type=jnp.float32) + bf1_ref[...]
        ff = jnp.maximum(ff, 0.0)
        ff = jnp.dot(ff, w2_ref[...],
                     preferred_element_type=jnp.float32) + bf2_ref[...]
        h = _layernorm(h + ff, g2_ref[...], be2_ref[...], ln_eps)

    # --- head: last-token select + output proj + F.normalize(dim=-1) ---
    last = h[S - 1:S, :]                                        # (1, D)
    y = jnp.dot(last, w_out_ref[...],
                preferred_element_type=jnp.float32) + b_out_ref[...]   # (1, N)
    nrm = jnp.sqrt(jnp.sum(y * y, axis=-1, keepdims=True))
    o_ref[0] = (y / jnp.maximum(nrm, norm_eps)).astype(o_ref.dtype)


# ----------------------------- Model wrapper ------------------------------

def transformer_embedding_generator(params, x, nhead,
                                     ln_eps=1e-5, norm_eps=1e-12):
    """x: (B, S, input_dim) -> (B, input_dim), L2-normalized.  One kernel."""
    B, S, input_dim = x.shape
    w_in, b_in = params["input_proj"]
    w_out, b_out = params["output_proj"]
    d_model = w_in.shape[1]
    num_layers = len(params["layers"])
    ff_dim = params["layers"][0]["lin1"][0].shape[1]
    row = lambda a: a.reshape(1, -1)

    def const(shape):
        return pl.BlockSpec(shape, lambda b: (0, 0))

    args = [x, w_in, row(b_in)]
    in_specs = [
        pl.BlockSpec((1, S, input_dim), lambda b: (b, 0, 0)),   # x (per batch)
        const((input_dim, d_model)), const((1, d_model)),       # input_proj
    ]
    for layer in params["layers"]:
        args += [
            layer["in_proj"][0], row(layer["in_proj"][1]),
            layer["out_proj"][0], row(layer["out_proj"][1]),
            row(layer["ln1_g"]), row(layer["ln1_b"]),
            layer["lin1"][0], row(layer["lin1"][1]),
            layer["lin2"][0], row(layer["lin2"][1]),
            row(layer["ln2_g"]), row(layer["ln2_b"]),
        ]
        in_specs += [
            const((d_model, 3 * d_model)), const((1, 3 * d_model)),  # in_proj
            const((d_model, d_model)), const((1, d_model)),          # out_proj
            const((1, d_model)), const((1, d_model)),                # ln1
            const((d_model, ff_dim)), const((1, ff_dim)),            # lin1
            const((ff_dim, d_model)), const((1, d_model)),           # lin2
            const((1, d_model)), const((1, d_model)),                # ln2
        ]
    args += [w_out, row(b_out)]
    in_specs += [const((d_model, input_dim)), const((1, input_dim))]

    out = pl.pallas_call(
        functools.partial(_fused_forward_kernel, nhead=nhead,
                          num_layers=num_layers, ln_eps=ln_eps,
                          norm_eps=norm_eps),
        out_shape=jax.ShapeDtypeStruct((B, 1, input_dim), x.dtype),
        grid=(B,),
        in_specs=in_specs,
        out_specs=pl.BlockSpec((1, 1, input_dim), lambda b: (b, 0, 0)),
        compiler_params=pltpu.CompilerParams(
            dimension_semantics=("parallel",)),       # megacore on v7x
    )(*args)
    return out.reshape(B, input_dim)


# --------------------------- Pure-JAX reference ---------------------------

def _ln_ref(x, g, b, eps):
    mean = jnp.mean(x, axis=-1, keepdims=True)
    var = jnp.mean(jnp.square(x - mean), axis=-1, keepdims=True)
    return (x - mean) * jax.lax.rsqrt(var + eps) * g + b


def reference_forward(params, x, nhead, ln_eps=1e-5, norm_eps=1e-12):
    hi = jax.lax.Precision.HIGHEST
    ein = functools.partial(jnp.einsum, precision=hi)
    w_in, b_in = params["input_proj"]
    h = ein("bsi,io->bso", x, w_in) + b_in
    B, S, D = h.shape
    dh = D // nhead
    for layer in params["layers"]:
        wqkv, bqkv = layer["in_proj"]
        qkv = ein("bsd,de->bse", h, wqkv) + bqkv
        q, k, v = jnp.split(qkv, 3, axis=-1)
        q = q.reshape(B, S, nhead, dh).transpose(0, 2, 1, 3)
        k = k.reshape(B, S, nhead, dh).transpose(0, 2, 1, 3)
        v = v.reshape(B, S, nhead, dh).transpose(0, 2, 1, 3)
        s = ein("bhqd,bhkd->bhqk", q, k) / math.sqrt(dh)
        p = jax.nn.softmax(s, axis=-1)
        o = ein("bhqk,bhkd->bhqd", p, v).transpose(0, 2, 1, 3).reshape(B, S, D)
        wo, bo = layer["out_proj"]
        attn = ein("bsd,de->bse", o, wo) + bo
        h = _ln_ref(h + attn, layer["ln1_g"], layer["ln1_b"], ln_eps)
        w1, bf1 = layer["lin1"]
        w2, bf2 = layer["lin2"]
        ff = jnp.maximum(ein("bsd,df->bsf", h, w1) + bf1, 0.0)
        ff = ein("bsf,fd->bsd", ff, w2) + bf2
        h = _ln_ref(h + ff, layer["ln2_g"], layer["ln2_b"], ln_eps)
    w_out, b_out = params["output_proj"]
    y = ein("bd,dn->bn", h[:, -1, :], w_out) + b_out
    n = jnp.linalg.norm(y, axis=-1, keepdims=True)
    return y / jnp.maximum(n, norm_eps)


# ------------------------------- Params -----------------------------------

def init_params(key, input_dim, d_model, nhead, num_layers, dim_feedforward):
    """Deterministic synthetic parameter init (weights stored as (in, out))."""
    assert d_model % nhead == 0

    def dense(k, fan_in, fan_out):
        kw, _ = jax.random.split(k)
        w = jax.random.normal(kw, (fan_in, fan_out), jnp.float32) * 0.02
        b = jnp.zeros((fan_out,), jnp.float32)
        return w, b

    keys = jax.random.split(key, 2 + 4 * num_layers)
    params = {"input_proj": dense(keys[0], input_dim, d_model),
              "output_proj": dense(keys[1], d_model, input_dim)}
    layers = []
    for l in range(num_layers):
        k0, k1, k2, k3 = keys[2 + 4 * l: 6 + 4 * l]
        layers.append({
            "in_proj": dense(k0, d_model, 3 * d_model),
            "out_proj": dense(k1, d_model, d_model),
            "lin1": dense(k2, d_model, dim_feedforward),
            "lin2": dense(k3, dim_feedforward, d_model),
            "ln1_g": jnp.ones((d_model,), jnp.float32),
            "ln1_b": jnp.zeros((d_model,), jnp.float32),
            "ln2_g": jnp.ones((d_model,), jnp.float32),
            "ln2_b": jnp.zeros((d_model,), jnp.float32),
        })
    params["layers"] = layers
    return params


# --------------------------------- main ------------------------------------

if __name__ == "__main__":
    batch, seq = 2, 8
    input_dim, d_model, nhead, num_layers, dim_feedforward = 16, 32, 4, 2, 64

    key = jax.random.PRNGKey(0)
    k_params, k_x = jax.random.split(key)
    params = init_params(k_params, input_dim, d_model, nhead,
                         num_layers, dim_feedforward)
    x = jax.random.normal(k_x, (batch, seq, input_dim), jnp.float32)

    fwd = jax.jit(functools.partial(transformer_embedding_generator,
                                    nhead=nhead))
    out = fwd(params, x)
    jax.block_until_ready(out)

    assert out.shape == (batch, input_dim), out.shape
    norms = jnp.linalg.norm(out, axis=-1)
    assert bool(jnp.all(jnp.abs(norms - 1.0) < 1e-4)), norms

    ref = reference_forward(params, x, nhead)
    assert bool(jnp.allclose(out, ref, atol=2e-3, rtol=2e-3)), (
        float(jnp.max(jnp.abs(out - ref))))

    print("KERNEL_OK")
</pallas_src>

<mosaic_0001>
module attributes {stable_mosaic.version = 11 : i64} {
  func.func @_fused_forward_kernel(%arg0: i32, %arg1: memref<1x8x16xf32, #tpu.memory_space<vmem>>, %arg2: memref<16x32xf32, #tpu.memory_space<vmem>>, %arg3: memref<1x32xf32, #tpu.memory_space<vmem>>, %arg4: memref<32x96xf32, #tpu.memory_space<vmem>>, %arg5: memref<1x96xf32, #tpu.memory_space<vmem>>, %arg6: memref<32x32xf32, #tpu.memory_space<vmem>>, %arg7: memref<1x32xf32, #tpu.memory_space<vmem>>, %arg8: memref<1x32xf32, #tpu.memory_space<vmem>>, %arg9: memref<1x32xf32, #tpu.memory_space<vmem>>, %arg10: memref<32x64xf32, #tpu.memory_space<vmem>>, %arg11: memref<1x64xf32, #tpu.memory_space<vmem>>, %arg12: memref<64x32xf32, #tpu.memory_space<vmem>>, %arg13: memref<1x32xf32, #tpu.memory_space<vmem>>, %arg14: memref<1x32xf32, #tpu.memory_space<vmem>>, %arg15: memref<1x32xf32, #tpu.memory_space<vmem>>, %arg16: memref<32x96xf32, #tpu.memory_space<vmem>>, %arg17: memref<1x96xf32, #tpu.memory_space<vmem>>, %arg18: memref<32x32xf32, #tpu.memory_space<vmem>>, %arg19: memref<1x32xf32, #tpu.memory_space<vmem>>, %arg20: memref<1x32xf32, #tpu.memory_space<vmem>>, %arg21: memref<1x32xf32, #tpu.memory_space<vmem>>, %arg22: memref<32x64xf32, #tpu.memory_space<vmem>>, %arg23: memref<1x64xf32, #tpu.memory_space<vmem>>, %arg24: memref<64x32xf32, #tpu.memory_space<vmem>>, %arg25: memref<1x32xf32, #tpu.memory_space<vmem>>, %arg26: memref<1x32xf32, #tpu.memory_space<vmem>>, %arg27: memref<1x32xf32, #tpu.memory_space<vmem>>, %arg28: memref<32x16xf32, #tpu.memory_space<vmem>>, %arg29: memref<1x16xf32, #tpu.memory_space<vmem>>, %arg30: memref<1x1x16xf32, #tpu.memory_space<vmem>>) attributes {dimension_semantics = [#tpu.dimension_semantics<parallel>], iteration_bounds = array<i64: 2>, scalar_prefetch = 0 : i64, scratch_operands = 0 : i64, tpu.core_type = #tpu.core_type<tc>, window_params = [{transform_indices = @transform_0, window_bounds = array<i64: 1, 8, 16>}, {pipeline_mode = #tpu.pipeline_mode<synchronous>, transform_indices = @transform_1, window_bounds = array<i64: 16, 32>}, {pipeline_mode = #tpu.pipeline_mode<synchronous>, transform_indices = @transform_2, window_bounds = array<i64: 1, 32>}, {pipeline_mode = #tpu.pipeline_mode<synchronous>, transform_indices = @transform_3, window_bounds = array<i64: 32, 96>}, {pipeline_mode = #tpu.pipeline_mode<synchronous>, transform_indices = @transform_4, window_bounds = array<i64: 1, 96>}, {pipeline_mode = #tpu.pipeline_mode<synchronous>, transform_indices = @transform_5, window_bounds = array<i64: 32, 32>}, {pipeline_mode = #tpu.pipeline_mode<synchronous>, transform_indices = @transform_6, window_bounds = array<i64: 1, 32>}, {pipeline_mode = #tpu.pipeline_mode<synchronous>, transform_indices = @transform_7, window_bounds = array<i64: 1, 32>}, {pipeline_mode = #tpu.pipeline_mode<synchronous>, transform_indices = @transform_8, window_bounds = array<i64: 1, 32>}, {pipeline_mode = #tpu.pipeline_mode<synchronous>, transform_indices = @transform_9, window_bounds = array<i64: 32, 64>}, {pipeline_mode = #tpu.pipeline_mode<synchronous>, transform_indices = @transform_10, window_bounds = array<i64: 1, 64>}, {pipeline_mode = #tpu.pipeline_mode<synchronous>, transform_indices = @transform_11, window_bounds = array<i64: 64, 32>}, {pipeline_mode = #tpu.pipeline_mode<synchronous>, transform_indices = @transform_12, window_bounds = array<i64: 1, 32>}, {pipeline_mode = #tpu.pipeline_mode<synchronous>, transform_indices = @transform_13, window_bounds = array<i64: 1, 32>}, {pipeline_mode = #tpu.pipeline_mode<synchronous>, transform_indices = @transform_14, window_bounds = array<i64: 1, 32>}, {pipeline_mode = #tpu.pipeline_mode<synchronous>, transform_indices = @transform_15, window_bounds = array<i64: 32, 96>}, {pipeline_mode = #tpu.pipeline_mode<synchronous>, transform_indices = @transform_16, window_bounds = array<i64: 1, 96>}, {pipeline_mode = #tpu.pipeline_mode<synchronous>, transform_indices = @transform_17, window_bounds = array<i64: 32, 32>}, {pipeline_mode = #tpu.pipeline_mode<synchronous>, transform_indices = @transform_18, window_bounds = array<i64: 1, 32>}, {pipeline_mode = #tpu.pipeline_mode<synchronous>, transform_indices = @transform_19, window_bounds = array<i64: 1, 32>}, {pipeline_mode = #tpu.pipeline_mode<synchronous>, transform_indices = @transform_20, window_bounds = array<i64: 1, 32>}, {pipeline_mode = #tpu.pipeline_mode<synchronous>, transform_indices = @transform_21, window_bounds = array<i64: 32, 64>}, {pipeline_mode = #tpu.pipeline_mode<synchronous>, transform_indices = @transform_22, window_bounds = array<i64: 1, 64>}, {pipeline_mode = #tpu.pipeline_mode<synchronous>, transform_indices = @transform_23, window_bounds = array<i64: 64, 32>}, {pipeline_mode = #tpu.pipeline_mode<synchronous>, transform_indices = @transform_24, window_bounds = array<i64: 1, 32>}, {pipeline_mode = #tpu.pipeline_mode<synchronous>, transform_indices = @transform_25, window_bounds = array<i64: 1, 32>}, {pipeline_mode = #tpu.pipeline_mode<synchronous>, transform_indices = @transform_26, window_bounds = array<i64: 1, 32>}, {pipeline_mode = #tpu.pipeline_mode<synchronous>, transform_indices = @transform_27, window_bounds = array<i64: 32, 16>}, {pipeline_mode = #tpu.pipeline_mode<synchronous>, transform_indices = @transform_28, window_bounds = array<i64: 1, 16>}, {transform_indices = @transform_29, window_bounds = array<i64: 1, 1, 16>}]} {
    %c0 = arith.constant 0 : index
    %c0_0 = arith.constant 0 : index
    %c0_1 = arith.constant 0 : index
    %0 = vector.load %arg1[%c0, %c0_0, %c0_1] : memref<1x8x16xf32, #tpu.memory_space<vmem>>, vector<1x8x16xf32>
    %1 = vector.shape_cast %0 : vector<1x8x16xf32> to vector<8x16xf32>
    %c0_2 = arith.constant 0 : index
    %c0_3 = arith.constant 0 : index
    %2 = vector.load %arg2[%c0_2, %c0_3] : memref<16x32xf32, #tpu.memory_space<vmem>>, vector<16x32xf32>
    %cst = arith.constant dense<0.000000e+00> : vector<8x32xf32>
    %3 = tpu.matmul %1, %2, %cst {dimension_numbers = #tpu.dot_dimension_numbers<[1], [0], [0], [1], [0, 0, 1, 1], [], []>} : vector<8x16xf32>, vector<16x32xf32>, vector<8x32xf32> -> vector<8x32xf32>
    %c0_4 = arith.constant 0 : index
    %c0_5 = arith.constant 0 : index
    %4 = vector.load %arg3[%c0_4, %c0_5] : memref<1x32xf32, #tpu.memory_space<vmem>>, vector<1x32xf32>
    %5 = vector.broadcast %4 : vector<1x32xf32> to vector<8x32xf32>
    %6 = arith.addf %3, %5 : vector<8x32xf32>
    %c0_6 = arith.constant 0 : index
    %c0_7 = arith.constant 0 : index
    %7 = vector.load %arg4[%c0_6, %c0_7] : memref<32x96xf32, #tpu.memory_space<vmem>>, vector<32x96xf32>
    %cst_8 = arith.constant dense<0.000000e+00> : vector<8x96xf32>
    %8 = tpu.matmul %6, %7, %cst_8 {dimension_numbers = #tpu.dot_dimension_numbers<[1], [0], [0], [1], [0, 0, 1, 1], [], []>} : vector<8x32xf32>, vector<32x96xf32>, vector<8x96xf32> -> vector<8x96xf32>
    %c0_9 = arith.constant 0 : index
    %c0_10 = arith.constant 0 : index
    %9 = vector.load %arg5[%c0_9, %c0_10] : memref<1x96xf32, #tpu.memory_space<vmem>>, vector<1x96xf32>
    %10 = vector.broadcast %9 : vector<1x96xf32> to vector<8x96xf32>
    %11 = arith.addf %8, %10 : vector<8x96xf32>
    %c0_11 = arith.constant 0 : index
    %c0_12 = arith.constant 0 : index
    %12 = vector.load %arg6[%c0_11, %c0_12] : memref<32x32xf32, #tpu.memory_space<vmem>>, vector<32x32xf32>
    %cst_13 = arith.constant 0.000000e+00 : f32
    %13 = vector.broadcast %cst_13 : f32 to vector<8x32xf32>
    %14 = vector.extract_strided_slice %11 {offsets = [0, 0], sizes = [8, 8], strides = [1, 1]} : vector<8x96xf32> to vector<8x8xf32>
    %15 = vector.extract_strided_slice %11 {offsets = [0, 32], sizes = [8, 8], strides = [1, 1]} : vector<8x96xf32> to vector<8x8xf32>
    %16 = vector.extract_strided_slice %11 {offsets = [0, 64], sizes = [8, 8], strides = [1, 1]} : vector<8x96xf32> to vector<8x8xf32>
    %cst_14 = arith.constant dense<0.000000e+00> : vector<8x8xf32>
    %17 = tpu.matmul %14, %15, %cst_14 {dimension_numbers = #tpu.dot_dimension_numbers<[1], [1], [0], [0], [0, 0, 1, 0], [], []>} : vector<8x8xf32>, vector<8x8xf32>, vector<8x8xf32> -> vector<8x8xf32>
    %cst_15 = arith.constant 0.353553385 : f32
    %18 = vector.broadcast %cst_15 : f32 to vector<8x8xf32>
    %19 = arith.mulf %17, %18 : vector<8x8xf32>
    %cst_16 = arith.constant dense<0xFF800000> : vector<8xf32>
    %20 = vector.multi_reduction <maximumf>, %19, %cst_16 [1] : vector<8x8xf32> to vector<8xf32>
    %21 = vector.shape_cast %20 : vector<8xf32> to vector<8x1xf32>
    %22 = vector.broadcast %21 : vector<8x1xf32> to vector<8x8xf32>
    %23 = arith.subf %19, %22 : vector<8x8xf32>
    %24 = math.exp %23 : vector<8x8xf32>
    %cst_17 = arith.constant dense<0.000000e+00> : vector<8xf32>
    %25 = vector.multi_reduction <add>, %24, %cst_17 [1] : vector<8x8xf32> to vector<8xf32>
    %26 = vector.shape_cast %25 : vector<8xf32> to vector<8x1xf32>
    %27 = tpu.reciprocal %26 {approx = true} : vector<8x1xf32> -> vector<8x1xf32>
    %28 = vector.broadcast %27 : vector<8x1xf32> to vector<8x8xf32>
    %29 = arith.mulf %24, %28 : vector<8x8xf32>
    %cst_18 = arith.constant dense<0.000000e+00> : vector<8x8xf32>
    %30 = tpu.matmul %29, %16, %cst_18 {dimension_numbers = #tpu.dot_dimension_numbers<[1], [0], [0], [1], [0, 0, 1, 1], [], []>} : vector<8x8xf32>, vector<8x8xf32>, vector<8x8xf32> -> vector<8x8xf32>
    %31 = vector.extract_strided_slice %12 {offsets = [0, 0], sizes = [8, 32], strides = [1, 1]} : vector<32x32xf32> to vector<8x32xf32>
    %cst_19 = arith.constant dense<0.000000e+00> : vector<8x32xf32>
    %32 = tpu.matmul %30, %31, %cst_19 {dimension_numbers = #tpu.dot_dimension_numbers<[1], [0], [0], [1], [0, 0, 1, 1], [], []>} : vector<8x8xf32>, vector<8x32xf32>, vector<8x32xf32> -> vector<8x32xf32>
    %33 = arith.addf %13, %32 : vector<8x32xf32>
    %34 = vector.extract_strided_slice %11 {offsets = [0, 8], sizes = [8, 8], strides = [1, 1]} : vector<8x96xf32> to vector<8x8xf32>
    %35 = vector.extract_strided_slice %11 {offsets = [0, 40], sizes = [8, 8], strides = [1, 1]} : vector<8x96xf32> to vector<8x8xf32>
    %36 = vector.extract_strided_slice %11 {offsets = [0, 72], sizes = [8, 8], strides = [1, 1]} : vector<8x96xf32> to vector<8x8xf32>
    %cst_20 = arith.constant dense<0.000000e+00> : vector<8x8xf32>
    %37 = tpu.matmul %34, %35, %cst_20 {dimension_numbers = #tpu.dot_dimension_numbers<[1], [1], [0], [0], [0, 0, 1, 0], [], []>} : vector<8x8xf32>, vector<8x8xf32>, vector<8x8xf32> -> vector<8x8xf32>
    %cst_21 = arith.constant 0.353553385 : f32
    %38 = vector.broadcast %cst_21 : f32 to vector<8x8xf32>
    %39 = arith.mulf %37, %38 : vector<8x8xf32>
    %cst_22 = arith.constant dense<0xFF800000> : vector<8xf32>
    %40 = vector.multi_reduction <maximumf>, %39, %cst_22 [1] : vector<8x8xf32> to vector<8xf32>
    %41 = vector.shape_cast %40 : vector<8xf32> to vector<8x1xf32>
    %42 = vector.broadcast %41 : vector<8x1xf32> to vector<8x8xf32>
    %43 = arith.subf %39, %42 : vector<8x8xf32>
    %44 = math.exp %43 : vector<8x8xf32>
    %cst_23 = arith.constant dense<0.000000e+00> : vector<8xf32>
    %45 = vector.multi_reduction <add>, %44, %cst_23 [1] : vector<8x8xf32> to vector<8xf32>
    %46 = vector.shape_cast %45 : vector<8xf32> to vector<8x1xf32>
    %47 = tpu.reciprocal %46 {approx = true} : vector<8x1xf32> -> vector<8x1xf32>
    %48 = vector.broadcast %47 : vector<8x1xf32> to vector<8x8xf32>
    %49 = arith.mulf %44, %48 : vector<8x8xf32>
    %cst_24 = arith.constant dense<0.000000e+00> : vector<8x8xf32>
    %50 = tpu.matmul %49, %36, %cst_24 {dimension_numbers = #tpu.dot_dimension_numbers<[1], [0], [0], [1], [0, 0, 1, 1], [], []>} : vector<8x8xf32>, vector<8x8xf32>, vector<8x8xf32> -> vector<8x8xf32>
    %51 = vector.extract_strided_slice %12 {offsets = [8, 0], sizes = [8, 32], strides = [1, 1]} : vector<32x32xf32> to vector<8x32xf32>
    %cst_25 = arith.constant dense<0.000000e+00> : vector<8x32xf32>
    %52 = tpu.matmul %50, %51, %cst_25 {dimension_numbers = #tpu.dot_dimension_numbers<[1], [0], [0], [1], [0, 0, 1, 1], [], []>} : vector<8x8xf32>, vector<8x32xf32>, vector<8x32xf32> -> vector<8x32xf32>
    %53 = arith.addf %33, %52 : vector<8x32xf32>
    %54 = vector.extract_strided_slice %11 {offsets = [0, 16], sizes = [8, 8], strides = [1, 1]} : vector<8x96xf32> to vector<8x8xf32>
    %55 = vector.extract_strided_slice %11 {offsets = [0, 48], sizes = [8, 8], strides = [1, 1]} : vector<8x96xf32> to vector<8x8xf32>
    %56 = vector.extract_strided_slice %11 {offsets = [0, 80], sizes = [8, 8], strides = [1, 1]} : vector<8x96xf32> to vector<8x8xf32>
    %cst_26 = arith.constant dense<0.000000e+00> : vector<8x8xf32>
    %57 = tpu.matmul %54, %55, %cst_26 {dimension_numbers = #tpu.dot_dimension_numbers<[1], [1], [0], [0], [0, 0, 1, 0], [], []>} : vector<8x8xf32>, vector<8x8xf32>, vector<8x8xf32> -> vector<8x8xf32>
    %cst_27 = arith.constant 0.353553385 : f32
    %58 = vector.broadcast %cst_27 : f32 to vector<8x8xf32>
    %59 = arith.mulf %57, %58 : vector<8x8xf32>
    %cst_28 = arith.constant dense<0xFF800000> : vector<8xf32>
    %60 = vector.multi_reduction <maximumf>, %59, %cst_28 [1] : vector<8x8xf32> to vector<8xf32>
    %61 = vector.shape_cast %60 : vector<8xf32> to vector<8x1xf32>
    %62 = vector.broadcast %61 : vector<8x1xf32> to vector<8x8xf32>
    %63 = arith.subf %59, %62 : vector<8x8xf32>
    %64 = math.exp %63 : vector<8x8xf32>
    %cst_29 = arith.constant dense<0.000000e+00> : vector<8xf32>
    %65 = vector.multi_reduction <add>, %64, %cst_29 [1] : vector<8x8xf32> to vector<8xf32>
    %66 = vector.shape_cast %65 : vector<8xf32> to vector<8x1xf32>
    %67 = tpu.reciprocal %66 {approx = true} : vector<8x1xf32> -> vector<8x1xf32>
    %68 = vector.broadcast %67 : vector<8x1xf32> to vector<8x8xf32>
    %69 = arith.mulf %64, %68 : vector<8x8xf32>
    %cst_30 = arith.constant dense<0.000000e+00> : vector<8x8xf32>
    %70 = tpu.matmul %69, %56, %cst_30 {dimension_numbers = #tpu.dot_dimension_numbers<[1], [0], [0], [1], [0, 0, 1, 1], [], []>} : vector<8x8xf32>, vector<8x8xf32>, vector<8x8xf32> -> vector<8x8xf32>
    %71 = vector.extract_strided_slice %12 {offsets = [16, 0], sizes = [8, 32], strides = [1, 1]} : vector<32x32xf32> to vector<8x32xf32>
    %cst_31 = arith.constant dense<0.000000e+00> : vector<8x32xf32>
    %72 = tpu.matmul %70, %71, %cst_31 {dimension_numbers = #tpu.dot_dimension_numbers<[1], [0], [0], [1], [0, 0, 1, 1], [], []>} : vector<8x8xf32>, vector<8x32xf32>, vector<8x32xf32> -> vector<8x32xf32>
    %73 = arith.addf %53, %72 : vector<8x32xf32>
    %74 = vector.extract_strided_slice %11 {offsets = [0, 24], sizes = [8, 8], strides = [1, 1]} : vector<8x96xf32> to vector<8x8xf32>
    %75 = vector.extract_strided_slice %11 {offsets = [0, 56], sizes = [8, 8], strides = [1, 1]} : vector<8x96xf32> to vector<8x8xf32>
    %76 = vector.extract_strided_slice %11 {offsets = [0, 88], sizes = [8, 8], strides = [1, 1]} : vector<8x96xf32> to vector<8x8xf32>
    %cst_32 = arith.constant dense<0.000000e+00> : vector<8x8xf32>
    %77 = tpu.matmul %74, %75, %cst_32 {dimension_numbers = #tpu.dot_dimension_numbers<[1], [1], [0], [0], [0, 0, 1, 0], [], []>} : vector<8x8xf32>, vector<8x8xf32>, vector<8x8xf32> -> vector<8x8xf32>
    %cst_33 = arith.constant 0.353553385 : f32
    %78 = vector.broadcast %cst_33 : f32 to vector<8x8xf32>
    %79 = arith.mulf %77, %78 : vector<8x8xf32>
    %cst_34 = arith.constant dense<0xFF800000> : vector<8xf32>
    %80 = vector.multi_reduction <maximumf>, %79, %cst_34 [1] : vector<8x8xf32> to vector<8xf32>
    %81 = vector.shape_cast %80 : vector<8xf32> to vector<8x1xf32>
    %82 = vector.broadcast %81 : vector<8x1xf32> to vector<8x8xf32>
    %83 = arith.subf %79, %82 : vector<8x8xf32>
    %84 = math.exp %83 : vector<8x8xf32>
    %cst_35 = arith.constant dense<0.000000e+00> : vector<8xf32>
    %85 = vector.multi_reduction <add>, %84, %cst_35 [1] : vector<8x8xf32> to vector<8xf32>
    %86 = vector.shape_cast %85 : vector<8xf32> to vector<8x1xf32>
    %87 = tpu.reciprocal %86 {approx = true} : vector<8x1xf32> -> vector<8x1xf32>
    %88 = vector.broadcast %87 : vector<8x1xf32> to vector<8x8xf32>
    %89 = arith.mulf %84, %88 : vector<8x8xf32>
    %cst_36 = arith.constant dense<0.000000e+00> : vector<8x8xf32>
    %90 = tpu.matmul %89, %76, %cst_36 {dimension_numbers = #tpu.dot_dimension_numbers<[1], [0], [0], [1], [0, 0, 1, 1], [], []>} : vector<8x8xf32>, vector<8x8xf32>, vector<8x8xf32> -> vector<8x8xf32>
    %91 = vector.extract_strided_slice %12 {offsets = [24, 0], sizes = [8, 32], strides = [1, 1]} : vector<32x32xf32> to vector<8x32xf32>
    %cst_37 = arith.constant dense<0.000000e+00> : vector<8x32xf32>
    %92 = tpu.matmul %90, %91, %cst_37 {dimension_numbers = #tpu.dot_dimension_numbers<[1], [0], [0], [1], [0, 0, 1, 1], [], []>} : vector<8x8xf32>, vector<8x32xf32>, vector<8x32xf32> -> vector<8x32xf32>
    %93 = arith.addf %73, %92 : vector<8x32xf32>
    %c0_38 = arith.constant 0 : index
    %c0_39 = arith.constant 0 : index
    %94 = vector.load %arg7[%c0_38, %c0_39] : memref<1x32xf32, #tpu.memory_space<vmem>>, vector<1x32xf32>
    %95 = vector.broadcast %94 : vector<1x32xf32> to vector<8x32xf32>
    %96 = arith.addf %93, %95 : vector<8x32xf32>
    %97 = arith.addf %6, %96 : vector<8x32xf32>
    %c0_40 = arith.constant 0 : index
    %c0_41 = arith.constant 0 : index
    %98 = vector.load %arg8[%c0_40, %c0_41] : memref<1x32xf32, #tpu.memory_space<vmem>>, vector<1x32xf32>
    %c0_42 = arith.constant 0 : index
    %c0_43 = arith.constant 0 : index
    %99 = vector.load %arg9[%c0_42, %c0_43] : memref<1x32xf32, #tpu.memory_space<vmem>>, vector<1x32xf32>
    %cst_44 = arith.constant dense<0.000000e+00> : vector<8xf32>
    %100 = vector.multi_reduction <add>, %97, %cst_44 [1] : vector<8x32xf32> to vector<8xf32>
    %101 = vector.shape_cast %100 : vector<8xf32> to vector<8x1xf32>
    %cst_45 = arith.constant 3.200000e+01 : f32
    %102 = vector.broadcast %cst_45 : f32 to vector<8x1xf32>
    %103 = arith.divf %101, %102 : vector<8x1xf32>
    %104 = vector.broadcast %103 : vector<8x1xf32> to vector<8x32xf32>
    %105 = arith.subf %97, %104 : vector<8x32xf32>
    %106 = arith.mulf %105, %105 : vector<8x32xf32>
    %cst_46 = arith.constant dense<0.000000e+00> : vector<8xf32>
    %107 = vector.multi_reduction <add>, %106, %cst_46 [1] : vector<8x32xf32> to vector<8xf32>
    %108 = vector.shape_cast %107 : vector<8xf32> to vector<8x1xf32>
    %cst_47 = arith.constant 3.200000e+01 : f32
    %109 = vector.broadcast %cst_47 : f32 to vector<8x1xf32>
    %110 = arith.divf %108, %109 : vector<8x1xf32>
    %111 = vector.broadcast %103 : vector<8x1xf32> to vector<8x32xf32>
    %112 = arith.subf %97, %111 : vector<8x32xf32>
    %cst_48 = arith.constant 9.99999974E-6 : f32
    %113 = vector.broadcast %cst_48 : f32 to vector<8x1xf32>
    %114 = arith.addf %110, %113 : vector<8x1xf32>
    %115 = math.rsqrt %114 : vector<8x1xf32>
    %116 = vector.broadcast %115 : vector<8x1xf32> to vector<8x32xf32>
    %117 = arith.mulf %112, %116 : vector<8x32xf32>
    %118 = vector.broadcast %98 : vector<1x32xf32> to vector<8x32xf32>
    %119 = arith.mulf %117, %118 : vector<8x32xf32>
    %120 = vector.broadcast %99 : vector<1x32xf32> to vector<8x32xf32>
    %121 = arith.addf %119, %120 : vector<8x32xf32>
    %c0_49 = arith.constant 0 : index
    %c0_50 = arith.constant 0 : index
    %122 = vector.load %arg10[%c0_49, %c0_50] : memref<32x64xf32, #tpu.memory_space<vmem>>, vector<32x64xf32>
    %cst_51 = arith.constant dense<0.000000e+00> : vector<8x64xf32>
    %123 = tpu.matmul %121, %122, %cst_51 {dimension_numbers = #tpu.dot_dimension_numbers<[1], [0], [0], [1], [0, 0, 1, 1], [], []>} : vector<8x32xf32>, vector<32x64xf32>, vector<8x64xf32> -> vector<8x64xf32>
    %c0_52 = arith.constant 0 : index
    %c0_53 = arith.constant 0 : index
    %124 = vector.load %arg11[%c0_52, %c0_53] : memref<1x64xf32, #tpu.memory_space<vmem>>, vector<1x64xf32>
    %125 = vector.broadcast %124 : vector<1x64xf32> to vector<8x64xf32>
    %126 = arith.addf %123, %125 : vector<8x64xf32>
    %cst_54 = arith.constant 0.000000e+00 : f32
    %127 = vector.broadcast %cst_54 : f32 to vector<8x64xf32>
    %128 = arith.maximumf %126, %127 : vector<8x64xf32>
    %c0_55 = arith.constant 0 : index
    %c0_56 = arith.constant 0 : index
    %129 = vector.load %arg12[%c0_55, %c0_56] : memref<64x32xf32, #tpu.memory_space<vmem>>, vector<64x32xf32>
    %cst_57 = arith.constant dense<0.000000e+00> : vector<8x32xf32>
    %130 = tpu.matmul %128, %129, %cst_57 {dimension_numbers = #tpu.dot_dimension_numbers<[1], [0], [0], [1], [0, 0, 1, 1], [], []>} : vector<8x64xf32>, vector<64x32xf32>, vector<8x32xf32> -> vector<8x32xf32>
    %c0_58 = arith.constant 0 : index
    %c0_59 = arith.constant 0 : index
    %131 = vector.load %arg13[%c0_58, %c0_59] : memref<1x32xf32, #tpu.memory_space<vmem>>, vector<1x32xf32>
    %132 = vector.broadcast %131 : vector<1x32xf32> to vector<8x32xf32>
    %133 = arith.addf %130, %132 : vector<8x32xf32>
    %134 = arith.addf %121, %133 : vector<8x32xf32>
    %c0_60 = arith.constant 0 : index
    %c0_61 = arith.constant 0 : index
    %135 = vector.load %arg14[%c0_60, %c0_61] : memref<1x32xf32, #tpu.memory_space<vmem>>, vector<1x32xf32>
    %c0_62 = arith.constant 0 : index
    %c0_63 = arith.constant 0 : index
    %136 = vector.load %arg15[%c0_62, %c0_63] : memref<1x32xf32, #tpu.memory_space<vmem>>, vector<1x32xf32>
    %cst_64 = arith.constant dense<0.000000e+00> : vector<8xf32>
    %137 = vector.multi_reduction <add>, %134, %cst_64 [1] : vector<8x32xf32> to vector<8xf32>
    %138 = vector.shape_cast %137 : vector<8xf32> to vector<8x1xf32>
    %cst_65 = arith.constant 3.200000e+01 : f32
    %139 = vector.broadcast %cst_65 : f32 to vector<8x1xf32>
    %140 = arith.divf %138, %139 : vector<8x1xf32>
    %141 = vector.broadcast %140 : vector<8x1xf32> to vector<8x32xf32>
    %142 = arith.subf %134, %141 : vector<8x32xf32>
    %143 = arith.mulf %142, %142 : vector<8x32xf32>
    %cst_66 = arith.constant dense<0.000000e+00> : vector<8xf32>
    %144 = vector.multi_reduction <add>, %143, %cst_66 [1] : vector<8x32xf32> to vector<8xf32>
    %145 = vector.shape_cast %144 : vector<8xf32> to vector<8x1xf32>
    %cst_67 = arith.constant 3.200000e+01 : f32
    %146 = vector.broadcast %cst_67 : f32 to vector<8x1xf32>
    %147 = arith.divf %145, %146 : vector<8x1xf32>
    %148 = vector.broadcast %140 : vector<8x1xf32> to vector<8x32xf32>
    %149 = arith.subf %134, %148 : vector<8x32xf32>
    %cst_68 = arith.constant 9.99999974E-6 : f32
    %150 = vector.broadcast %cst_68 : f32 to vector<8x1xf32>
    %151 = arith.addf %147, %150 : vector<8x1xf32>
    %152 = math.rsqrt %151 : vector<8x1xf32>
    %153 = vector.broadcast %152 : vector<8x1xf32> to vector<8x32xf32>
    %154 = arith.mulf %149, %153 : vector<8x32xf32>
    %155 = vector.broadcast %135 : vector<1x32xf32> to vector<8x32xf32>
    %156 = arith.mulf %154, %155 : vector<8x32xf32>
    %157 = vector.broadcast %136 : vector<1x32xf32> to vector<8x32xf32>
    %158 = arith.addf %156, %157 : vector<8x32xf32>
    %c0_69 = arith.constant 0 : index
    %c0_70 = arith.constant 0 : index
    %159 = vector.load %arg16[%c0_69, %c0_70] : memref<32x96xf32, #tpu.memory_space<vmem>>, vector<32x96xf32>
    %cst_71 = arith.constant dense<0.000000e+00> : vector<8x96xf32>
    %160 = tpu.matmul %158, %159, %cst_71 {dimension_numbers = #tpu.dot_dimension_numbers<[1], [0], [0], [1], [0, 0, 1, 1], [], []>} : vector<8x32xf32>, vector<32x96xf32>, vector<8x96xf32> -> vector<8x96xf32>
    %c0_72 = arith.constant 0 : index
    %c0_73 = arith.constant 0 : index
    %161 = vector.load %arg17[%c0_72, %c0_73] : memref<1x96xf32, #tpu.memory_space<vmem>>, vector<1x96xf32>
    %162 = vector.broadcast %161 : vector<1x96xf32> to vector<8x96xf32>
    %163 = arith.addf %160, %162 : vector<8x96xf32>
    %c0_74 = arith.constant 0 : index
    %c0_75 = arith.constant 0 : index
    %164 = vector.load %arg18[%c0_74, %c0_75] : memref<32x32xf32, #tpu.memory_space<vmem>>, vector<32x32xf32>
    %cst_76 = arith.constant 0.000000e+00 : f32
    %165 = vector.broadcast %cst_76 : f32 to vector<8x32xf32>
    %166 = vector.extract_strided_slice %163 {offsets = [0, 0], sizes = [8, 8], strides = [1, 1]} : vector<8x96xf32> to vector<8x8xf32>
    %167 = vector.extract_strided_slice %163 {offsets = [0, 32], sizes = [8, 8], strides = [1, 1]} : vector<8x96xf32> to vector<8x8xf32>
    %168 = vector.extract_strided_slice %163 {offsets = [0, 64], sizes = [8, 8], strides = [1, 1]} : vector<8x96xf32> to vector<8x8xf32>
    %cst_77 = arith.constant dense<0.000000e+00> : vector<8x8xf32>
    %169 = tpu.matmul %166, %167, %cst_77 {dimension_numbers = #tpu.dot_dimension_numbers<[1], [1], [0], [0], [0, 0, 1, 0], [], []>} : vector<8x8xf32>, vector<8x8xf32>, vector<8x8xf32> -> vector<8x8xf32>
    %cst_78 = arith.constant 0.353553385 : f32
    %170 = vector.broadcast %cst_78 : f32 to vector<8x8xf32>
    %171 = arith.mulf %169, %170 : vector<8x8xf32>
    %cst_79 = arith.constant dense<0xFF800000> : vector<8xf32>
    %172 = vector.multi_reduction <maximumf>, %171, %cst_79 [1] : vector<8x8xf32> to vector<8xf32>
    %173 = vector.shape_cast %172 : vector<8xf32> to vector<8x1xf32>
    %174 = vector.broadcast %173 : vector<8x1xf32> to vector<8x8xf32>
    %175 = arith.subf %171, %174 : vector<8x8xf32>
    %176 = math.exp %175 : vector<8x8xf32>
    %cst_80 = arith.constant dense<0.000000e+00> : vector<8xf32>
    %177 = vector.multi_reduction <add>, %176, %cst_80 [1] : vector<8x8xf32> to vector<8xf32>
    %178 = vector.shape_cast %177 : vector<8xf32> to vector<8x1xf32>
    %179 = tpu.reciprocal %178 {approx = true} : vector<8x1xf32> -> vector<8x1xf32>
    %180 = vector.broadcast %179 : vector<8x1xf32> to vector<8x8xf32>
    %181 = arith.mulf %176, %180 : vector<8x8xf32>
    %cst_81 = arith.constant dense<0.000000e+00> : vector<8x8xf32>
    %182 = tpu.matmul %181, %168, %cst_81 {dimension_numbers = #tpu.dot_dimension_numbers<[1], [0], [0], [1], [0, 0, 1, 1], [], []>} : vector<8x8xf32>, vector<8x8xf32>, vector<8x8xf32> -> vector<8x8xf32>
    %183 = vector.extract_strided_slice %164 {offsets = [0, 0], sizes = [8, 32], strides = [1, 1]} : vector<32x32xf32> to vector<8x32xf32>
    %cst_82 = arith.constant dense<0.000000e+00> : vector<8x32xf32>
    %184 = tpu.matmul %182, %183, %cst_82 {dimension_numbers = #tpu.dot_dimension_numbers<[1], [0], [0], [1], [0, 0, 1, 1], [], []>} : vector<8x8xf32>, vector<8x32xf32>, vector<8x32xf32> -> vector<8x32xf32>
    %185 = arith.addf %165, %184 : vector<8x32xf32>
    %186 = vector.extract_strided_slice %163 {offsets = [0, 8], sizes = [8, 8], strides = [1, 1]} : vector<8x96xf32> to vector<8x8xf32>
    %187 = vector.extract_strided_slice %163 {offsets = [0, 40], sizes = [8, 8], strides = [1, 1]} : vector<8x96xf32> to vector<8x8xf32>
    %188 = vector.extract_strided_slice %163 {offsets = [0, 72], sizes = [8, 8], strides = [1, 1]} : vector<8x96xf32> to vector<8x8xf32>
    %cst_83 = arith.constant dense<0.000000e+00> : vector<8x8xf32>
    %189 = tpu.matmul %186, %187, %cst_83 {dimension_numbers = #tpu.dot_dimension_numbers<[1], [1], [0], [0], [0, 0, 1, 0], [], []>} : vector<8x8xf32>, vector<8x8xf32>, vector<8x8xf32> -> vector<8x8xf32>
    %cst_84 = arith.constant 0.353553385 : f32
    %190 = vector.broadcast %cst_84 : f32 to vector<8x8xf32>
    %191 = arith.mulf %189, %190 : vector<8x8xf32>
    %cst_85 = arith.constant dense<0xFF800000> : vector<8xf32>
    %192 = vector.multi_reduction <maximumf>, %191, %cst_85 [1] : vector<8x8xf32> to vector<8xf32>
    %193 = vector.shape_cast %192 : vector<8xf32> to vector<8x1xf32>
    %194 = vector.broadcast %193 : vector<8x1xf32> to vector<8x8xf32>
    %195 = arith.subf %191, %194 : vector<8x8xf32>
    %196 = math.exp %195 : vector<8x8xf32>
    %cst_86 = arith.constant dense<0.000000e+00> : vector<8xf32>
    %197 = vector.multi_reduction <add>, %196, %cst_86 [1] : vector<8x8xf32> to vector<8xf32>
    %198 = vector.shape_cast %197 : vector<8xf32> to vector<8x1xf32>
    %199 = tpu.reciprocal %198 {approx = true} : vector<8x1xf32> -> vector<8x1xf32>
    %200 = vector.broadcast %199 : vector<8x1xf32> to vector<8x8xf32>
    %201 = arith.mulf %196, %200 : vector<8x8xf32>
    %cst_87 = arith.constant dense<0.000000e+00> : vector<8x8xf32>
    %202 = tpu.matmul %201, %188, %cst_87 {dimension_numbers = #tpu.dot_dimension_numbers<[1], [0], [0], [1], [0, 0, 1, 1], [], []>} : vector<8x8xf32>, vector<8x8xf32>, vector<8x8xf32> -> vector<8x8xf32>
    %203 = vector.extract_strided_slice %164 {offsets = [8, 0], sizes = [8, 32], strides = [1, 1]} : vector<32x32xf32> to vector<8x32xf32>
    %cst_88 = arith.constant dense<0.000000e+00> : vector<8x32xf32>
    %204 = tpu.matmul %202, %203, %cst_88 {dimension_numbers = #tpu.dot_dimension_numbers<[1], [0], [0], [1], [0, 0, 1, 1], [], []>} : vector<8x8xf32>, vector<8x32xf32>, vector<8x32xf32> -> vector<8x32xf32>
    %205 = arith.addf %185, %204 : vector<8x32xf32>
    %206 = vector.extract_strided_slice %163 {offsets = [0, 16], sizes = [8, 8], strides = [1, 1]} : vector<8x96xf32> to vector<8x8xf32>
    %207 = vector.extract_strided_slice %163 {offsets = [0, 48], sizes = [8, 8], strides = [1, 1]} : vector<8x96xf32> to vector<8x8xf32>
    %208 = vector.extract_strided_slice %163 {offsets = [0, 80], sizes = [8, 8], strides = [1, 1]} : vector<8x96xf32> to vector<8x8xf32>
    %cst_89 = arith.constant dense<0.000000e+00> : vector<8x8xf32>
    %209 = tpu.matmul %206, %207, %cst_89 {dimension_numbers = #tpu.dot_dimension_numbers<[1], [1], [0], [0], [0, 0, 1, 0], [], []>} : vector<8x8xf32>, vector<8x8xf32>, vector<8x8xf32> -> vector<8x8xf32>
    %cst_90 = arith.constant 0.353553385 : f32
    %210 = vector.broadcast %cst_90 : f32 to vector<8x8xf32>
    %211 = arith.mulf %209, %210 : vector<8x8xf32>
    %cst_91 = arith.constant dense<0xFF800000> : vector<8xf32>
    %212 = vector.multi_reduction <maximumf>, %211, %cst_91 [1] : vector<8x8xf32> to vector<8xf32>
    %213 = vector.shape_cast %212 : vector<8xf32> to vector<8x1xf32>
    %214 = vector.broadcast %213 : vector<8x1xf32> to vector<8x8xf32>
    %215 = arith.subf %211, %214 : vector<8x8xf32>
    %216 = math.exp %215 : vector<8x8xf32>
    %cst_92 = arith.constant dense<0.000000e+00> : vector<8xf32>
    %217 = vector.multi_reduction <add>, %216, %cst_92 [1] : vector<8x8xf32> to vector<8xf32>
    %218 = vector.shape_cast %217 : vector<8xf32> to vector<8x1xf32>
    %219 = tpu.reciprocal %218 {approx = true} : vector<8x1xf32> -> vector<8x1xf32>
    %220 = vector.broadcast %219 : vector<8x1xf32> to vector<8x8xf32>
    %221 = arith.mulf %216, %220 : vector<8x8xf32>
    %cst_93 = arith.constant dense<0.000000e+00> : vector<8x8xf32>
    %222 = tpu.matmul %221, %208, %cst_93 {dimension_numbers = #tpu.dot_dimension_numbers<[1], [0], [0], [1], [0, 0, 1, 1], [], []>} : vector<8x8xf32>, vector<8x8xf32>, vector<8x8xf32> -> vector<8x8xf32>
    %223 = vector.extract_strided_slice %164 {offsets = [16, 0], sizes = [8, 32], strides = [1, 1]} : vector<32x32xf32> to vector<8x32xf32>
    %cst_94 = arith.constant dense<0.000000e+00> : vector<8x32xf32>
    %224 = tpu.matmul %222, %223, %cst_94 {dimension_numbers = #tpu.dot_dimension_numbers<[1], [0], [0], [1], [0, 0, 1, 1], [], []>} : vector<8x8xf32>, vector<8x32xf32>, vector<8x32xf32> -> vector<8x32xf32>
    %225 = arith.addf %205, %224 : vector<8x32xf32>
    %226 = vector.extract_strided_slice %163 {offsets = [0, 24], sizes = [8, 8], strides = [1, 1]} : vector<8x96xf32> to vector<8x8xf32>
    %227 = vector.extract_strided_slice %163 {offsets = [0, 56], sizes = [8, 8], strides = [1, 1]} : vector<8x96xf32> to vector<8x8xf32>
    %228 = vector.extract_strided_slice %163 {offsets = [0, 88], sizes = [8, 8], strides = [1, 1]} : vector<8x96xf32> to vector<8x8xf32>
    %cst_95 = arith.constant dense<0.000000e+00> : vector<8x8xf32>
    %229 = tpu.matmul %226, %227, %cst_95 {dimension_numbers = #tpu.dot_dimension_numbers<[1], [1], [0], [0], [0, 0, 1, 0], [], []>} : vector<8x8xf32>, vector<8x8xf32>, vector<8x8xf32> -> vector<8x8xf32>
    %cst_96 = arith.constant 0.353553385 : f32
    %230 = vector.broadcast %cst_96 : f32 to vector<8x8xf32>
    %231 = arith.mulf %229, %230 : vector<8x8xf32>
    %cst_97 = arith.constant dense<0xFF800000> : vector<8xf32>
    %232 = vector.multi_reduction <maximumf>, %231, %cst_97 [1] : vector<8x8xf32> to vector<8xf32>
    %233 = vector.shape_cast %232 : vector<8xf32> to vector<8x1xf32>
    %234 = vector.broadcast %233 : vector<8x1xf32> to vector<8x8xf32>
    %235 = arith.subf %231, %234 : vector<8x8xf32>
    %236 = math.exp %235 : vector<8x8xf32>
    %cst_98 = arith.constant dense<0.000000e+00> : vector<8xf32>
    %237 = vector.multi_reduction <add>, %236, %cst_98 [1] : vector<8x8xf32> to vector<8xf32>
    %238 = vector.shape_cast %237 : vector<8xf32> to vector<8x1xf32>
    %239 = tpu.reciprocal %238 {approx = true} : vector<8x1xf32> -> vector<8x1xf32>
    %240 = vector.broadcast %239 : vector<8x1xf32> to vector<8x8xf32>
    %241 = arith.mulf %236, %240 : vector<8x8xf32>
    %cst_99 = arith.constant dense<0.000000e+00> : vector<8x8xf32>
    %242 = tpu.matmul %241, %228, %cst_99 {dimension_numbers = #tpu.dot_dimension_numbers<[1], [0], [0], [1], [0, 0, 1, 1], [], []>} : vector<8x8xf32>, vector<8x8xf32>, vector<8x8xf32> -> vector<8x8xf32>
    %243 = vector.extract_strided_slice %164 {offsets = [24, 0], sizes = [8, 32], strides = [1, 1]} : vector<32x32xf32> to vector<8x32xf32>
    %cst_100 = arith.constant dense<0.000000e+00> : vector<8x32xf32>
    %244 = tpu.matmul %242, %243, %cst_100 {dimension_numbers = #tpu.dot_dimension_numbers<[1], [0], [0], [1], [0, 0, 1, 1], [], []>} : vector<8x8xf32>, vector<8x32xf32>, vector<8x32xf32> -> vector<8x32xf32>
    %245 = arith.addf %225, %244 : vector<8x32xf32>
    %c0_101 = arith.constant 0 : index
    %c0_102 = arith.constant 0 : index
    %246 = vector.load %arg19[%c0_101, %c0_102] : memref<1x32xf32, #tpu.memory_space<vmem>>, vector<1x32xf32>
    %247 = vector.broadcast %246 : vector<1x32xf32> to vector<8x32xf32>
    %248 = arith.addf %245, %247 : vector<8x32xf32>
    %249 = arith.addf %158, %248 : vector<8x32xf32>
    %c0_103 = arith.constant 0 : index
    %c0_104 = arith.constant 0 : index
    %250 = vector.load %arg20[%c0_103, %c0_104] : memref<1x32xf32, #tpu.memory_space<vmem>>, vector<1x32xf32>
    %c0_105 = arith.constant 0 : index
    %c0_106 = arith.constant 0 : index
    %251 = vector.load %arg21[%c0_105, %c0_106] : memref<1x32xf32, #tpu.memory_space<vmem>>, vector<1x32xf32>
    %cst_107 = arith.constant dense<0.000000e+00> : vector<8xf32>
    %252 = vector.multi_reduction <add>, %249, %cst_107 [1] : vector<8x32xf32> to vector<8xf32>
    %253 = vector.shape_cast %252 : vector<8xf32> to vector<8x1xf32>
    %cst_108 = arith.constant 3.200000e+01 : f32
    %254 = vector.broadcast %cst_108 : f32 to vector<8x1xf32>
    %255 = arith.divf %253, %254 : vector<8x1xf32>
    %256 = vector.broadcast %255 : vector<8x1xf32> to vector<8x32xf32>
    %257 = arith.subf %249, %256 : vector<8x32xf32>
    %258 = arith.mulf %257, %257 : vector<8x32xf32>
    %cst_109 = arith.constant dense<0.000000e+00> : vector<8xf32>
    %259 = vector.multi_reduction <add>, %258, %cst_109 [1] : vector<8x32xf32> to vector<8xf32>
    %260 = vector.shape_cast %259 : vector<8xf32> to vector<8x1xf32>
    %cst_110 = arith.constant 3.200000e+01 : f32
    %261 = vector.broadcast %cst_110 : f32 to vector<8x1xf32>
    %262 = arith.divf %260, %261 : vector<8x1xf32>
    %263 = vector.broadcast %255 : vector<8x1xf32> to vector<8x32xf32>
    %264 = arith.subf %249, %263 : vector<8x32xf32>
    %cst_111 = arith.constant 9.99999974E-6 : f32
    %265 = vector.broadcast %cst_111 : f32 to vector<8x1xf32>
    %266 = arith.addf %262, %265 : vector<8x1xf32>
    %267 = math.rsqrt %266 : vector<8x1xf32>
    %268 = vector.broadcast %267 : vector<8x1xf32> to vector<8x32xf32>
    %269 = arith.mulf %264, %268 : vector<8x32xf32>
    %270 = vector.broadcast %250 : vector<1x32xf32> to vector<8x32xf32>
    %271 = arith.mulf %269, %270 : vector<8x32xf32>
    %272 = vector.broadcast %251 : vector<1x32xf32> to vector<8x32xf32>
    %273 = arith.addf %271, %272 : vector<8x32xf32>
    %c0_112 = arith.constant 0 : index
    %c0_113 = arith.constant 0 : index
    %274 = vector.load %arg22[%c0_112, %c0_113] : memref<32x64xf32, #tpu.memory_space<vmem>>, vector<32x64xf32>
    %cst_114 = arith.constant dense<0.000000e+00> : vector<8x64xf32>
    %275 = tpu.matmul %273, %274, %cst_114 {dimension_numbers = #tpu.dot_dimension_numbers<[1], [0], [0], [1], [0, 0, 1, 1], [], []>} : vector<8x32xf32>, vector<32x64xf32>, vector<8x64xf32> -> vector<8x64xf32>
    %c0_115 = arith.constant 0 : index
    %c0_116 = arith.constant 0 : index
    %276 = vector.load %arg23[%c0_115, %c0_116] : memref<1x64xf32, #tpu.memory_space<vmem>>, vector<1x64xf32>
    %277 = vector.broadcast %276 : vector<1x64xf32> to vector<8x64xf32>
    %278 = arith.addf %275, %277 : vector<8x64xf32>
    %cst_117 = arith.constant 0.000000e+00 : f32
    %279 = vector.broadcast %cst_117 : f32 to vector<8x64xf32>
    %280 = arith.maximumf %278, %279 : vector<8x64xf32>
    %c0_118 = arith.constant 0 : index
    %c0_119 = arith.constant 0 : index
    %281 = vector.load %arg24[%c0_118, %c0_119] : memref<64x32xf32, #tpu.memory_space<vmem>>, vector<64x32xf32>
    %cst_120 = arith.constant dense<0.000000e+00> : vector<8x32xf32>
    %282 = tpu.matmul %280, %281, %cst_120 {dimension_numbers = #tpu.dot_dimension_numbers<[1], [0], [0], [1], [0, 0, 1, 1], [], []>} : vector<8x64xf32>, vector<64x32xf32>, vector<8x32xf32> -> vector<8x32xf32>
    %c0_121 = arith.constant 0 : index
    %c0_122 = arith.constant 0 : index
    %283 = vector.load %arg25[%c0_121, %c0_122] : memref<1x32xf32, #tpu.memory_space<vmem>>, vector<1x32xf32>
    %284 = vector.broadcast %283 : vector<1x32xf32> to vector<8x32xf32>
    %285 = arith.addf %282, %284 : vector<8x32xf32>
    %286 = arith.addf %273, %285 : vector<8x32xf32>
    %c0_123 = arith.constant 0 : index
    %c0_124 = arith.constant 0 : index
    %287 = vector.load %arg26[%c0_123, %c0_124] : memref<1x32xf32, #tpu.memory_space<vmem>>, vector<1x32xf32>
    %c0_125 = arith.constant 0 : index
    %c0_126 = arith.constant 0 : index
    %288 = vector.load %arg27[%c0_125, %c0_126] : memref<1x32xf32, #tpu.memory_space<vmem>>, vector<1x32xf32>
    %cst_127 = arith.constant dense<0.000000e+00> : vector<8xf32>
    %289 = vector.multi_reduction <add>, %286, %cst_127 [1] : vector<8x32xf32> to vector<8xf32>
    %290 = vector.shape_cast %289 : vector<8xf32> to vector<8x1xf32>
    %cst_128 = arith.constant 3.200000e+01 : f32
    %291 = vector.broadcast %cst_128 : f32 to vector<8x1xf32>
    %292 = arith.divf %290, %291 : vector<8x1xf32>
    %293 = vector.broadcast %292 : vector<8x1xf32> to vector<8x32xf32>
    %294 = arith.subf %286, %293 : vector<8x32xf32>
    %295 = arith.mulf %294, %294 : vector<8x32xf32>
    %cst_129 = arith.constant dense<0.000000e+00> : vector<8xf32>
    %296 = vector.multi_reduction <add>, %295, %cst_129 [1] : vector<8x32xf32> to vector<8xf32>
    %297 = vector.shape_cast %296 : vector<8xf32> to vector<8x1xf32>
    %cst_130 = arith.constant 3.200000e+01 : f32
    %298 = vector.broadcast %cst_130 : f32 to vector<8x1xf32>
    %299 = arith.divf %297, %298 : vector<8x1xf32>
    %300 = vector.broadcast %292 : vector<8x1xf32> to vector<8x32xf32>
    %301 = arith.subf %286, %300 : vector<8x32xf32>
    %cst_131 = arith.constant 9.99999974E-6 : f32
    %302 = vector.broadcast %cst_131 : f32 to vector<8x1xf32>
    %303 = arith.addf %299, %302 : vector<8x1xf32>
    %304 = math.rsqrt %303 : vector<8x1xf32>
    %305 = vector.broadcast %304 : vector<8x1xf32> to vector<8x32xf32>
    %306 = arith.mulf %301, %305 : vector<8x32xf32>
    %307 = vector.broadcast %287 : vector<1x32xf32> to vector<8x32xf32>
    %308 = arith.mulf %306, %307 : vector<8x32xf32>
    %309 = vector.broadcast %288 : vector<1x32xf32> to vector<8x32xf32>
    %310 = arith.addf %308, %309 : vector<8x32xf32>
    %311 = vector.extract_strided_slice %310 {offsets = [7, 0], sizes = [1, 32], strides = [1, 1]} : vector<8x32xf32> to vector<1x32xf32>
    %c0_132 = arith.constant 0 : index
    %c0_133 = arith.constant 0 : index
    %312 = vector.load %arg28[%c0_132, %c0_133] : memref<32x16xf32, #tpu.memory_space<vmem>>, vector<32x16xf32>
    %cst_134 = arith.constant dense<0.000000e+00> : vector<1x16xf32>
    %313 = tpu.matmul %311, %312, %cst_134 {dimension_numbers = #tpu.dot_dimension_numbers<[1], [0], [0], [1], [0, 0, 1, 1], [], []>} : vector<1x32xf32>, vector<32x16xf32>, vector<1x16xf32> -> vector<1x16xf32>
    %c0_135 = arith.constant 0 : index
    %c0_136 = arith.constant 0 : index
    %314 = vector.load %arg29[%c0_135, %c0_136] : memref<1x16xf32, #tpu.memory_space<vmem>>, vector<1x16xf32>
    %315 = arith.addf %313, %314 : vector<1x16xf32>
    %316 = arith.mulf %315, %315 : vector<1x16xf32>
    %cst_137 = arith.constant dense<0.000000e+00> : vector<1xf32>
    %317 = vector.multi_reduction <add>, %316, %cst_137 [1] : vector<1x16xf32> to vector<1xf32>
    %318 = vector.shape_cast %317 : vector<1xf32> to vector<1x1xf32>
    %319 = math.sqrt %318 : vector<1x1xf32>
    %cst_138 = arith.constant 9.99999996E-13 : f32
    %320 = vector.broadcast %cst_138 : f32 to vector<1x1xf32>
    %321 = arith.maximumf %319, %320 : vector<1x1xf32>
    %322 = vector.broadcast %321 : vector<1x1xf32> to vector<1x16xf32>
    %323 = arith.divf %315, %322 : vector<1x16xf32>
    %c0_139 = arith.constant 0 : index
    %c0_140 = arith.constant 0 : index
    %c0_141 = arith.constant 0 : index
    %324 = vector.load %arg30[%c0_139, %c0_140, %c0_141] : memref<1x1x16xf32, #tpu.memory_space<vmem>>, vector<1x1x16xf32>
    %325 = vector.shape_cast %324 : vector<1x1x16xf32> to vector<1x16xf32>
    %326 = vector.shape_cast %323 : vector<1x16xf32> to vector<1x1x16xf32>
    tpu.vector_store %arg30[%c0_139, %c0_140, %c0_141], %326 {strides = array<i32>} : memref<1x1x16xf32, #tpu.memory_space<vmem>>, vector<1x1x16xf32>,
    return
  }
  func.func @transform_0(%arg0: i32) -> (i32, i32, i32) {
    %c0_i32 = arith.constant 0 : i32
    %c0_i32_0 = arith.constant 0 : i32
    %c0_i32_1 = arith.constant 0 : i32
    return %arg0, %c0_i32, %c0_i32_0 : i32, i32, i32
  }
  func.func @transform_1(%arg0: i32) -> (i32, i32) {
    %c0_i32 = arith.constant 0 : i32
    %c0_i32_0 = arith.constant 0 : i32
    %c0_i32_1 = arith.constant 0 : i32
    return %c0_i32, %c0_i32_0 : i32, i32
  }
  func.func @transform_2(%arg0: i32) -> (i32, i32) {
    %c0_i32 = arith.constant 0 : i32
    %c0_i32_0 = arith.constant 0 : i32
    %c0_i32_1 = arith.constant 0 : i32
    return %c0_i32, %c0_i32_0 : i32, i32
  }
  func.func @transform_3(%arg0: i32) -> (i32, i32) {
    %c0_i32 = arith.constant 0 : i32
    %c0_i32_0 = arith.constant 0 : i32
    %c0_i32_1 = arith.constant 0 : i32
    return %c0_i32, %c0_i32_0 : i32, i32
  }
  func.func @transform_4(%arg0: i32) -> (i32, i32) {
    %c0_i32 = arith.constant 0 : i32
    %c0_i32_0 = arith.constant 0 : i32
    %c0_i32_1 = arith.constant 0 : i32
    return %c0_i32, %c0_i32_0 : i32, i32
  }
  func.func @transform_5(%arg0: i32) -> (i32, i32) {
    %c0_i32 = arith.constant 0 : i32
    %c0_i32_0 = arith.constant 0 : i32
    %c0_i32_1 = arith.constant 0 : i32
    return %c0_i32, %c0_i32_0 : i32, i32
  }
  func.func @transform_6(%arg0: i32) -> (i32, i32) {
    %c0_i32 = arith.constant 0 : i32
    %c0_i32_0 = arith.constant 0 : i32
    %c0_i32_1 = arith.constant 0 : i32
    return %c0_i32, %c0_i32_0 : i32, i32
  }
  func.func @transform_7(%arg0: i32) -> (i32, i32) {
    %c0_i32 = arith.constant 0 : i32
    %c0_i32_0 = arith.constant 0 : i32
    %c0_i32_1 = arith.constant 0 : i32
    return %c0_i32, %c0_i32_0 : i32, i32
  }
  func.func @transform_8(%arg0: i32) -> (i32, i32) {
    %c0_i32 = arith.constant 0 : i32
    %c0_i32_0 = arith.constant 0 : i32
    %c0_i32_1 = arith.constant 0 : i32
    return %c0_i32, %c0_i32_0 : i32, i32
  }
  func.func @transform_9(%arg0: i32) -> (i32, i32) {
    %c0_i32 = arith.constant 0 : i32
    %c0_i32_0 = arith.constant 0 : i32
    %c0_i32_1 = arith.constant 0 : i32
    return %c0_i32, %c0_i32_0 : i32, i32
  }
  func.func @transform_10(%arg0: i32) -> (i32, i32) {
    %c0_i32 = arith.constant 0 : i32
    %c0_i32_0 = arith.constant 0 : i32
    %c0_i32_1 = arith.constant 0 : i32
    return %c0_i32, %c0_i32_0 : i32, i32
  }
  func.func @transform_11(%arg0: i32) -> (i32, i32) {
    %c0_i32 = arith.constant 0 : i32
    %c0_i32_0 = arith.constant 0 : i32
    %c0_i32_1 = arith.constant 0 : i32
    return %c0_i32, %c0_i32_0 : i32, i32
  }
  func.func @transform_12(%arg0: i32) -> (i32, i32) {
    %c0_i32 = arith.constant 0 : i32
    %c0_i32_0 = arith.constant 0 : i32
    %c0_i32_1 = arith.constant 0 : i32
    return %c0_i32, %c0_i32_0 : i32, i32
  }
  func.func @transform_13(%arg0: i32) -> (i32, i32) {
    %c0_i32 = arith.constant 0 : i32
    %c0_i32_0 = arith.constant 0 : i32
    %c0_i32_1 = arith.constant 0 : i32
    return %c0_i32, %c0_i32_0 : i32, i32
  }
  func.func @transform_14(%arg0: i32) -> (i32, i32) {
    %c0_i32 = arith.constant 0 : i32
    %c0_i32_0 = arith.constant 0 : i32
    %c0_i32_1 = arith.constant 0 : i32
    return %c0_i32, %c0_i32_0 : i32, i32
  }
  func.func @transform_15(%arg0: i32) -> (i32, i32) {
    %c0_i32 = arith.constant 0 : i32
    %c0_i32_0 = arith.constant 0 : i32
    %c0_i32_1 = arith.constant 0 : i32
    return %c0_i32, %c0_i32_0 : i32, i32
  }
  func.func @transform_16(%arg0: i32) -> (i32, i32) {
    %c0_i32 = arith.constant 0 : i32
    %c0_i32_0 = arith.constant 0 : i32
    %c0_i32_1 = arith.constant 0 : i32
    return %c0_i32, %c0_i32_0 : i32, i32
  }
  func.func @transform_17(%arg0: i32) -> (i32, i32) {
    %c0_i32 = arith.constant 0 : i32
    %c0_i32_0 = arith.constant 0 : i32
    %c0_i32_1 = arith.constant 0 : i32
    return %c0_i32, %c0_i32_0 : i32, i32
  }
  func.func @transform_18(%arg0: i32) -> (i32, i32) {
    %c0_i32 = arith.constant 0 : i32
    %c0_i32_0 = arith.constant 0 : i32
    %c0_i32_1 = arith.constant 0 : i32
    return %c0_i32, %c0_i32_0 : i32, i32
  }
  func.func @transform_19(%arg0: i32) -> (i32, i32) {
    %c0_i32 = arith.constant 0 : i32
    %c0_i32_0 = arith.constant 0 : i32
    %c0_i32_1 = arith.constant 0 : i32
    return %c0_i32, %c0_i32_0 : i32, i32
  }
  func.func @transform_20(%arg0: i32) -> (i32, i32) {
    %c0_i32 = arith.constant 0 : i32
    %c0_i32_0 = arith.constant 0 : i32
    %c0_i32_1 = arith.constant 0 : i32
    return %c0_i32, %c0_i32_0 : i32, i32
  }
  func.func @transform_21(%arg0: i32) -> (i32, i32) {
    %c0_i32 = arith.constant 0 : i32
    %c0_i32_0 = arith.constant 0 : i32
    %c0_i32_1 = arith.constant 0 : i32
    return %c0_i32, %c0_i32_0 : i32, i32
  }
  func.func @transform_22(%arg0: i32) -> (i32, i32) {
    %c0_i32 = arith.constant 0 : i32
    %c0_i32_0 = arith.constant 0 : i32
    %c0_i32_1 = arith.constant 0 : i32
    return %c0_i32, %c0_i32_0 : i32, i32
  }
  func.func @transform_23(%arg0: i32) -> (i32, i32) {
    %c0_i32 = arith.constant 0 : i32
    %c0_i32_0 = arith.constant 0 : i32
    %c0_i32_1 = arith.constant 0 : i32
    return %c0_i32, %c0_i32_0 : i32, i32
  }
  func.func @transform_24(%arg0: i32) -> (i32, i32) {
    %c0_i32 = arith.constant 0 : i32
    %c0_i32_0 = arith.constant 0 : i32
    %c0_i32_1 = arith.constant 0 : i32
    return %c0_i32, %c0_i32_0 : i32, i32
  }
  func.func @transform_25(%arg0: i32) -> (i32, i32) {
    %c0_i32 = arith.constant 0 : i32
    %c0_i32_0 = arith.constant 0 : i32
    %c0_i32_1 = arith.constant 0 : i32
    return %c0_i32, %c0_i32_0 : i32, i32
  }
  func.func @transform_26(%arg0: i32) -> (i32, i32) {
    %c0_i32 = arith.constant 0 : i32
    %c0_i32_0 = arith.constant 0 : i32
    %c0_i32_1 = arith.constant 0 : i32
    return %c0_i32, %c0_i32_0 : i32, i32
  }
  func.func @transform_27(%arg0: i32) -> (i32, i32) {
    %c0_i32 = arith.constant 0 : i32
    %c0_i32_0 = arith.constant 0 : i32
    %c0_i32_1 = arith.constant 0 : i32
    return %c0_i32, %c0_i32_0 : i32, i32
  }
  func.func @transform_28(%arg0: i32) -> (i32, i32) {
    %c0_i32 = arith.constant 0 : i32
    %c0_i32_0 = arith.constant 0 : i32
    %c0_i32_1 = arith.constant 0 : i32
    return %c0_i32, %c0_i32_0 : i32, i32
  }
  func.func @transform_29(%arg0: i32) -> (i32, i32, i32) {
    %c0_i32 = arith.constant 0 : i32
    %c0_i32_0 = arith.constant 0 : i32
    %c0_i32_1 = arith.constant 0 : i32
    return %arg0, %c0_i32, %c0_i32_0 : i32, i32, i32
  }
}

</mosaic_0001>

<llo_original>
// kernel: transformer_embedding_generator.1
$region0: #{transformer_embedding_generator.1}
  #allocation0 [shape = 'u32[]', space=smem, size = 0x4, offset = 0x4, fixed_abs, tag = 'smem constant byte address 0x4 - core index']
  #allocation1 [shape = 'u32[144,128]{1,0:T(1,128)}', space=vmem, size = 0x12000, scoped, tag = 'internal scratch']
  %s0 = inlined_call_operand.smem [shape: u32[30], index: -1, kind: input, shape index: {}]
  %s1 = sld [smem:[%s0]]
  %s2 = scalar_lea.smem %s0, 1
  %s3 = sld [smem:[%s2]]
  %s4 = scalar_lea.smem %s0, 2
  %s5 = sld [smem:[%s4]]
  %s6 = scalar_lea.smem %s0, 3
  %s7 = sld [smem:[%s6]]
  %s8 = scalar_lea.smem %s0, 4
  %s9 = sld [smem:[%s8]]
  %s10 = scalar_lea.smem %s0, 5
  %s11 = sld [smem:[%s10]]
  %s12 = scalar_lea.smem %s0, 6
  %s13 = sld [smem:[%s12]]
  %s14 = scalar_lea.smem %s0, 7
  %s15 = sld [smem:[%s14]]
  %s16 = scalar_lea.smem %s0, 8
  %s17 = sld [smem:[%s16]]
  %s18 = scalar_lea.smem %s0, 9
  %s19 = sld [smem:[%s18]]
  %s20 = scalar_lea.smem %s0, 10
  %s21 = sld [smem:[%s20]]
  %s22 = scalar_lea.smem %s0, 11
  %s23 = sld [smem:[%s22]]
  %s24 = scalar_lea.smem %s0, 12
  %s25 = sld [smem:[%s24]]
  %s26 = scalar_lea.smem %s0, 13
  %s27 = sld [smem:[%s26]]
  %s28 = scalar_lea.smem %s0, 14
  %s29 = sld [smem:[%s28]]
  %s30 = scalar_lea.smem %s0, 15
  %s31 = sld [smem:[%s30]]
  %s32 = scalar_lea.smem %s0, 16
  %s33 = sld [smem:[%s32]]
  %s34 = scalar_lea.smem %s0, 17
  %s35 = sld [smem:[%s34]]
  %s36 = scalar_lea.smem %s0, 18
  %s37 = sld [smem:[%s36]]
  %s38 = scalar_lea.smem %s0, 19
  %s39 = sld [smem:[%s38]]
  %s40 = scalar_lea.smem %s0, 20
  %s41 = sld [smem:[%s40]]
  %s42 = scalar_lea.smem %s0, 21
  %s43 = sld [smem:[%s42]]
  %s44 = scalar_lea.smem %s0, 22
  %s45 = sld [smem:[%s44]]
  %s46 = scalar_lea.smem %s0, 23
  %s47 = sld [smem:[%s46]]
  %s48 = scalar_lea.smem %s0, 24
  %s49 = sld [smem:[%s48]]
  %s50 = scalar_lea.smem %s0, 25
  %s51 = sld [smem:[%s50]]
  %s52 = scalar_lea.smem %s0, 26
  %s53 = sld [smem:[%s52]]
  %s54 = scalar_lea.smem %s0, 27
  %s55 = sld [smem:[%s54]]
  %s56 = scalar_lea.smem %s0, 28
  %s57 = sld [smem:[%s56]]
  %s58 = scalar_lea.smem %s0, 29
  %s59 = sld [smem:[%s58]]
  %s60 = sld [smem:[#allocation0]]
  $region149: #{transformer_embedding_generator.1} parent=0
    _
  %s62 = ssub.s32 1, %s60
  %s63 = scalar_select 0, %s62, %s60
  $region1: #{transformer_embedding_generator.1} parent=0
    #allocation2 [shape = 'u8[1024]{0}', space=vmem, size = 0x400, scoped, tag = 'output window, operand 0']
    #allocation3 [shape = 's32[2]{0}', space=sflag, size = 0x8, scoped, tag = 'scoped memory for transformer_embedding_generator.1']
    %64 = vsyncpa [#allocation3], 0
    %s65 = scalar_lea.sflag [#allocation3], 1
    %66 = vsyncpa %s65, 0
    loop: start=0, step=1, limit=4
    $region2: #{transformer_embedding_generator.1} parent=1 // loop_pre_header
      _
    $region3: #{transformer_embedding_generator.1} parent=1 // loop_header
      %s68 = sphi 0, %s72
      %p69 = scmp.ge.s32.totalorder %s68, 4
      %s78 = sphi 0, %s80
      %s81 = sphi 0, %s78
      %s82 = sphi 0, %s81
      %s98 = sphi 0, %s82
      %s102 = sphi 0, %s102
      %s104 = sphi 0, %s102
      %s105 = sphi 0, %s104
      %s119 = sphi 0, %s105
      %s123 = sphi 0, %s123
      %s125 = sphi 0, %s123
      %s126 = sphi 0, %s125
      %s140 = sphi 0, %s126
      %s144 = sphi 0, %s144
      %s146 = sphi 0, %s144
      %s147 = sphi 0, %s146
      %s161 = sphi 0, %s147
      %s165 = sphi 0, %s165
      %s167 = sphi 0, %s165
      %s168 = sphi 0, %s167
      %s182 = sphi 0, %s168
      %s186 = sphi 0, %s186
      %s188 = sphi 0, %s186
      %s189 = sphi 0, %s188
      %s203 = sphi 0, %s189
      %s207 = sphi 0, %s207
      %s209 = sphi 0, %s207
      %s210 = sphi 0, %s209
      %s224 = sphi 0, %s210
      %s228 = sphi 0, %s228
      %s230 = sphi 0, %s228
      %s231 = sphi 0, %s230
      %s245 = sphi 0, %s231
      %s249 = sphi 0, %s249
      %s251 = sphi 0, %s249
      %s252 = sphi 0, %s251
      %s266 = sphi 0, %s252
      %s270 = sphi 0, %s270
      %s272 = sphi 0, %s270
      %s273 = sphi 0, %s272
      %s287 = sphi 0, %s273
      %s291 = sphi 0, %s291
      %s293 = sphi 0, %s291
      %s294 = sphi 0, %s293
      %s308 = sphi 0, %s294
      %s312 = sphi 0, %s312
      %s314 = sphi 0, %s312
      %s315 = sphi 0, %s314
      %s329 = sphi 0, %s315
      %s333 = sphi 0, %s333
      %s335 = sphi 0, %s333
      %s336 = sphi 0, %s335
      %s350 = sphi 0, %s336
      %s354 = sphi 0, %s354
      %s356 = sphi 0, %s354
      %s357 = sphi 0, %s356
      %s371 = sphi 0, %s357
      %s375 = sphi 0, %s375
      %s377 = sphi 0, %s375
      %s378 = sphi 0, %s377
      %s392 = sphi 0, %s378
      %s396 = sphi 0, %s396
      %s398 = sphi 0, %s396
      %s399 = sphi 0, %s398
      %s413 = sphi 0, %s399
      %s417 = sphi 0, %s417
      %s419 = sphi 0, %s417
      %s420 = sphi 0, %s419
      %s434 = sphi 0, %s420
      %s438 = sphi 0, %s438
      %s440 = sphi 0, %s438
      %s441 = sphi 0, %s440
      %s455 = sphi 0, %s441
      %s459 = sphi 0, %s459
      %s461 = sphi 0, %s459
      %s462 = sphi 0, %s461
      %s476 = sphi 0, %s462
      %s480 = sphi 0, %s480
      %s482 = sphi 0, %s480
      %s483 = sphi 0, %s482
      %s497 = sphi 0, %s483
      %s501 = sphi 0, %s501
      %s503 = sphi 0, %s501
      %s504 = sphi 0, %s503
      %s518 = sphi 0, %s504
      %s522 = sphi 0, %s522
      %s524 = sphi 0, %s522
      %s525 = sphi 0, %s524
      %s539 = sphi 0, %s525
      %s543 = sphi 0, %s543
      %s545 = sphi 0, %s543
      %s546 = sphi 0, %s545
      %s560 = sphi 0, %s546
      %s564 = sphi 0, %s564
      %s566 = sphi 0, %s564
      %s567 = sphi 0, %s566
      %s581 = sphi 0, %s567
      %s585 = sphi 0, %s585
      %s587 = sphi 0, %s585
      %s588 = sphi 0, %s587
      %s602 = sphi 0, %s588
      %s606 = sphi 0, %s606
      %s608 = sphi 0, %s606
      %s609 = sphi 0, %s608
      %s623 = sphi 0, %s609
      %s627 = sphi 0, %s627
      %s629 = sphi 0, %s627
      %s630 = sphi 0, %s629
      %s644 = sphi 0, %s630
      %s648 = sphi 0, %s648
      %s650 = sphi 0, %s648
      %s651 = sphi 0, %s650
      %s665 = sphi 0, %s651
      %s669 = sphi 0, %s669
      %s671 = sphi 0, %s669
      %s672 = sphi 0, %s671
      %s686 = sphi 0, %s672
      %s692 = sphi 0, %s694
      %s695 = sphi 0, %s692
      %s696 = sphi 0, %s695
      %s712 = sphi 0, %s696
    $region4: #{transformer_embedding_generator.1} parent=1 // loop_header_branch
      %71 = sbr.rel (%p69) target = $region8
    $region5: #{transformer_embedding_generator.1} parent=1 // loop_body
      %s73 = ssub.s32 %s68, 1
      %s74 = ssub.s32 %s68, 2
      %s75 = sadd.s32 %s68, 1
      %s76 = ssub.s32 %s68, %s75
      %p77 = scmp.eq.s32.totalorder %s76, 0
      %s79 = sadd.s32 %s78, 1
      %s80 = scalar_select %p77, %s78, %s79
      %p83 = pneg %p77
      %p84 = scmp.eq.s32.totalorder %s68, 1
      %p85 = por %p83, %p84
      %p86 = scmp.ne.s32.totalorder %s78, %s81
      %p87 = scmp.eq.s32.totalorder %s68, 0
      %p88 = por %p86, %p87
      %p89 = scmp.ne.s32.totalorder %s78, %s81
      %p90 = scmp.eq.s32.totalorder %s73, 1
      %p91 = por %p89, %p90
      %p92 = scmp.ne.s32.totalorder %s81, %s82
      %p93 = scmp.eq.s32.totalorder %s73, 0
      %p94 = por %p92, %p93
      %p95 = scmp.ne.s32.totalorder %s81, %s82
      %p96 = scmp.eq.s32.totalorder %s74, 1
      %p97 = por %p95, %p96
      %p99 = scmp.ne.s32.totalorder %s82, %s98
      %p100 = scmp.eq.s32.totalorder %s74, 0
      %p101 = por %p99, %p100
      %s103 = sadd.s32 %s102, 1
      %p106 = scmp.eq.s32.totalorder %s68, 1
      %p107 = scmp.ne.s32.totalorder %s102, %s104
      %p108 = scmp.eq.s32.totalorder %s68, 0
      %p109 = por %p107, %p108
      %p110 = scmp.ne.s32.totalorder %s102, %s104
      %p111 = scmp.eq.s32.totalorder %s73, 1
      %p112 = por %p110, %p111
      %p113 = scmp.ne.s32.totalorder %s104, %s105
      %p114 = scmp.eq.s32.totalorder %s73, 0
      %p115 = por %p113, %p114
      %p116 = scmp.ne.s32.totalorder %s104, %s105
      %p117 = scmp.eq.s32.totalorder %s74, 1
      %p118 = por %p116, %p117
      %p120 = scmp.ne.s32.totalorder %s105, %s119
      %p121 = scmp.eq.s32.totalorder %s74, 0
      %p122 = por %p120, %p121
      %s124 = sadd.s32 %s123, 1
      %p127 = scmp.eq.s32.totalorder %s68, 1
      %p128 = scmp.ne.s32.totalorder %s123, %s125
      %p129 = scmp.eq.s32.totalorder %s68, 0
      %p130 = por %p128, %p129
      %p131 = scmp.ne.s32.totalorder %s123, %s125
      %p132 = scmp.eq.s32.totalorder %s73, 1
      %p133 = por %p131, %p132
      %p134 = scmp.ne.s32.totalorder %s125, %s126
      %p135 = scmp.eq.s32.totalorder %s73, 0
      %p136 = por %p134, %p135
      %p137 = scmp.ne.s32.totalorder %s125, %s126
      %p138 = scmp.eq.s32.totalorder %s74, 1
      %p139 = por %p137, %p138
      %p141 = scmp.ne.s32.totalorder %s126, %s140
      %p142 = scmp.eq.s32.totalorder %s74, 0
      %p143 = por %p141, %p142
      %s145 = sadd.s32 %s144, 1
      %p148 = scmp.eq.s32.totalorder %s68, 1
      %p149 = scmp.ne.s32.totalorder %s144, %s146
      %p150 = scmp.eq.s32.totalorder %s68, 0
      %p151 = por %p149, %p150
      %p152 = scmp.ne.s32.totalorder %s144, %s146
      %p153 = scmp.eq.s32.totalorder %s73, 1
      %p154 = por %p152, %p153
      %p155 = scmp.ne.s32.totalorder %s146, %s147
      %p156 = scmp.eq.s32.totalorder %s73, 0
      %p157 = por %p155, %p156
      %p158 = scmp.ne.s32.totalorder %s146, %s147
      %p159 = scmp.eq.s32.totalorder %s74, 1
      %p160 = por %p158, %p159
      %p162 = scmp.ne.s32.totalorder %s147, %s161
      %p163 = scmp.eq.s32.totalorder %s74, 0
      %p164 = por %p162, %p163
      %s166 = sadd.s32 %s165, 1
      %p169 = scmp.eq.s32.totalorder %s68, 1
      %p170 = scmp.ne.s32.totalorder %s165, %s167
      %p171 = scmp.eq.s32.totalorder %s68, 0
      %p172 = por %p170, %p171
      %p173 = scmp.ne.s32.totalorder %s165, %s167
      %p174 = scmp.eq.s32.totalorder %s73, 1
      %p175 = por %p173, %p174
      %p176 = scmp.ne.s32.totalorder %s167, %s168
      %p177 = scmp.eq.s32.totalorder %s73, 0
      %p178 = por %p176, %p177
      %p179 = scmp.ne.s32.totalorder %s167, %s168
      %p180 = scmp.eq.s32.totalorder %s74, 1
      %p181 = por %p179, %p180
      %p183 = scmp.ne.s32.totalorder %s168, %s182
      %p184 = scmp.eq.s32.totalorder %s74, 0
      %p185 = por %p183, %p184
      %s187 = sadd.s32 %s186, 1
      %p190 = scmp.eq.s32.totalorder %s68, 1
      %p191 = scmp.ne.s32.totalorder %s186, %s188
      %p192 = scmp.eq.s32.totalorder %s68, 0
      %p193 = por %p191, %p192
      %p194 = scmp.ne.s32.totalorder %s186, %s188
      %p195 = scmp.eq.s32.totalorder %s73, 1
      %p196 = por %p194, %p195
      %p197 = scmp.ne.s32.totalorder %s188, %s189
      %p198 = scmp.eq.s32.totalorder %s73, 0
      %p199 = por %p197, %p198
      %p200 = scmp.ne.s32.totalorder %s188, %s189
      %p201 = scmp.eq.s32.totalorder %s74, 1
      %p202 = por %p200, %p201
      %p204 = scmp.ne.s32.totalorder %s189, %s203
      %p205 = scmp.eq.s32.totalorder %s74, 0
      %p206 = por %p204, %p205
      %s208 = sadd.s32 %s207, 1
      %p211 = scmp.eq.s32.totalorder %s68, 1
      %p212 = scmp.ne.s32.totalorder %s207, %s209
      %p213 = scmp.eq.s32.totalorder %s68, 0
      %p214 = por %p212, %p213
      %p215 = scmp.ne.s32.totalorder %s207, %s209
      %p216 = scmp.eq.s32.totalorder %s73, 1
      %p217 = por %p215, %p216
      %p218 = scmp.ne.s32.totalorder %s209, %s210
      %p219 = scmp.eq.s32.totalorder %s73, 0
      %p220 = por %p218, %p219
      %p221 = scmp.ne.s32.totalorder %s209, %s210
      %p222 = scmp.eq.s32.totalorder %s74, 1
      %p223 = por %p221, %p222
      %p225 = scmp.ne.s32.totalorder %s210, %s224
      %p226 = scmp.eq.s32.totalorder %s74, 0
      %p227 = por %p225, %p226
      %s229 = sadd.s32 %s228, 1
      %p232 = scmp.eq.s32.totalorder %s68, 1
      %p233 = scmp.ne.s32.totalorder %s228, %s230
      %p234 = scmp.eq.s32.totalorder %s68, 0
      %p235 = por %p233, %p234
      %p236 = scmp.ne.s32.totalorder %s228, %s230
      %p237 = scmp.eq.s32.totalorder %s73, 1
      %p238 = por %p236, %p237
      %p239 = scmp.ne.s32.totalorder %s230, %s231
      %p240 = scmp.eq.s32.totalorder %s73, 0
      %p241 = por %p239, %p240
      %p242 = scmp.ne.s32.totalorder %s230, %s231
      %p243 = scmp.eq.s32.totalorder %s74, 1
      %p244 = por %p242, %p243
      %p246 = scmp.ne.s32.totalorder %s231, %s245
      %p247 = scmp.eq.s32.totalorder %s74, 0
      %p248 = por %p246, %p247
      %s250 = sadd.s32 %s249, 1
      %p253 = scmp.eq.s32.totalorder %s68, 1
      %p254 = scmp.ne.s32.totalorder %s249, %s251
      %p255 = scmp.eq.s32.totalorder %s68, 0
      %p256 = por %p254, %p255
      %p257 = scmp.ne.s32.totalorder %s249, %s251
      %p258 = scmp.eq.s32.totalorder %s73, 1
      %p259 = por %p257, %p258
      %p260 = scmp.ne.s32.totalorder %s251, %s252
      %p261 = scmp.eq.s32.totalorder %s73, 0
      %p262 = por %p260, %p261
      %p263 = scmp.ne.s32.totalorder %s251, %s252
      %p264 = scmp.eq.s32.totalorder %s74, 1
      %p265 = por %p263, %p264
      %p267 = scmp.ne.s32.totalorder %s252, %s266
      %p268 = scmp.eq.s32.totalorder %s74, 0
      %p269 = por %p267, %p268
      %s271 = sadd.s32 %s270, 1
      %p274 = scmp.eq.s32.totalorder %s68, 1
      %p275 = scmp.ne.s32.totalorder %s270, %s272
      %p276 = scmp.eq.s32.totalorder %s68, 0
      %p277 = por %p275, %p276
      %p278 = scmp.ne.s32.totalorder %s270, %s272
      %p279 = scmp.eq.s32.totalorder %s73, 1
      %p280 = por %p278, %p279
      %p281 = scmp.ne.s32.totalorder %s272, %s273
      %p282 = scmp.eq.s32.totalorder %s73, 0
      %p283 = por %p281, %p282
      %p284 = scmp.ne.s32.totalorder %s272, %s273
      %p285 = scmp.eq.s32.totalorder %s74, 1
      %p286 = por %p284, %p285
      %p288 = scmp.ne.s32.totalorder %s273, %s287
      %p289 = scmp.eq.s32.totalorder %s74, 0
      %p290 = por %p288, %p289
      %s292 = sadd.s32 %s291, 1
      %p295 = scmp.eq.s32.totalorder %s68, 1
      %p296 = scmp.ne.s32.totalorder %s291, %s293
      %p297 = scmp.eq.s32.totalorder %s68, 0
      %p298 = por %p296, %p297
      %p299 = scmp.ne.s32.totalorder %s291, %s293
      %p300 = scmp.eq.s32.totalorder %s73, 1
      %p301 = por %p299, %p300
      %p302 = scmp.ne.s32.totalorder %s293, %s294
      %p303 = scmp.eq.s32.totalorder %s73, 0
      %p304 = por %p302, %p303
      %p305 = scmp.ne.s32.totalorder %s293, %s294
      %p306 = scmp.eq.s32.totalorder %s74, 1
      %p307 = por %p305, %p306
      %p309 = scmp.ne.s32.totalorder %s294, %s308
      %p310 = scmp.eq.s32.totalorder %s74, 0
      %p311 = por %p309, %p310
      %s313 = sadd.s32 %s312, 1
      %p316 = scmp.eq.s32.totalorder %s68, 1
      %p317 = scmp.ne.s32.totalorder %s312, %s314
      %p318 = scmp.eq.s32.totalorder %s68, 0
      %p319 = por %p317, %p318
      %p320 = scmp.ne.s32.totalorder %s312, %s314
      %p321 = scmp.eq.s32.totalorder %s73, 1
      %p322 = por %p320, %p321
      %p323 = scmp.ne.s32.totalorder %s314, %s315
      %p324 = scmp.eq.s32.totalorder %s73, 0
      %p325 = por %p323, %p324
      %p326 = scmp.ne.s32.totalorder %s314, %s315
      %p327 = scmp.eq.s32.totalorder %s74, 1
      %p328 = por %p326, %p327
      %p330 = scmp.ne.s32.totalorder %s315, %s329
      %p331 = scmp.eq.s32.totalorder %s74, 0
      %p332 = por %p330, %p331
      %s334 = sadd.s32 %s333, 1
      %p337 = scmp.eq.s32.totalorder %s68, 1
      %p338 = scmp.ne.s32.totalorder %s333, %s335
      %p339 = scmp.eq.s32.totalorder %s68, 0
      %p340 = por %p338, %p339
      %p341 = scmp.ne.s32.totalorder %s333, %s335
      %p342 = scmp.eq.s32.totalorder %s73, 1
      %p343 = por %p341, %p342
      %p344 = scmp.ne.s32.totalorder %s335, %s336
      %p345 = scmp.eq.s32.totalorder %s73, 0
      %p346 = por %p344, %p345
      %p347 = scmp.ne.s32.totalorder %s335, %s336
      %p348 = scmp.eq.s32.totalorder %s74, 1
      %p349 = por %p347, %p348
      %p351 = scmp.ne.s32.totalorder %s336, %s350
      %p352 = scmp.eq.s32.totalorder %s74, 0
      %p353 = por %p351, %p352
      %s355 = sadd.s32 %s354, 1
      %p358 = scmp.eq.s32.totalorder %s68, 1
      %p359 = scmp.ne.s32.totalorder %s354, %s356
      %p360 = scmp.eq.s32.totalorder %s68, 0
      %p361 = por %p359, %p360
      %p362 = scmp.ne.s32.totalorder %s354, %s356
      %p363 = scmp.eq.s32.totalorder %s73, 1
      %p364 = por %p362, %p363
      %p365 = scmp.ne.s32.totalorder %s356, %s357
      %p366 = scmp.eq.s32.totalorder %s73, 0
      %p367 = por %p365, %p366
      %p368 = scmp.ne.s32.totalorder %s356, %s357
      %p369 = scmp.eq.s32.totalorder %s74, 1
      %p370 = por %p368, %p369
      %p372 = scmp.ne.s32.totalorder %s357, %s371
      %p373 = scmp.eq.s32.totalorder %s74, 0
      %p374 = por %p372, %p373
      %s376 = sadd.s32 %s375, 1
      %p379 = scmp.eq.s32.totalorder %s68, 1
      %p380 = scmp.ne.s32.totalorder %s375, %s377
      %p381 = scmp.eq.s32.totalorder %s68, 0
      %p382 = por %p380, %p381
      %p383 = scmp.ne.s32.totalorder %s375, %s377
      %p384 = scmp.eq.s32.totalorder %s73, 1
      %p385 = por %p383, %p384
      %p386 = scmp.ne.s32.totalorder %s377, %s378
      %p387 = scmp.eq.s32.totalorder %s73, 0
      %p388 = por %p386, %p387
      %p389 = scmp.ne.s32.totalorder %s377, %s378
      %p390 = scmp.eq.s32.totalorder %s74, 1
      %p391 = por %p389, %p390
      %p393 = scmp.ne.s32.totalorder %s378, %s392
      %p394 = scmp.eq.s32.totalorder %s74, 0
      %p395 = por %p393, %p394
      %s397 = sadd.s32 %s396, 1
      %p400 = scmp.eq.s32.totalorder %s68, 1
      %p401 = scmp.ne.s32.totalorder %s396, %s398
      %p402 = scmp.eq.s32.totalorder %s68, 0
      %p403 = por %p401, %p402
      %p404 = scmp.ne.s32.totalorder %s396, %s398
      %p405 = scmp.eq.s32.totalorder %s73, 1
      %p406 = por %p404, %p405
      %p407 = scmp.ne.s32.totalorder %s398, %s399
      %p408 = scmp.eq.s32.totalorder %s73, 0
      %p409 = por %p407, %p408
      %p410 = scmp.ne.s32.totalorder %s398, %s399
      %p411 = scmp.eq.s32.totalorder %s74, 1
      %p412 = por %p410, %p411
      %p414 = scmp.ne.s32.totalorder %s399, %s413
      %p415 = scmp.eq.s32.totalorder %s74, 0
      %p416 = por %p414, %p415
      %s418 = sadd.s32 %s417, 1
      %p421 = scmp.eq.s32.totalorder %s68, 1
      %p422 = scmp.ne.s32.totalorder %s417, %s419
      %p423 = scmp.eq.s32.totalorder %s68, 0
      %p424 = por %p422, %p423
      %p425 = scmp.ne.s32.totalorder %s417, %s419
      %p426 = scmp.eq.s32.totalorder %s73, 1
      %p427 = por %p425, %p426
      %p428 = scmp.ne.s32.totalorder %s419, %s420
      %p429 = scmp.eq.s32.totalorder %s73, 0
      %p430 = por %p428, %p429
      %p431 = scmp.ne.s32.totalorder %s419, %s420
      %p432 = scmp.eq.s32.totalorder %s74, 1
      %p433 = por %p431, %p432
      %p435 = scmp.ne.s32.totalorder %s420, %s434
      %p436 = scmp.eq.s32.totalorder %s74, 0
      %p437 = por %p435, %p436
      %s439 = sadd.s32 %s438, 1
      %p442 = scmp.eq.s32.totalorder %s68, 1
      %p443 = scmp.ne.s32.totalorder %s438, %s440
      %p444 = scmp.eq.s32.totalorder %s68, 0
      %p445 = por %p443, %p444
      %p446 = scmp.ne.s32.totalorder %s438, %s440
      %p447 = scmp.eq.s32.totalorder %s73, 1
      %p448 = por %p446, %p447
      %p449 = scmp.ne.s32.totalorder %s440, %s441
      %p450 = scmp.eq.s32.totalorder %s73, 0
      %p451 = por %p449, %p450
      %p452 = scmp.ne.s32.totalorder %s440, %s441
      %p453 = scmp.eq.s32.totalorder %s74, 1
      %p454 = por %p452, %p453
      %p456 = scmp.ne.s32.totalorder %s441, %s455
      %p457 = scmp.eq.s32.totalorder %s74, 0
      %p458 = por %p456, %p457
      %s460 = sadd.s32 %s459, 1
      %p463 = scmp.eq.s32.totalorder %s68, 1
      %p464 = scmp.ne.s32.totalorder %s459, %s461
      %p465 = scmp.eq.s32.totalorder %s68, 0
      %p466 = por %p464, %p465
      %p467 = scmp.ne.s32.totalorder %s459, %s461
      %p468 = scmp.eq.s32.totalorder %s73, 1
      %p469 = por %p467, %p468
      %p470 = scmp.ne.s32.totalorder %s461, %s462
      %p471 = scmp.eq.s32.totalorder %s73, 0
      %p472 = por %p470, %p471
      %p473 = scmp.ne.s32.totalorder %s461, %s462
      %p474 = scmp.eq.s32.totalorder %s74, 1
      %p475 = por %p473, %p474
      %p477 = scmp.ne.s32.totalorder %s462, %s476
      %p478 = scmp.eq.s32.totalorder %s74, 0
      %p479 = por %p477, %p478
      %s481 = sadd.s32 %s480, 1
      %p484 = scmp.eq.s32.totalorder %s68, 1
      %p485 = scmp.ne.s32.totalorder %s480, %s482
      %p486 = scmp.eq.s32.totalorder %s68, 0
      %p487 = por %p485, %p486
      %p488 = scmp.ne.s32.totalorder %s480, %s482
      %p489 = scmp.eq.s32.totalorder %s73, 1
      %p490 = por %p488, %p489
      %p491 = scmp.ne.s32.totalorder %s482, %s483
      %p492 = scmp.eq.s32.totalorder %s73, 0
      %p493 = por %p491, %p492
      %p494 = scmp.ne.s32.totalorder %s482, %s483
      %p495 = scmp.eq.s32.totalorder %s74, 1
      %p496 = por %p494, %p495
      %p498 = scmp.ne.s32.totalorder %s483, %s497
      %p499 = scmp.eq.s32.totalorder %s74, 0
      %p500 = por %p498, %p499
      %s502 = sadd.s32 %s501, 1
      %p505 = scmp.eq.s32.totalorder %s68, 1
      %p506 = scmp.ne.s32.totalorder %s501, %s503
      %p507 = scmp.eq.s32.totalorder %s68, 0
      %p508 = por %p506, %p507
      %p509 = scmp.ne.s32.totalorder %s501, %s503
      %p510 = scmp.eq.s32.totalorder %s73, 1
      %p511 = por %p509, %p510
      %p512 = scmp.ne.s32.totalorder %s503, %s504
      %p513 = scmp.eq.s32.totalorder %s73, 0
      %p514 = por %p512, %p513
      %p515 = scmp.ne.s32.totalorder %s503, %s504
      %p516 = scmp.eq.s32.totalorder %s74, 1
      %p517 = por %p515, %p516
      %p519 = scmp.ne.s32.totalorder %s504, %s518
      %p520 = scmp.eq.s32.totalorder %s74, 0
      %p521 = por %p519, %p520
      %s523 = sadd.s32 %s522, 1
      %p526 = scmp.eq.s32.totalorder %s68, 1
      %p527 = scmp.ne.s32.totalorder %s522, %s524
      %p528 = scmp.eq.s32.totalorder %s68, 0
      %p529 = por %p527, %p528
      %p530 = scmp.ne.s32.totalorder %s522, %s524
      %p531 = scmp.eq.s32.totalorder %s73, 1
      %p532 = por %p530, %p531
      %p533 = scmp.ne.s32.totalorder %s524, %s525
      %p534 = scmp.eq.s32.totalorder %s73, 0
      %p535 = por %p533, %p534
      %p536 = scmp.ne.s32.totalorder %s524, %s525
      %p537 = scmp.eq.s32.totalorder %s74, 1
      %p538 = por %p536, %p537
      %p540 = scmp.ne.s32.totalorder %s525, %s539
      %p541 = scmp.eq.s32.totalorder %s74, 0
      %p542 = por %p540, %p541
      %s544 = sadd.s32 %s543, 1
      %p547 = scmp.eq.s32.totalorder %s68, 1
      %p548 = scmp.ne.s32.totalorder %s543, %s545
      %p549 = scmp.eq.s32.totalorder %s68, 0
      %p550 = por %p548, %p549
      %p551 = scmp.ne.s32.totalorder %s543, %s545
      %p552 = scmp.eq.s32.totalorder %s73, 1
      %p553 = por %p551, %p552
      %p554 = scmp.ne.s32.totalorder %s545, %s546
      %p555 = scmp.eq.s32.totalorder %s73, 0
      %p556 = por %p554, %p555
      %p557 = scmp.ne.s32.totalorder %s545, %s546
      %p558 = scmp.eq.s32.totalorder %s74, 1
      %p559 = por %p557, %p558
      %p561 = scmp.ne.s32.totalorder %s546, %s560
      %p562 = scmp.eq.s32.totalorder %s74, 0
      %p563 = por %p561, %p562
      %s565 = sadd.s32 %s564, 1
      %p568 = scmp.eq.s32.totalorder %s68, 1
      %p569 = scmp.ne.s32.totalorder %s564, %s566
      %p570 = scmp.eq.s32.totalorder %s68, 0
      %p571 = por %p569, %p570
      %p572 = scmp.ne.s32.totalorder %s564, %s566
      %p573 = scmp.eq.s32.totalorder %s73, 1
      %p574 = por %p572, %p573
      %p575 = scmp.ne.s32.totalorder %s566, %s567
      %p576 = scmp.eq.s32.totalorder %s73, 0
      %p577 = por %p575, %p576
      %p578 = scmp.ne.s32.totalorder %s566, %s567
      %p579 = scmp.eq.s32.totalorder %s74, 1
      %p580 = por %p578, %p579
      %p582 = scmp.ne.s32.totalorder %s567, %s581
      %p583 = scmp.eq.s32.totalorder %s74, 0
      %p584 = por %p582, %p583
      %s586 = sadd.s32 %s585, 1
      %p589 = scmp.eq.s32.totalorder %s68, 1
      %p590 = scmp.ne.s32.totalorder %s585, %s587
      %p591 = scmp.eq.s32.totalorder %s68, 0
      %p592 = por %p590, %p591
      %p593 = scmp.ne.s32.totalorder %s585, %s587
      %p594 = scmp.eq.s32.totalorder %s73, 1
      %p595 = por %p593, %p594
      %p596 = scmp.ne.s32.totalorder %s587, %s588
      %p597 = scmp.eq.s32.totalorder %s73, 0
      %p598 = por %p596, %p597
      %p599 = scmp.ne.s32.totalorder %s587, %s588
      %p600 = scmp.eq.s32.totalorder %s74, 1
      %p601 = por %p599, %p600
      %p603 = scmp.ne.s32.totalorder %s588, %s602
      %p604 = scmp.eq.s32.totalorder %s74, 0
      %p605 = por %p603, %p604
      %s607 = sadd.s32 %s606, 1
      %p610 = scmp.eq.s32.totalorder %s68, 1
      %p611 = scmp.ne.s32.totalorder %s606, %s608
      %p612 = scmp.eq.s32.totalorder %s68, 0
      %p613 = por %p611, %p612
      %p614 = scmp.ne.s32.totalorder %s606, %s608
      %p615 = scmp.eq.s32.totalorder %s73, 1
      %p616 = por %p614, %p615
      %p617 = scmp.ne.s32.totalorder %s608, %s609
      %p618 = scmp.eq.s32.totalorder %s73, 0
      %p619 = por %p617, %p618
      %p620 = scmp.ne.s32.totalorder %s608, %s609
      %p621 = scmp.eq.s32.totalorder %s74, 1
      %p622 = por %p620, %p621
      %p624 = scmp.ne.s32.totalorder %s609, %s623
      %p625 = scmp.eq.s32.totalorder %s74, 0
      %p626 = por %p624, %p625
      %s628 = sadd.s32 %s627, 1
      %p631 = scmp.eq.s32.totalorder %s68, 1
      %p632 = scmp.ne.s32.totalorder %s627, %s629
      %p633 = scmp.eq.s32.totalorder %s68, 0
      %p634 = por %p632, %p633
      %p635 = scmp.ne.s32.totalorder %s627, %s629
      %p636 = scmp.eq.s32.totalorder %s73, 1
      %p637 = por %p635, %p636
      %p638 = scmp.ne.s32.totalorder %s629, %s630
      %p639 = scmp.eq.s32.totalorder %s73, 0
      %p640 = por %p638, %p639
      %p641 = scmp.ne.s32.totalorder %s629, %s630
      %p642 = scmp.eq.s32.totalorder %s74, 1
      %p643 = por %p641, %p642
      %p645 = scmp.ne.s32.totalorder %s630, %s644
      %p646 = scmp.eq.s32.totalorder %s74, 0
      %p647 = por %p645, %p646
      %s649 = sadd.s32 %s648, 1
      %p652 = scmp.eq.s32.totalorder %s68, 1
      %p653 = scmp.ne.s32.totalorder %s648, %s650
      %p654 = scmp.eq.s32.totalorder %s68, 0
      %p655 = por %p653, %p654
      %p656 = scmp.ne.s32.totalorder %s648, %s650
      %p657 = scmp.eq.s32.totalorder %s73, 1
      %p658 = por %p656, %p657
      %p659 = scmp.ne.s32.totalorder %s650, %s651
      %p660 = scmp.eq.s32.totalorder %s73, 0
      %p661 = por %p659, %p660
      %p662 = scmp.ne.s32.totalorder %s650, %s651
      %p663 = scmp.eq.s32.totalorder %s74, 1
      %p664 = por %p662, %p663
      %p666 = scmp.ne.s32.totalorder %s651, %s665
      %p667 = scmp.eq.s32.totalorder %s74, 0
      %p668 = por %p666, %p667
      %s670 = sadd.s32 %s669, 1
      %p673 = scmp.eq.s32.totalorder %s68, 1
      %p674 = scmp.ne.s32.totalorder %s669, %s671
      %p675 = scmp.eq.s32.totalorder %s68, 0
      %p676 = por %p674, %p675
      %p677 = scmp.ne.s32.totalorder %s669, %s671
      %p678 = scmp.eq.s32.totalorder %s73, 1
      %p679 = por %p677, %p678
      %p680 = scmp.ne.s32.totalorder %s671, %s672
      %p681 = scmp.eq.s32.totalorder %s73, 0
      %p682 = por %p680, %p681
      %p683 = scmp.ne.s32.totalorder %s671, %s672
      %p684 = scmp.eq.s32.totalorder %s74, 1
      %p685 = por %p683, %p684
      %p687 = scmp.ne.s32.totalorder %s672, %s686
      %p688 = scmp.eq.s32.totalorder %s74, 0
      %p689 = por %p687, %p688
      %s690 = ssub.s32 %s68, %s75
      %p691 = scmp.eq.s32.totalorder %s690, 0
      %s693 = sadd.s32 %s692, 1
      %s694 = scalar_select %p691, %s692, %s693
      %p697 = pneg %p691
      %p698 = scmp.eq.s32.totalorder %s68, 1
      %p699 = por %p697, %p698
      %p700 = scmp.ne.s32.totalorder %s692, %s695
      %p701 = scmp.eq.s32.totalorder %s68, 0
      %p702 = por %p700, %p701
      %p703 = scmp.ne.s32.totalorder %s692, %s695
      %p704 = scmp.eq.s32.totalorder %s73, 1
      %p705 = por %p703, %p704
      %p706 = scmp.ne.s32.totalorder %s695, %s696
      %p707 = scmp.eq.s32.totalorder %s73, 0
      %p708 = por %p706, %p707
      %p709 = scmp.ne.s32.totalorder %s695, %s696
      %p710 = scmp.eq.s32.totalorder %s74, 1
      %p711 = por %p709, %p710
      %p713 = scmp.ne.s32.totalorder %s696, %s712
      %p714 = scmp.eq.s32.totalorder %s74, 0
      %p715 = por %p713, %p714
      %p716 = scmp.le.s32.totalorder 1, %s68
      %p717 = scmp.lt.s32.totalorder %s68, 3
      %p718 = pnand %p716, %p717
      %p719 = pneg %p718
      // Predicated region
      $region9: #{transformer_embedding_generator.1} parent=5 // pred_check
        _
      $region10: #{transformer_embedding_generator.1} parent=5 // pred_check_branch
        %721 = sbr.rel (%p718) target = $region12
      $region11: #{transformer_embedding_generator.1} parent=5 // pred_region
        %s722 = ssub.s32 %s68, 1
        // Predicated region
        $region13: #{transformer_embedding_generator.1} parent=11 // pred_check
          %p723 = pneg %p115
        $region14: #{transformer_embedding_generator.1} parent=11 // pred_check_branch
          %725 = sbr.rel (%p723) target = $region16
        $region15: #{transformer_embedding_generator.1} parent=11 // pred_region
          _
        $region16: #{transformer_embedding_generator.1} parent=11 // pred_fallthru
          _
        // Predicated region
        $region17: #{transformer_embedding_generator.1} parent=11 // pred_check
          %p726 = pneg %p136
        $region18: #{transformer_embedding_generator.1} parent=11 // pred_check_branch
          %728 = sbr.rel (%p726) target = $region20
        $region19: #{transformer_embedding_generator.1} parent=11 // pred_region
          _
        $region20: #{transformer_embedding_generator.1} parent=11 // pred_fallthru
          _
        // Predicated region
        $region21: #{transformer_embedding_generator.1} parent=11 // pred_check
          %p729 = pneg %p157
        $region22: #{transformer_embedding_generator.1} parent=11 // pred_check_branch
          %731 = sbr.rel (%p729) target = $region24
        $region23: #{transformer_embedding_generator.1} parent=11 // pred_region
          _
        $region24: #{transformer_embedding_generator.1} parent=11 // pred_fallthru
          _
        // Predicated region
        $region25: #{transformer_embedding_generator.1} parent=11 // pred_check
          %p732 = pneg %p178
        $region26: #{transformer_embedding_generator.1} parent=11 // pred_check_branch
          %734 = sbr.rel (%p732) target = $region28
        $region27: #{transformer_embedding_generator.1} parent=11 // pred_region
          _
        $region28: #{transformer_embedding_generator.1} parent=11 // pred_fallthru
          _
        // Predicated region
        $region29: #{transformer_embedding_generator.1} parent=11 // pred_check
          %p735 = pneg %p199
        $region30: #{transformer_embedding_generator.1} parent=11 // pred_check_branch
          %737 = sbr.rel (%p735) target = $region32
        $region31: #{transformer_embedding_generator.1} parent=11 // pred_region
          _
        $region32: #{transformer_embedding_generator.1} parent=11 // pred_fallthru
          _
        // Predicated region
        $region33: #{transformer_embedding_generator.1} parent=11 // pred_check
          %p738 = pneg %p220
        $region34: #{transformer_embedding_generator.1} parent=11 // pred_check_branch
          %740 = sbr.rel (%p738) target = $region36
        $region35: #{transformer_embedding_generator.1} parent=11 // pred_region
          _
        $region36: #{transformer_embedding_generator.1} parent=11 // pred_fallthru
          _
        // Predicated region
        $region37: #{transformer_embedding_generator.1} parent=11 // pred_check
          %p741 = pneg %p241
        $region38: #{transformer_embedding_generator.1} parent=11 // pred_check_branch
          %743 = sbr.rel (%p741) target = $region40
        $region39: #{transformer_embedding_generator.1} parent=11 // pred_region
          _
        $region40: #{transformer_embedding_generator.1} parent=11 // pred_fallthru
          _
        // Predicated region
        $region41: #{transformer_embedding_generator.1} parent=11 // pred_check
          %p744 = pneg %p262
        $region42: #{transformer_embedding_generator.1} parent=11 // pred_check_branch
          %746 = sbr.rel (%p744) target = $region44
        $region43: #{transformer_embedding_generator.1} parent=11 // pred_region
          _
        $region44: #{transformer_embedding_generator.1} parent=11 // pred_fallthru
          _
        // Predicated region
        $region45: #{transformer_embedding_generator.1} parent=11 // pred_check
          %p747 = pneg %p283
        $region46: #{transformer_embedding_generator.1} parent=11 // pred_check_branch
          %749 = sbr.rel (%p747) target = $region48
        $region47: #{transformer_embedding_generator.1} parent=11 // pred_region
          _
        $region48: #{transformer_embedding_generator.1} parent=11 // pred_fallthru
          _
        // Predicated region
        $region49: #{transformer_embedding_generator.1} parent=11 // pred_check
          %p750 = pneg %p304
        $region50: #{transformer_embedding_generator.1} parent=11 // pred_check_branch
          %752 = sbr.rel (%p750) target = $region52
        $region51: #{transformer_embedding_generator.1} parent=11 // pred_region
          _
        $region52: #{transformer_embedding_generator.1} parent=11 // pred_fallthru
          _
        // Predicated region
        $region53: #{transformer_embedding_generator.1} parent=11 // pred_check
          %p753 = pneg %p325
        $region54: #{transformer_embedding_generator.1} parent=11 // pred_check_branch
          %755 = sbr.rel (%p753) target = $region56
        $region55: #{transformer_embedding_generator.1} parent=11 // pred_region
          _
        $region56: #{transformer_embedding_generator.1} parent=11 // pred_fallthru
          _
        // Predicated region
        $region57: #{transformer_embedding_generator.1} parent=11 // pred_check
          %p756 = pneg %p346
        $region58: #{transformer_embedding_generator.1} parent=11 // pred_check_branch
          %758 = sbr.rel (%p756) target = $region60
        $region59: #{transformer_embedding_generator.1} parent=11 // pred_region
          _
        $region60: #{transformer_embedding_generator.1} parent=11 // pred_fallthru
          _
        // Predicated region
        $region61: #{transformer_embedding_generator.1} parent=11 // pred_check
          %p759 = pneg %p367
        $region62: #{transformer_embedding_generator.1} parent=11 // pred_check_branch
          %761 = sbr.rel (%p759) target = $region64
        $region63: #{transformer_embedding_generator.1} parent=11 // pred_region
          _
        $region64: #{transformer_embedding_generator.1} parent=11 // pred_fallthru
          _
        // Predicated region
        $region65: #{transformer_embedding_generator.1} parent=11 // pred_check
          %p762 = pneg %p388
        $region66: #{transformer_embedding_generator.1} parent=11 // pred_check_branch
          %764 = sbr.rel (%p762) target = $region68
        $region67: #{transformer_embedding_generator.1} parent=11 // pred_region
          _
        $region68: #{transformer_embedding_generator.1} parent=11 // pred_fallthru
          _
        // Predicated region
        $region69: #{transformer_embedding_generator.1} parent=11 // pred_check
          %p765 = pneg %p409
        $region70: #{transformer_embedding_generator.1} parent=11 // pred_check_branch
          %767 = sbr.rel (%p765) target = $region72
        $region71: #{transformer_embedding_generator.1} parent=11 // pred_region
          _
        $region72: #{transformer_embedding_generator.1} parent=11 // pred_fallthru
          _
        // Predicated region
        $region73: #{transformer_embedding_generator.1} parent=11 // pred_check
          %p768 = pneg %p430
        $region74: #{transformer_embedding_generator.1} parent=11 // pred_check_branch
          %770 = sbr.rel (%p768) target = $region76
        $region75: #{transformer_embedding_generator.1} parent=11 // pred_region
          _
        $region76: #{transformer_embedding_generator.1} parent=11 // pred_fallthru
          _
        // Predicated region
        $region77: #{transformer_embedding_generator.1} parent=11 // pred_check
          %p771 = pneg %p451
        $region78: #{transformer_embedding_generator.1} parent=11 // pred_check_branch
          %773 = sbr.rel (%p771) target = $region80
        $region79: #{transformer_embedding_generator.1} parent=11 // pred_region
          _
        $region80: #{transformer_embedding_generator.1} parent=11 // pred_fallthru
          _
        // Predicated region
        $region81: #{transformer_embedding_generator.1} parent=11 // pred_check
          %p774 = pneg %p472
        $region82: #{transformer_embedding_generator.1} parent=11 // pred_check_branch
          %776 = sbr.rel (%p774) target = $region84
        $region83: #{transformer_embedding_generator.1} parent=11 // pred_region
          _
        $region84: #{transformer_embedding_generator.1} parent=11 // pred_fallthru
          _
        // Predicated region
        $region85: #{transformer_embedding_generator.1} parent=11 // pred_check
          %p777 = pneg %p493
        $region86: #{transformer_embedding_generator.1} parent=11 // pred_check_branch
          %779 = sbr.rel (%p777) target = $region88
        $region87: #{transformer_embedding_generator.1} parent=11 // pred_region
          _
        $region88: #{transformer_embedding_generator.1} parent=11 // pred_fallthru
          _
        // Predicated region
        $region89: #{transformer_embedding_generator.1} parent=11 // pred_check
          %p780 = pneg %p514
        $region90: #{transformer_embedding_generator.1} parent=11 // pred_check_branch
          %782 = sbr.rel (%p780) target = $region92
        $region91: #{transformer_embedding_generator.1} parent=11 // pred_region
          _
        $region92: #{transformer_embedding_generator.1} parent=11 // pred_fallthru
          _
        // Predicated region
        $region93: #{transformer_embedding_generator.1} parent=11 // pred_check
          %p783 = pneg %p535
        $region94: #{transformer_embedding_generator.1} parent=11 // pred_check_branch
          %785 = sbr.rel (%p783) target = $region96
        $region95: #{transformer_embedding_generator.1} parent=11 // pred_region
          _
        $region96: #{transformer_embedding_generator.1} parent=11 // pred_fallthru
          _
        // Predicated region
        $region97: #{transformer_embedding_generator.1} parent=11 // pred_check
          %p786 = pneg %p556
        $region98: #{transformer_embedding_generator.1} parent=11 // pred_check_branch
          %788 = sbr.rel (%p786) target = $region100
        $region99: #{transformer_embedding_generator.1} parent=11 // pred_region
          _
        $region100: #{transformer_embedding_generator.1} parent=11 // pred_fallthru
          _
        // Predicated region
        $region101: #{transformer_embedding_generator.1} parent=11 // pred_check
          %p789 = pneg %p577
        $region102: #{transformer_embedding_generator.1} parent=11 // pred_check_branch
          %791 = sbr.rel (%p789) target = $region104
        $region103: #{transformer_embedding_generator.1} parent=11 // pred_region
          _
        $region104: #{transformer_embedding_generator.1} parent=11 // pred_fallthru
          _
        // Predicated region
        $region105: #{transformer_embedding_generator.1} parent=11 // pred_check
          %p792 = pneg %p598
        $region106: #{transformer_embedding_generator.1} parent=11 // pred_check_branch
          %794 = sbr.rel (%p792) target = $region108
        $region107: #{transformer_embedding_generator.1} parent=11 // pred_region
          _
        $region108: #{transformer_embedding_generator.1} parent=11 // pred_fallthru
          _
        // Predicated region
        $region109: #{transformer_embedding_generator.1} parent=11 // pred_check
          %p795 = pneg %p619
        $region110: #{transformer_embedding_generator.1} parent=11 // pred_check_branch
          %797 = sbr.rel (%p795) target = $region112
        $region111: #{transformer_embedding_generator.1} parent=11 // pred_region
          _
        $region112: #{transformer_embedding_generator.1} parent=11 // pred_fallthru
          _
        // Predicated region
        $region113: #{transformer_embedding_generator.1} parent=11 // pred_check
          %p798 = pneg %p640
        $region114: #{transformer_embedding_generator.1} parent=11 // pred_check_branch
          %800 = sbr.rel (%p798) target = $region116
        $region115: #{transformer_embedding_generator.1} parent=11 // pred_region
          _
        $region116: #{transformer_embedding_generator.1} parent=11 // pred_fallthru
          _
        // Predicated region
        $region117: #{transformer_embedding_generator.1} parent=11 // pred_check
          %p801 = pneg %p661
        $region118: #{transformer_embedding_generator.1} parent=11 // pred_check_branch
          %803 = sbr.rel (%p801) target = $region120
        $region119: #{transformer_embedding_generator.1} parent=11 // pred_region
          _
        $region120: #{transformer_embedding_generator.1} parent=11 // pred_fallthru
          _
        // Predicated region
        $region121: #{transformer_embedding_generator.1} parent=11 // pred_check
          %p804 = pneg %p682
        $region122: #{transformer_embedding_generator.1} parent=11 // pred_check_branch
          %806 = sbr.rel (%p804) target = $region124
        $region123: #{transformer_embedding_generator.1} parent=11 // pred_region
          _
        $region124: #{transformer_embedding_generator.1} parent=11 // pred_fallthru
          _
      $region12: #{transformer_embedding_generator.1} parent=5 // pred_fallthru
        _
      %p807 = scmp.lt.s32.totalorder %s68, 2
      // Predicated region
      $region125: #{transformer_embedding_generator.1} parent=5 // pred_check
        %p808 = pneg %p807
      $region126: #{transformer_embedding_generator.1} parent=5 // pred_check_branch
        %810 = sbr.rel (%p808) target = $region128
      $region127: #{transformer_embedding_generator.1} parent=5 // pred_region
        // Predicated region
        $region129: #{transformer_embedding_generator.1} parent=127 // pred_check
          %p811 = pneg %p88
        $region130: #{transformer_embedding_generator.1} parent=127 // pred_check_branch
          %813 = sbr.rel (%p811) target = $region132
        $region131: #{transformer_embedding_generator.1} parent=127 // pred_region
          %p814 = scmp.lt.s32.totalorder %s68, 1
          %s815 = scalar_select %p814, %s68, 1
          %s816 = smul.addr %s815, 8
          %s817 = scalar_lea.vmem %s1, %s816
        $region132: #{transformer_embedding_generator.1} parent=127 // pred_fallthru
          _
      $region128: #{transformer_embedding_generator.1} parent=5 // pred_fallthru
        _
      %p818 = scmp.le.s32.totalorder 1, %s68
      %p819 = scmp.lt.s32.totalorder %s68, 3
      %p820 = pnand %p818, %p819
      %p821 = pneg %p820
      // Predicated region
      $region133: #{transformer_embedding_generator.1} parent=5 // pred_check
        _
      $region134: #{transformer_embedding_generator.1} parent=5 // pred_check_branch
        %823 = sbr.rel (%p820) target = $region136
      $region135: #{transformer_embedding_generator.1} parent=5 // pred_region
        %s824 = ssub.s32 %s68, 1
        %p825 = scmp.lt.s32.totalorder %s73, 1
        %s826 = scalar_select %p825, %s73, 1
        %s827 = smul.addr %s826, 8
        %s828 = scalar_lea.vmem %s1, %s827
        %p829 = pneg %p94
        %p830 = pneg %p91
        %p831 = pneg %p115
        %p832 = pneg %p112
        %p833 = pneg %p136
        %p834 = pneg %p133
        %p835 = pneg %p157
        %p836 = pneg %p154
        %p837 = pneg %p178
        %p838 = pneg %p175
        %p839 = pneg %p199
        %p840 = pneg %p196
        %p841 = pneg %p220
        %p842 = pneg %p217
        %p843 = pneg %p241
        %p844 = pneg %p238
        %p845 = pneg %p262
        %p846 = pneg %p259
        %p847 = pneg %p283
        %p848 = pneg %p280
        %p849 = pneg %p304
        %p850 = pneg %p301
        %p851 = pneg %p325
        %p852 = pneg %p322
        %p853 = pneg %p346
        %p854 = pneg %p343
        %p855 = pneg %p367
        %p856 = pneg %p364
        %p857 = pneg %p388
        %p858 = pneg %p385
        %p859 = pneg %p409
        %p860 = pneg %p406
        %p861 = pneg %p430
        %p862 = pneg %p427
        %p863 = pneg %p451
        %p864 = pneg %p448
        %p865 = pneg %p472
        %p866 = pneg %p469
        %p867 = pneg %p493
        %p868 = pneg %p490
        %p869 = pneg %p514
        %p870 = pneg %p511
        %p871 = pneg %p535
        %p872 = pneg %p532
        %p873 = pneg %p556
        %p874 = pneg %p553
        %p875 = pneg %p577
        %p876 = pneg %p574
        %p877 = pneg %p598
        %p878 = pneg %p595
        %p879 = pneg %p619
        %p880 = pneg %p616
        %p881 = pneg %p640
        %p882 = pneg %p637
        %p883 = pneg %p661
        %p884 = pneg %p658
        %p885 = pneg %p682
        %p886 = pneg %p679
        %p887 = pneg %p708
        %p888 = pneg %p705
        %s889 = sand.u32 %s695, 1
        %s890 = scalar_lea.sflag [#allocation3], %s889
        %s891 = sand.u32 %s695, 1
        %s892 = scalar_lea.vmem [#allocation2], %s891
        %p893 = scmp.lt.s32.totalorder %s73, 1
        %s894 = scalar_select %p893, %s73, 1
        %s895 = smul.addr %s894, 8
        %s896 = scalar_lea.vmem %s1, %s895
        %v897 = vld [vmem:[%s896] sm:$0xff]
        %v898 = vld [vmem:[%s3] sm:$0xff]
        %v899 = vld [vmem:[%s3 + $0x8] sm:$0xff]
        %v900 = vld [vmem:[%s5] sm:$0x1]
        %v902 = vlaneseq
        %v903 = vshrl.u32 %v902, 7
        %v904 = vsub.s32 0, %v903
        %v905 = vrot.slane %v900, %v904
        %vm907 = vcmask 130048
        %v909 = vsel %vm907, %v897, 0
        %911 = vmatprep.subr.mxu0 0.0
        %912 = vmatpush1.msra.mxu0 %v898
        %913 = vmatprep.subr.mxu0 0.0
        %914 = vmatpush1.msra.mxu0 %v899
        %915 = vmatprep.subr.mxu0 0.0
        %916 = vmatpush1.msra.mxu0 0.0
        %917 = vmatprep.subr.mxu0 0.0
        %918 = vmatpush1.msra.mxu0 0.0
        %919 = vmatprep.subr.mxu0 0.0
        %920 = vmatpush1.msra.mxu0 0.0
        %921 = vmatprep.subr.mxu0 0.0
        %922 = vmatpush1.msra.mxu0 0.0
        %923 = vmatprep.subr.mxu0 0.0
        %924 = vmatpush1.msra.mxu0 0.0
        %925 = vmatprep.subr.mxu0 0.0
        %926 = vmatpush1.msra.mxu0 0.0
        %927 = vmatprep.subr.mxu0 0.0
        %928 = vmatpush1.msra.mxu0 0.0
        %929 = vmatprep.subr.mxu0 0.0
        %930 = vmatpush1.msra.mxu0 0.0
        %931 = vmatprep.subr.mxu0 0.0
        %932 = vmatpush1.msra.mxu0 0.0
        %933 = vmatprep.subr.mxu0 0.0
        %934 = vmatpush1.msra.mxu0 0.0
        %935 = vmatprep.subr.mxu0 0.0
        %936 = vmatpush1.msra.mxu0 0.0
        %937 = vmatprep.subr.mxu0 0.0
        %938 = vmatpush1.msra.mxu0 0.0
        %939 = vmatprep.subr.mxu0 0.0
        %940 = vmatpush1.msra.mxu0 0.0
        %941 = vmatprep.subr.mxu0 0.0
        %942 = vmatpush1.msra.mxu0 0.0
        %943 = vmatprep.subr.mxu0 0.0
        %944 = vmatpush1.msra.mxu0 0.0
        %945 = vmatprep.subr.mxu0 0.0
        %946 = vmatpush1.msra.mxu0 0.0
        %947 = vmatprep.subr.mxu0 0.0
        %948 = vmatpush1.msra.mxu0 0.0
        %949 = vmatprep.subr.mxu0 0.0
        %950 = vmatpush1.msra.mxu0 0.0
        %951 = vmatprep.subr.mxu0 0.0
        %952 = vmatpush1.msra.mxu0 0.0
        %953 = vmatprep.subr.mxu0 0.0
        %954 = vmatpush1.msra.mxu0 0.0
        %955 = vmatprep.subr.mxu0 0.0
        %956 = vmatpush1.msra.mxu0 0.0
        %957 = vmatprep.subr.mxu0 0.0
        %958 = vmatpush1.msra.mxu0 0.0
        %959 = vmatprep.subr.mxu0 0.0
        %960 = vmatpush1.msra.mxu0 0.0
        %961 = vmatprep.subr.mxu0 0.0
        %962 = vmatpush1.msra.mxu0 0.0
        %963 = vmatprep.subr.mxu0 0.0
        %964 = vmatpush1.msra.mxu0 0.0
        %965 = vmatprep.subr.mxu0 0.0
        %966 = vmatpush1.msra.mxu0 0.0
        %967 = vmatprep.subr.mxu0 0.0
        %968 = vmatpush1.msra.mxu0 0.0
        %969 = vmatprep.subr.mxu0 0.0
        %970 = vmatpush1.msra.mxu0 0.0
        %971 = vmatprep.subr.mxu0 0.0
        %972 = vmatpush1.msra.mxu0 0.0
        %973 = vmatprep.subr.mxu0 0.0
        %974 = vmatpush1.msra.mxu0 0.0
        %975 = vmatprep.mubr.f32.mxu0 0.0
        %976 = vmatmul.mubr.f32.gmra.mrb[0].mxu0 %v909
        %v977 = vpop.f32.mrb[0].mxu0
        %v978 = vadd.f32 %v905, %v977
        %v979 = vpop.f32.mrb[0].mxu0
        %980 = vdwg.mxu0
        %v981 = vld [vmem:[%s7] sm:$0xff]
        %v982 = vld [vmem:[%s7 + $0x8] sm:$0xff]
        %v983 = vld [vmem:[%s7 + $0x10] sm:$0xff]
        %v984 = vld [vmem:[%s7 + $0x18] sm:$0xff]
        %v985 = vld [vmem:[%s9] sm:$0x1]
        %v987 = vlaneseq
        %v988 = vshrl.u32 %v987, 7
        %v989 = vsub.s32 0, %v988
        %v990 = vrot.slane %v985, %v989
        %vm992 = vcmask 261120
        %v994 = vsel %vm992, %v978, 0
        %996 = vmatprep.subr.mxu0 0.0
        %997 = vmatpush1.msra.mxu0 %v981
        %998 = vmatprep.subr.mxu0 0.0
        %999 = vmatpush1.msra.mxu0 %v982
        %1000 = vmatprep.subr.mxu0 0.0
        %1001 = vmatpush1.msra.mxu0 %v983
        %1002 = vmatprep.subr.mxu0 0.0
        %1003 = vmatpush1.msra.mxu0 %v984
        %1004 = vmatprep.subr.mxu0 0.0
        %1005 = vmatpush1.msra.mxu0 0.0
        %1006 = vmatprep.subr.mxu0 0.0
        %1007 = vmatpush1.msra.mxu0 0.0
        %1008 = vmatprep.subr.mxu0 0.0
        %1009 = vmatpush1.msra.mxu0 0.0
        %1010 = vmatprep.subr.mxu0 0.0
        %1011 = vmatpush1.msra.mxu0 0.0
        %1012 = vmatprep.subr.mxu0 0.0
        %1013 = vmatpush1.msra.mxu0 0.0
        %1014 = vmatprep.subr.mxu0 0.0
        %1015 = vmatpush1.msra.mxu0 0.0
        %1016 = vmatprep.subr.mxu0 0.0
        %1017 = vmatpush1.msra.mxu0 0.0
        %1018 = vmatprep.subr.mxu0 0.0
        %1019 = vmatpush1.msra.mxu0 0.0
        %1020 = vmatprep.subr.mxu0 0.0
        %1021 = vmatpush1.msra.mxu0 0.0
        %1022 = vmatprep.subr.mxu0 0.0
        %1023 = vmatpush1.msra.mxu0 0.0
        %1024 = vmatprep.subr.mxu0 0.0
        %1025 = vmatpush1.msra.mxu0 0.0
        %1026 = vmatprep.subr.mxu0 0.0
        %1027 = vmatpush1.msra.mxu0 0.0
        %1028 = vmatprep.subr.mxu0 0.0
        %1029 = vmatpush1.msra.mxu0 0.0
        %1030 = vmatprep.subr.mxu0 0.0
        %1031 = vmatpush1.msra.mxu0 0.0
        %1032 = vmatprep.subr.mxu0 0.0
        %1033 = vmatpush1.msra.mxu0 0.0
        %1034 = vmatprep.subr.mxu0 0.0
        %1035 = vmatpush1.msra.mxu0 0.0
        %1036 = vmatprep.subr.mxu0 0.0
        %1037 = vmatpush1.msra.mxu0 0.0
        %1038 = vmatprep.subr.mxu0 0.0
        %1039 = vmatpush1.msra.mxu0 0.0
        %1040 = vmatprep.subr.mxu0 0.0
        %1041 = vmatpush1.msra.mxu0 0.0
        %1042 = vmatprep.subr.mxu0 0.0
        %1043 = vmatpush1.msra.mxu0 0.0
        %1044 = vmatprep.subr.mxu0 0.0
        %1045 = vmatpush1.msra.mxu0 0.0
        %1046 = vmatprep.subr.mxu0 0.0
        %1047 = vmatpush1.msra.mxu0 0.0
        %1048 = vmatprep.subr.mxu0 0.0
        %1049 = vmatpush1.msra.mxu0 0.0
        %1050 = vmatprep.subr.mxu0 0.0
        %1051 = vmatpush1.msra.mxu0 0.0
        %1052 = vmatprep.subr.mxu0 0.0
        %1053 = vmatpush1.msra.mxu0 0.0
        %1054 = vmatprep.subr.mxu0 0.0
        %1055 = vmatpush1.msra.mxu0 0.0
        %1056 = vmatprep.subr.mxu0 0.0
        %1057 = vmatpush1.msra.mxu0 0.0
        %1058 = vmatprep.subr.mxu0 0.0
        %1059 = vmatpush1.msra.mxu0 0.0
        %1060 = vmatprep.mubr.f32.mxu0 0.0
        %1061 = vmatmul.mubr.f32.gmra.mrb[0].mxu0 %v994
        %v1062 = vpop.f32.mrb[0].mxu0
        %v1063 = vadd.f32 %v990, %v1062
        %v1064 = vpop.f32.mrb[0].mxu0
        %1065 = vdwg.mxu0
        %v1066 = vld [vmem:[%s11] sm:$0xff]
        %v1067 = vld [vmem:[%s11 + $0x8] sm:$0xff]
        %v1068 = vld [vmem:[%s11 + $0x10] sm:$0xff]
        %v1069 = vld [vmem:[%s11 + $0x18] sm:$0xff]
        %1071 = vrot.lane.b32.xlu0 %v1063, 96
        %v1072 = vpop.permute.xlu0 %1071
        %vm1073 = vcmask 64512
        %v1074 = vsel %vm1073, %v1063, 0
        %v1076 = vsel %vm1073, %v1072, 0
        %1078 = vmatprep.subr.mxu0 0.0
        %1079 = vmatpush1.xpose.msra.mxu0 %v1076
        %1080 = vmatprep.subr.mxu0 0.0
        %1081 = vmatpush1.xpose.msra.mxu0 0.0
        %1082 = vmatprep.subr.mxu0 0.0
        %1083 = vmatpush1.xpose.msra.mxu0 0.0
        %1084 = vmatprep.subr.mxu0 0.0
        %1085 = vmatpush1.xpose.msra.mxu0 0.0
        %1086 = vmatprep.subr.mxu0 0.0
        %1087 = vmatpush1.xpose.msra.mxu0 0.0
        %1088 = vmatprep.subr.mxu0 0.0
        %1089 = vmatpush1.xpose.msra.mxu0 0.0
        %1090 = vmatprep.subr.mxu0 0.0
        %1091 = vmatpush1.xpose.msra.mxu0 0.0
        %1092 = vmatprep.subr.mxu0 0.0
        %1093 = vmatpush1.xpose.msra.mxu0 0.0
        %1094 = vmatprep.subr.mxu0 0.0
        %1095 = vmatpush1.xpose.msra.mxu0 0.0
        %1096 = vmatprep.subr.mxu0 0.0
        %1097 = vmatpush1.xpose.msra.mxu0 0.0
        %1098 = vmatprep.subr.mxu0 0.0
        %1099 = vmatpush1.xpose.msra.mxu0 0.0
        %1100 = vmatprep.subr.mxu0 0.0
        %1101 = vmatpush1.xpose.msra.mxu0 0.0
        %1102 = vmatprep.subr.mxu0 0.0
        %1103 = vmatpush1.xpose.msra.mxu0 0.0
        %1104 = vmatprep.subr.mxu0 0.0
        %1105 = vmatpush1.xpose.msra.mxu0 0.0
        %1106 = vmatprep.subr.mxu0 0.0
        %1107 = vmatpush1.xpose.msra.mxu0 0.0
        %1108 = vmatprep.subr.mxu0 0.0
        %1109 = vmatpush1.xpose.msra.mxu0 0.0
        %1110 = vmatprep.subr.mxu0 0.0
        %1111 = vmatpush1.xpose.msra.mxu0 0.0
        %1112 = vmatprep.subr.mxu0 0.0
        %1113 = vmatpush1.xpose.msra.mxu0 0.0
        %1114 = vmatprep.subr.mxu0 0.0
        %1115 = vmatpush1.xpose.msra.mxu0 0.0
        %1116 = vmatprep.subr.mxu0 0.0
        %1117 = vmatpush1.xpose.msra.mxu0 0.0
        %1118 = vmatprep.subr.mxu0 0.0
        %1119 = vmatpush1.xpose.msra.mxu0 0.0
        %1120 = vmatprep.subr.mxu0 0.0
        %1121 = vmatpush1.xpose.msra.mxu0 0.0
        %1122 = vmatprep.subr.mxu0 0.0
        %1123 = vmatpush1.xpose.msra.mxu0 0.0
        %1124 = vmatprep.subr.mxu0 0.0
        %1125 = vmatpush1.xpose.msra.mxu0 0.0
        %1126 = vmatprep.subr.mxu0 0.0
        %1127 = vmatpush1.xpose.msra.mxu0 0.0
        %1128 = vmatprep.subr.mxu0 0.0
        %1129 = vmatpush1.xpose.msra.mxu0 0.0
        %1130 = vmatprep.subr.mxu0 0.0
        %1131 = vmatpush1.xpose.msra.mxu0 0.0
        %1132 = vmatprep.subr.mxu0 0.0
        %1133 = vmatpush1.xpose.msra.mxu0 0.0
        %1134 = vmatprep.subr.mxu0 0.0
        %1135 = vmatpush1.xpose.msra.mxu0 0.0
        %1136 = vmatprep.subr.mxu0 0.0
        %1137 = vmatpush1.xpose.msra.mxu0 0.0
        %1138 = vmatprep.subr.mxu0 0.0
        %1139 = vmatpush1.xpose.msra.mxu0 0.0
        %1140 = vmatprep.subr.mxu0 0.0
        %1141 = vmatpush1.xpose.msra.mxu0 0.0
        %1142 = vmatprep.mubr.f32.mxu0 0.0
        %1143 = vmatmul.mubr.f32.gmra.mrb[0].mxu0 %v1074
        %v1144 = vpop.f32.mrb[0].mxu0
        %v1145 = vadd.f32 0.0, %v1144
        %v1146 = vpop.f32.mrb[0].mxu0
        %1147 = vdwg.mxu0
        %v1148 = vmul.f32 %v1145, 0.35355338
        %v1149 = vsel %vm1073, %v1148, -inf
        %1150 = vmax.xlane.f32.xlu0 %v1149
        %v1151 = vpop.xlane.xlu0 %1150
        %v1152 = vsub.f32 %v1148, %v1151
        %v1153 = vmul.f32 %v1152, 1.442695
        %v1154 = vpow.pop %v1153
        %v1155 = vsel %vm1073, %v1154, 0.0
        %1156 = vadd.xlane.f32.xlu0 %v1155
        %v1157 = vpop.xlane.xlu0 %1156
        %v1158 = vrcp.pop %v1157
        %v1159 = vmul.f32 %v1154, %v1158
        %1160 = vrot.lane.b32.xlu0 %v1063, 64
        %v1161 = vpop.permute.xlu0 %1160
        %v1164 = vsel %vm1073, %v1159, 0
        %1166 = vmatprep.subr.mxu0 0.0
        %1167 = vmatpush1.msra.mxu0 %v1161
        %1168 = vmatprep.subr.mxu0 0.0
        %1169 = vmatpush1.msra.mxu0 0.0
        %1170 = vmatprep.subr.mxu0 0.0
        %1171 = vmatpush1.msra.mxu0 0.0
        %1172 = vmatprep.subr.mxu0 0.0
        %1173 = vmatpush1.msra.mxu0 0.0
        %1174 = vmatprep.subr.mxu0 0.0
        %1175 = vmatpush1.msra.mxu0 0.0
        %1176 = vmatprep.subr.mxu0 0.0
        %1177 = vmatpush1.msra.mxu0 0.0
        %1178 = vmatprep.subr.mxu0 0.0
        %1179 = vmatpush1.msra.mxu0 0.0
        %1180 = vmatprep.subr.mxu0 0.0
        %1181 = vmatpush1.msra.mxu0 0.0
        %1182 = vmatprep.subr.mxu0 0.0
        %1183 = vmatpush1.msra.mxu0 0.0
        %1184 = vmatprep.subr.mxu0 0.0
        %1185 = vmatpush1.msra.mxu0 0.0
        %1186 = vmatprep.subr.mxu0 0.0
        %1187 = vmatpush1.msra.mxu0 0.0
        %1188 = vmatprep.subr.mxu0 0.0
        %1189 = vmatpush1.msra.mxu0 0.0
        %1190 = vmatprep.subr.mxu0 0.0
        %1191 = vmatpush1.msra.mxu0 0.0
        %1192 = vmatprep.subr.mxu0 0.0
        %1193 = vmatpush1.msra.mxu0 0.0
        %1194 = vmatprep.subr.mxu0 0.0
        %1195 = vmatpush1.msra.mxu0 0.0
        %1196 = vmatprep.subr.mxu0 0.0
        %1197 = vmatpush1.msra.mxu0 0.0
        %1198 = vmatprep.subr.mxu0 0.0
        %1199 = vmatpush1.msra.mxu0 0.0
        %1200 = vmatprep.subr.mxu0 0.0
        %1201 = vmatpush1.msra.mxu0 0.0
        %1202 = vmatprep.subr.mxu0 0.0
        %1203 = vmatpush1.msra.mxu0 0.0
        %1204 = vmatprep.subr.mxu0 0.0
        %1205 = vmatpush1.msra.mxu0 0.0
        %1206 = vmatprep.subr.mxu0 0.0
        %1207 = vmatpush1.msra.mxu0 0.0
        %1208 = vmatprep.subr.mxu0 0.0
        %1209 = vmatpush1.msra.mxu0 0.0
        %1210 = vmatprep.subr.mxu0 0.0
        %1211 = vmatpush1.msra.mxu0 0.0
        %1212 = vmatprep.subr.mxu0 0.0
        %1213 = vmatpush1.msra.mxu0 0.0
        %1214 = vmatprep.subr.mxu0 0.0
        %1215 = vmatpush1.msra.mxu0 0.0
        %1216 = vmatprep.subr.mxu0 0.0
        %1217 = vmatpush1.msra.mxu0 0.0
        %1218 = vmatprep.subr.mxu0 0.0
        %1219 = vmatpush1.msra.mxu0 0.0
        %1220 = vmatprep.subr.mxu0 0.0
        %1221 = vmatpush1.msra.mxu0 0.0
        %1222 = vmatprep.subr.mxu0 0.0
        %1223 = vmatpush1.msra.mxu0 0.0
        %1224 = vmatprep.subr.mxu0 0.0
        %1225 = vmatpush1.msra.mxu0 0.0
        %1226 = vmatprep.subr.mxu0 0.0
        %1227 = vmatpush1.msra.mxu0 0.0
        %1228 = vmatprep.subr.mxu0 0.0
        %1229 = vmatpush1.msra.mxu0 0.0
        %1230 = vmatprep.mubr.f32.mxu0 0.0
        %1231 = vmatmul.mubr.f32.gmra.mrb[0].mxu0 %v1164
        %v1232 = vpop.f32.mrb[0].mxu0
        %v1233 = vadd.f32 0.0, %v1232
        %v1234 = vpop.f32.mrb[0].mxu0
        %1235 = vdwg.mxu0
        %1236 = vrot.lane.b32.xlu0 %v1063, 120
        %v1237 = vpop.permute.xlu0 %1236
        %1238 = vrot.lane.b32.xlu0 %v1063, 88
        %v1239 = vpop.permute.xlu0 %1238
        %v1240 = vsel %vm1073, %v1237, 0
        %v1242 = vsel %vm1073, %v1239, 0
        %1244 = vmatprep.subr.mxu0 0.0
        %1245 = vmatpush1.xpose.msra.mxu0 %v1242
        %1246 = vmatprep.subr.mxu0 0.0
        %1247 = vmatpush1.xpose.msra.mxu0 0.0
        %1248 = vmatprep.subr.mxu0 0.0
        %1249 = vmatpush1.xpose.msra.mxu0 0.0
        %1250 = vmatprep.subr.mxu0 0.0
        %1251 = vmatpush1.xpose.msra.mxu0 0.0
        %1252 = vmatprep.subr.mxu0 0.0
        %1253 = vmatpush1.xpose.msra.mxu0 0.0
        %1254 = vmatprep.subr.mxu0 0.0
        %1255 = vmatpush1.xpose.msra.mxu0 0.0
        %1256 = vmatprep.subr.mxu0 0.0
        %1257 = vmatpush1.xpose.msra.mxu0 0.0
        %1258 = vmatprep.subr.mxu0 0.0
        %1259 = vmatpush1.xpose.msra.mxu0 0.0
        %1260 = vmatprep.subr.mxu0 0.0
        %1261 = vmatpush1.xpose.msra.mxu0 0.0
        %1262 = vmatprep.subr.mxu0 0.0
        %1263 = vmatpush1.xpose.msra.mxu0 0.0
        %1264 = vmatprep.subr.mxu0 0.0
        %1265 = vmatpush1.xpose.msra.mxu0 0.0
        %1266 = vmatprep.subr.mxu0 0.0
        %1267 = vmatpush1.xpose.msra.mxu0 0.0
        %1268 = vmatprep.subr.mxu0 0.0
        %1269 = vmatpush1.xpose.msra.mxu0 0.0
        %1270 = vmatprep.subr.mxu0 0.0
        %1271 = vmatpush1.xpose.msra.mxu0 0.0
        %1272 = vmatprep.subr.mxu0 0.0
        %1273 = vmatpush1.xpose.msra.mxu0 0.0
        %1274 = vmatprep.subr.mxu0 0.0
        %1275 = vmatpush1.xpose.msra.mxu0 0.0
        %1276 = vmatprep.subr.mxu0 0.0
        %1277 = vmatpush1.xpose.msra.mxu0 0.0
        %1278 = vmatprep.subr.mxu0 0.0
        %1279 = vmatpush1.xpose.msra.mxu0 0.0
        %1280 = vmatprep.subr.mxu0 0.0
        %1281 = vmatpush1.xpose.msra.mxu0 0.0
        %1282 = vmatprep.subr.mxu0 0.0
        %1283 = vmatpush1.xpose.msra.mxu0 0.0
        %1284 = vmatprep.subr.mxu0 0.0
        %1285 = vmatpush1.xpose.msra.mxu0 0.0
        %1286 = vmatprep.subr.mxu0 0.0
        %1287 = vmatpush1.xpose.msra.mxu0 0.0
        %1288 = vmatprep.subr.mxu0 0.0
        %1289 = vmatpush1.xpose.msra.mxu0 0.0
        %1290 = vmatprep.subr.mxu0 0.0
        %1291 = vmatpush1.xpose.msra.mxu0 0.0
        %1292 = vmatprep.subr.mxu0 0.0
        %1293 = vmatpush1.xpose.msra.mxu0 0.0
        %1294 = vmatprep.subr.mxu0 0.0
        %1295 = vmatpush1.xpose.msra.mxu0 0.0
        %1296 = vmatprep.subr.mxu0 0.0
        %1297 = vmatpush1.xpose.msra.mxu0 0.0
        %1298 = vmatprep.subr.mxu0 0.0
        %1299 = vmatpush1.xpose.msra.mxu0 0.0
        %1300 = vmatprep.subr.mxu0 0.0
        %1301 = vmatpush1.xpose.msra.mxu0 0.0
        %1302 = vmatprep.subr.mxu0 0.0
        %1303 = vmatpush1.xpose.msra.mxu0 0.0
        %1304 = vmatprep.subr.mxu0 0.0
        %1305 = vmatpush1.xpose.msra.mxu0 0.0
        %1306 = vmatprep.subr.mxu0 0.0
        %1307 = vmatpush1.xpose.msra.mxu0 0.0
        %1308 = vmatprep.mubr.f32.mxu0 0.0
        %1309 = vmatmul.mubr.f32.gmra.mrb[0].mxu0 %v1240
        %v1310 = vpop.f32.mrb[0].mxu0
        %v1311 = vadd.f32 0.0, %v1310
        %v1312 = vpop.f32.mrb[0].mxu0
        %1313 = vdwg.mxu0
        %v1314 = vmul.f32 %v1311, 0.35355338
        %v1315 = vsel %vm1073, %v1314, -inf
        %1316 = vmax.xlane.f32.xlu0 %v1315
        %v1317 = vpop.xlane.xlu0 %1316
        %v1318 = vsub.f32 %v1314, %v1317
        %v1319 = vmul.f32 %v1318, 1.442695
        %v1320 = vpow.pop %v1319
        %v1321 = vsel %vm1073, %v1320, 0.0
        %1322 = vadd.xlane.f32.xlu0 %v1321
        %v1323 = vpop.xlane.xlu0 %1322
        %v1324 = vrcp.pop %v1323
        %v1325 = vmul.f32 %v1320, %v1324
        %1326 = vrot.lane.b32.xlu0 %v1063, 56
        %v1327 = vpop.permute.xlu0 %1326
        %v1330 = vsel %vm1073, %v1325, 0
        %1332 = vmatprep.subr.mxu0 0.0
        %1333 = vmatpush1.msra.mxu0 %v1327
        %1334 = vmatprep.subr.mxu0 0.0
        %1335 = vmatpush1.msra.mxu0 0.0
        %1336 = vmatprep.subr.mxu0 0.0
        %1337 = vmatpush1.msra.mxu0 0.0
        %1338 = vmatprep.subr.mxu0 0.0
        %1339 = vmatpush1.msra.mxu0 0.0
        %1340 = vmatprep.subr.mxu0 0.0
        %1341 = vmatpush1.msra.mxu0 0.0
        %1342 = vmatprep.subr.mxu0 0.0
        %1343 = vmatpush1.msra.mxu0 0.0
        %1344 = vmatprep.subr.mxu0 0.0
        %1345 = vmatpush1.msra.mxu0 0.0
        %1346 = vmatprep.subr.mxu0 0.0
        %1347 = vmatpush1.msra.mxu0 0.0
        %1348 = vmatprep.subr.mxu0 0.0
        %1349 = vmatpush1.msra.mxu0 0.0
        %1350 = vmatprep.subr.mxu0 0.0
        %1351 = vmatpush1.msra.mxu0 0.0
        %1352 = vmatprep.subr.mxu0 0.0
        %1353 = vmatpush1.msra.mxu0 0.0
        %1354 = vmatprep.subr.mxu0 0.0
        %1355 = vmatpush1.msra.mxu0 0.0
        %1356 = vmatprep.subr.mxu0 0.0
        %1357 = vmatpush1.msra.mxu0 0.0
        %1358 = vmatprep.subr.mxu0 0.0
        %1359 = vmatpush1.msra.mxu0 0.0
        %1360 = vmatprep.subr.mxu0 0.0
        %1361 = vmatpush1.msra.mxu0 0.0
        %1362 = vmatprep.subr.mxu0 0.0
        %1363 = vmatpush1.msra.mxu0 0.0
        %1364 = vmatprep.subr.mxu0 0.0
        %1365 = vmatpush1.msra.mxu0 0.0
        %1366 = vmatprep.subr.mxu0 0.0
        %1367 = vmatpush1.msra.mxu0 0.0
        %1368 = vmatprep.subr.mxu0 0.0
        %1369 = vmatpush1.msra.mxu0 0.0
        %1370 = vmatprep.subr.mxu0 0.0
        %1371 = vmatpush1.msra.mxu0 0.0
        %1372 = vmatprep.subr.mxu0 0.0
        %1373 = vmatpush1.msra.mxu0 0.0
        %1374 = vmatprep.subr.mxu0 0.0
        %1375 = vmatpush1.msra.mxu0 0.0
        %1376 = vmatprep.subr.mxu0 0.0
        %1377 = vmatpush1.msra.mxu0 0.0
        %1378 = vmatprep.subr.mxu0 0.0
        %1379 = vmatpush1.msra.mxu0 0.0
        %1380 = vmatprep.subr.mxu0 0.0
        %1381 = vmatpush1.msra.mxu0 0.0
        %1382 = vmatprep.subr.mxu0 0.0
        %1383 = vmatpush1.msra.mxu0 0.0
        %1384 = vmatprep.subr.mxu0 0.0
        %1385 = vmatpush1.msra.mxu0 0.0
        %1386 = vmatprep.subr.mxu0 0.0
        %1387 = vmatpush1.msra.mxu0 0.0
        %1388 = vmatprep.subr.mxu0 0.0
        %1389 = vmatpush1.msra.mxu0 0.0
        %1390 = vmatprep.subr.mxu0 0.0
        %1391 = vmatpush1.msra.mxu0 0.0
        %1392 = vmatprep.subr.mxu0 0.0
        %1393 = vmatpush1.msra.mxu0 0.0
        %1394 = vmatprep.subr.mxu0 0.0
        %1395 = vmatpush1.msra.mxu0 0.0
        %1396 = vmatprep.mubr.f32.mxu0 0.0
        %1397 = vmatmul.mubr.f32.gmra.mrb[0].mxu0 %v1330
        %v1398 = vpop.f32.mrb[0].mxu0
        %v1399 = vadd.f32 0.0, %v1398
        %v1400 = vpop.f32.mrb[0].mxu0
        %1401 = vdwg.mxu0
        %v1403 = vsel %vm1073, %v1399, 0
        %1405 = vmatprep.subr.mxu0 0.0
        %1406 = vmatpush1.msra.mxu0 %v1067
        %1407 = vmatprep.subr.mxu0 0.0
        %1408 = vmatpush1.msra.mxu0 0.0
        %1409 = vmatprep.subr.mxu0 0.0
        %1410 = vmatpush1.msra.mxu0 0.0
        %1411 = vmatprep.subr.mxu0 0.0
        %1412 = vmatpush1.msra.mxu0 0.0
        %1413 = vmatprep.subr.mxu0 0.0
        %1414 = vmatpush1.msra.mxu0 0.0
        %1415 = vmatprep.subr.mxu0 0.0
        %1416 = vmatpush1.msra.mxu0 0.0
        %1417 = vmatprep.subr.mxu0 0.0
        %1418 = vmatpush1.msra.mxu0 0.0
        %1419 = vmatprep.subr.mxu0 0.0
        %1420 = vmatpush1.msra.mxu0 0.0
        %1421 = vmatprep.subr.mxu0 0.0
        %1422 = vmatpush1.msra.mxu0 0.0
        %1423 = vmatprep.subr.mxu0 0.0
        %1424 = vmatpush1.msra.mxu0 0.0
        %1425 = vmatprep.subr.mxu0 0.0
        %1426 = vmatpush1.msra.mxu0 0.0
        %1427 = vmatprep.subr.mxu0 0.0
        %1428 = vmatpush1.msra.mxu0 0.0
        %1429 = vmatprep.subr.mxu0 0.0
        %1430 = vmatpush1.msra.mxu0 0.0
        %1431 = vmatprep.subr.mxu0 0.0
        %1432 = vmatpush1.msra.mxu0 0.0
        %1433 = vmatprep.subr.mxu0 0.0
        %1434 = vmatpush1.msra.mxu0 0.0
        %1435 = vmatprep.subr.mxu0 0.0
        %1436 = vmatpush1.msra.mxu0 0.0
        %1437 = vmatprep.subr.mxu0 0.0
        %1438 = vmatpush1.msra.mxu0 0.0
        %1439 = vmatprep.subr.mxu0 0.0
        %1440 = vmatpush1.msra.mxu0 0.0
        %1441 = vmatprep.subr.mxu0 0.0
        %1442 = vmatpush1.msra.mxu0 0.0
        %1443 = vmatprep.subr.mxu0 0.0
        %1444 = vmatpush1.msra.mxu0 0.0
        %1445 = vmatprep.subr.mxu0 0.0
        %1446 = vmatpush1.msra.mxu0 0.0
        %1447 = vmatprep.subr.mxu0 0.0
        %1448 = vmatpush1.msra.mxu0 0.0
        %1449 = vmatprep.subr.mxu0 0.0
        %1450 = vmatpush1.msra.mxu0 0.0
        %1451 = vmatprep.subr.mxu0 0.0
        %1452 = vmatpush1.msra.mxu0 0.0
        %1453 = vmatprep.subr.mxu0 0.0
        %1454 = vmatpush1.msra.mxu0 0.0
        %1455 = vmatprep.subr.mxu0 0.0
        %1456 = vmatpush1.msra.mxu0 0.0
        %1457 = vmatprep.subr.mxu0 0.0
        %1458 = vmatpush1.msra.mxu0 0.0
        %1459 = vmatprep.subr.mxu0 0.0
        %1460 = vmatpush1.msra.mxu0 0.0
        %1461 = vmatprep.subr.mxu0 0.0
        %1462 = vmatpush1.msra.mxu0 0.0
        %1463 = vmatprep.subr.mxu0 0.0
        %1464 = vmatpush1.msra.mxu0 0.0
        %1465 = vmatprep.subr.mxu0 0.0
        %1466 = vmatpush1.msra.mxu0 0.0
        %1467 = vmatprep.subr.mxu0 0.0
        %1468 = vmatpush1.msra.mxu0 0.0
        %1469 = vmatprep.mubr.f32.mxu0 0.0
        %1470 = vmatmul.mubr.f32.gmra.mrb[0].mxu0 %v1403
        %v1471 = vpop.f32.mrb[0].mxu0
        %v1472 = vadd.f32 0.0, %v1471
        %v1473 = vpop.f32.mrb[0].mxu0
        %1474 = vdwg.mxu0
        %v1476 = vsel %vm1073, %v1233, 0
        %1478 = vmatprep.subr.mxu0 0.0
        %1479 = vmatpush1.msra.mxu0 %v1066
        %1480 = vmatprep.subr.mxu0 0.0
        %1481 = vmatpush1.msra.mxu0 0.0
        %1482 = vmatprep.subr.mxu0 0.0
        %1483 = vmatpush1.msra.mxu0 0.0
        %1484 = vmatprep.subr.mxu0 0.0
        %1485 = vmatpush1.msra.mxu0 0.0
        %1486 = vmatprep.subr.mxu0 0.0
        %1487 = vmatpush1.msra.mxu0 0.0
        %1488 = vmatprep.subr.mxu0 0.0
        %1489 = vmatpush1.msra.mxu0 0.0
        %1490 = vmatprep.subr.mxu0 0.0
        %1491 = vmatpush1.msra.mxu0 0.0
        %1492 = vmatprep.subr.mxu0 0.0
        %1493 = vmatpush1.msra.mxu0 0.0
        %1494 = vmatprep.subr.mxu0 0.0
        %1495 = vmatpush1.msra.mxu0 0.0
        %1496 = vmatprep.subr.mxu0 0.0
        %1497 = vmatpush1.msra.mxu0 0.0
        %1498 = vmatprep.subr.mxu0 0.0
        %1499 = vmatpush1.msra.mxu0 0.0
        %1500 = vmatprep.subr.mxu0 0.0
        %1501 = vmatpush1.msra.mxu0 0.0
        %1502 = vmatprep.subr.mxu0 0.0
        %1503 = vmatpush1.msra.mxu0 0.0
        %1504 = vmatprep.subr.mxu0 0.0
        %1505 = vmatpush1.msra.mxu0 0.0
        %1506 = vmatprep.subr.mxu0 0.0
        %1507 = vmatpush1.msra.mxu0 0.0
        %1508 = vmatprep.subr.mxu0 0.0
        %1509 = vmatpush1.msra.mxu0 0.0
        %1510 = vmatprep.subr.mxu0 0.0
        %1511 = vmatpush1.msra.mxu0 0.0
        %1512 = vmatprep.subr.mxu0 0.0
        %1513 = vmatpush1.msra.mxu0 0.0
        %1514 = vmatprep.subr.mxu0 0.0
        %1515 = vmatpush1.msra.mxu0 0.0
        %1516 = vmatprep.subr.mxu0 0.0
        %1517 = vmatpush1.msra.mxu0 0.0
        %1518 = vmatprep.subr.mxu0 0.0
        %1519 = vmatpush1.msra.mxu0 0.0
        %1520 = vmatprep.subr.mxu0 0.0
        %1521 = vmatpush1.msra.mxu0 0.0
        %1522 = vmatprep.subr.mxu0 0.0
        %1523 = vmatpush1.msra.mxu0 0.0
        %1524 = vmatprep.subr.mxu0 0.0
        %1525 = vmatpush1.msra.mxu0 0.0
        %1526 = vmatprep.subr.mxu0 0.0
        %1527 = vmatpush1.msra.mxu0 0.0
        %1528 = vmatprep.subr.mxu0 0.0
        %1529 = vmatpush1.msra.mxu0 0.0
        %1530 = vmatprep.subr.mxu0 0.0
        %1531 = vmatpush1.msra.mxu0 0.0
        %1532 = vmatprep.subr.mxu0 0.0
        %1533 = vmatpush1.msra.mxu0 0.0
        %1534 = vmatprep.subr.mxu0 0.0
        %1535 = vmatpush1.msra.mxu0 0.0
        %1536 = vmatprep.subr.mxu0 0.0
        %1537 = vmatpush1.msra.mxu0 0.0
        %1538 = vmatprep.subr.mxu0 0.0
        %1539 = vmatpush1.msra.mxu0 0.0
        %1540 = vmatprep.subr.mxu0 0.0
        %1541 = vmatpush1.msra.mxu0 0.0
        %1542 = vmatprep.mubr.f32.mxu0 0.0
        %1543 = vmatmul.mubr.f32.gmra.mrb[0].mxu0 %v1476
        %v1544 = vpop.f32.mrb[0].mxu0
        %v1545 = vadd.f32 %v1472, %v1544
        %v1546 = vpop.f32.mrb[0].mxu0
        %1547 = vdwg.mxu0
        %1548 = vrot.lane.b32.xlu0 %v1063, 112
        %v1549 = vpop.permute.xlu0 %1548
        %1550 = vrot.lane.b32.xlu0 %v1063, 80
        %v1551 = vpop.permute.xlu0 %1550
        %v1552 = vsel %vm1073, %v1549, 0
        %v1554 = vsel %vm1073, %v1551, 0
        %1556 = vmatprep.subr.mxu0 0.0
        %1557 = vmatpush1.xpose.msra.mxu0 %v1554
        %1558 = vmatprep.subr.mxu0 0.0
        %1559 = vmatpush1.xpose.msra.mxu0 0.0
        %1560 = vmatprep.subr.mxu0 0.0
        %1561 = vmatpush1.xpose.msra.mxu0 0.0
        %1562 = vmatprep.subr.mxu0 0.0
        %1563 = vmatpush1.xpose.msra.mxu0 0.0
        %1564 = vmatprep.subr.mxu0 0.0
        %1565 = vmatpush1.xpose.msra.mxu0 0.0
        %1566 = vmatprep.subr.mxu0 0.0
        %1567 = vmatpush1.xpose.msra.mxu0 0.0
        %1568 = vmatprep.subr.mxu0 0.0
        %1569 = vmatpush1.xpose.msra.mxu0 0.0
        %1570 = vmatprep.subr.mxu0 0.0
        %1571 = vmatpush1.xpose.msra.mxu0 0.0
        %1572 = vmatprep.subr.mxu0 0.0
        %1573 = vmatpush1.xpose.msra.mxu0 0.0
        %1574 = vmatprep.subr.mxu0 0.0
        %1575 = vmatpush1.xpose.msra.mxu0 0.0
        %1576 = vmatprep.subr.mxu0 0.0
        %1577 = vmatpush1.xpose.msra.mxu0 0.0
        %1578 = vmatprep.subr.mxu0 0.0
        %1579 = vmatpush1.xpose.msra.mxu0 0.0
        %1580 = vmatprep.subr.mxu0 0.0
        %1581 = vmatpush1.xpose.msra.mxu0 0.0
        %1582 = vmatprep.subr.mxu0 0.0
        %1583 = vmatpush1.xpose.msra.mxu0 0.0
        %1584 = vmatprep.subr.mxu0 0.0
        %1585 = vmatpush1.xpose.msra.mxu0 0.0
        %1586 = vmatprep.subr.mxu0 0.0
        %1587 = vmatpush1.xpose.msra.mxu0 0.0
        %1588 = vmatprep.subr.mxu0 0.0
        %1589 = vmatpush1.xpose.msra.mxu0 0.0
        %1590 = vmatprep.subr.mxu0 0.0
        %1591 = vmatpush1.xpose.msra.mxu0 0.0
        %1592 = vmatprep.subr.mxu0 0.0
        %1593 = vmatpush1.xpose.msra.mxu0 0.0
        %1594 = vmatprep.subr.mxu0 0.0
        %1595 = vmatpush1.xpose.msra.mxu0 0.0
        %1596 = vmatprep.subr.mxu0 0.0
        %1597 = vmatpush1.xpose.msra.mxu0 0.0
        %1598 = vmatprep.subr.mxu0 0.0
        %1599 = vmatpush1.xpose.msra.mxu0 0.0
        %1600 = vmatprep.subr.mxu0 0.0
        %1601 = vmatpush1.xpose.msra.mxu0 0.0
        %1602 = vmatprep.subr.mxu0 0.0
        %1603 = vmatpush1.xpose.msra.mxu0 0.0
        %1604 = vmatprep.subr.mxu0 0.0
        %1605 = vmatpush1.xpose.msra.mxu0 0.0
        %1606 = vmatprep.subr.mxu0 0.0
        %1607 = vmatpush1.xpose.msra.mxu0 0.0
        %1608 = vmatprep.subr.mxu0 0.0
        %1609 = vmatpush1.xpose.msra.mxu0 0.0
        %1610 = vmatprep.subr.mxu0 0.0
        %1611 = vmatpush1.xpose.msra.mxu0 0.0
        %1612 = vmatprep.subr.mxu0 0.0
        %1613 = vmatpush1.xpose.msra.mxu0 0.0
        %1614 = vmatprep.subr.mxu0 0.0
        %1615 = vmatpush1.xpose.msra.mxu0 0.0
        %1616 = vmatprep.subr.mxu0 0.0
        %1617 = vmatpush1.xpose.msra.mxu0 0.0
        %1618 = vmatprep.subr.mxu0 0.0
        %1619 = vmatpush1.xpose.msra.mxu0 0.0
        %1620 = vmatprep.mubr.f32.mxu0 0.0
        %1621 = vmatmul.mubr.f32.gmra.mrb[0].mxu0 %v1552
        %v1622 = vpop.f32.mrb[0].mxu0
        %v1623 = vadd.f32 0.0, %v1622
        %v1624 = vpop.f32.mrb[0].mxu0
        %1625 = vdwg.mxu0
        %v1626 = vmul.f32 %v1623, 0.35355338
        %v1627 = vsel %vm1073, %v1626, -inf
        %1628 = vmax.xlane.f32.xlu0 %v1627
        %v1629 = vpop.xlane.xlu0 %1628
        %v1630 = vsub.f32 %v1626, %v1629
        %v1631 = vmul.f32 %v1630, 1.442695
        %v1632 = vpow.pop %v1631
        %v1633 = vsel %vm1073, %v1632, 0.0
        %1634 = vadd.xlane.f32.xlu0 %v1633
        %v1635 = vpop.xlane.xlu0 %1634
        %v1636 = vrcp.pop %v1635
        %v1637 = vmul.f32 %v1632, %v1636
        %1638 = vrot.lane.b32.xlu0 %v1063, 48
        %v1639 = vpop.permute.xlu0 %1638
        %v1642 = vsel %vm1073, %v1637, 0
        %1644 = vmatprep.subr.mxu0 0.0
        %1645 = vmatpush1.msra.mxu0 %v1639
        %1646 = vmatprep.subr.mxu0 0.0
        %1647 = vmatpush1.msra.mxu0 0.0
        %1648 = vmatprep.subr.mxu0 0.0
        %1649 = vmatpush1.msra.mxu0 0.0
        %1650 = vmatprep.subr.mxu0 0.0
        %1651 = vmatpush1.msra.mxu0 0.0
        %1652 = vmatprep.subr.mxu0 0.0
        %1653 = vmatpush1.msra.mxu0 0.0
        %1654 = vmatprep.subr.mxu0 0.0
        %1655 = vmatpush1.msra.mxu0 0.0
        %1656 = vmatprep.subr.mxu0 0.0
        %1657 = vmatpush1.msra.mxu0 0.0
        %1658 = vmatprep.subr.mxu0 0.0
        %1659 = vmatpush1.msra.mxu0 0.0
        %1660 = vmatprep.subr.mxu0 0.0
        %1661 = vmatpush1.msra.mxu0 0.0
        %1662 = vmatprep.subr.mxu0 0.0
        %1663 = vmatpush1.msra.mxu0 0.0
        %1664 = vmatprep.subr.mxu0 0.0
        %1665 = vmatpush1.msra.mxu0 0.0
        %1666 = vmatprep.subr.mxu0 0.0
        %1667 = vmatpush1.msra.mxu0 0.0
        %1668 = vmatprep.subr.mxu0 0.0
        %1669 = vmatpush1.msra.mxu0 0.0
        %1670 = vmatprep.subr.mxu0 0.0
        %1671 = vmatpush1.msra.mxu0 0.0
        %1672 = vmatprep.subr.mxu0 0.0
        %1673 = vmatpush1.msra.mxu0 0.0
        %1674 = vmatprep.subr.mxu0 0.0
        %1675 = vmatpush1.msra.mxu0 0.0
        %1676 = vmatprep.subr.mxu0 0.0
        %1677 = vmatpush1.msra.mxu0 0.0
        %1678 = vmatprep.subr.mxu0 0.0
        %1679 = vmatpush1.msra.mxu0 0.0
        %1680 = vmatprep.subr.mxu0 0.0
        %1681 = vmatpush1.msra.mxu0 0.0
        %1682 = vmatprep.subr.mxu0 0.0
        %1683 = vmatpush1.msra.mxu0 0.0
        %1684 = vmatprep.subr.mxu0 0.0
        %1685 = vmatpush1.msra.mxu0 0.0
        %1686 = vmatprep.subr.mxu0 0.0
        %1687 = vmatpush1.msra.mxu0 0.0
        %1688 = vmatprep.subr.mxu0 0.0
        %1689 = vmatpush1.msra.mxu0 0.0
        %1690 = vmatprep.subr.mxu0 0.0
        %1691 = vmatpush1.msra.mxu0 0.0
        %1692 = vmatprep.subr.mxu0 0.0
        %1693 = vmatpush1.msra.mxu0 0.0
        %1694 = vmatprep.subr.mxu0 0.0
        %1695 = vmatpush1.msra.mxu0 0.0
        %1696 = vmatprep.subr.mxu0 0.0
        %1697 = vmatpush1.msra.mxu0 0.0
        %1698 = vmatprep.subr.mxu0 0.0
        %1699 = vmatpush1.msra.mxu0 0.0
        %1700 = vmatprep.subr.mxu0 0.0
        %1701 = vmatpush1.msra.mxu0 0.0
        %1702 = vmatprep.subr.mxu0 0.0
        %1703 = vmatpush1.msra.mxu0 0.0
        %1704 = vmatprep.subr.mxu0 0.0
        %1705 = vmatpush1.msra.mxu0 0.0
        %1706 = vmatprep.subr.mxu0 0.0
        %1707 = vmatpush1.msra.mxu0 0.0
        %1708 = vmatprep.mubr.f32.mxu0 0.0
        %1709 = vmatmul.mubr.f32.gmra.mrb[0].mxu0 %v1642
        %v1710 = vpop.f32.mrb[0].mxu0
        %v1711 = vadd.f32 0.0, %v1710
        %v1712 = vpop.f32.mrb[0].mxu0
        %1713 = vdwg.mxu0
        %v1715 = vsel %vm1073, %v1711, 0
        %1717 = vmatprep.subr.mxu0 0.0
        %1718 = vmatpush1.msra.mxu0 %v1068
        %1719 = vmatprep.subr.mxu0 0.0
        %1720 = vmatpush1.msra.mxu0 0.0
        %1721 = vmatprep.subr.mxu0 0.0
        %1722 = vmatpush1.msra.mxu0 0.0
        %1723 = vmatprep.subr.mxu0 0.0
        %1724 = vmatpush1.msra.mxu0 0.0
        %1725 = vmatprep.subr.mxu0 0.0
        %1726 = vmatpush1.msra.mxu0 0.0
        %1727 = vmatprep.subr.mxu0 0.0
        %1728 = vmatpush1.msra.mxu0 0.0
        %1729 = vmatprep.subr.mxu0 0.0
        %1730 = vmatpush1.msra.mxu0 0.0
        %1731 = vmatprep.subr.mxu0 0.0
        %1732 = vmatpush1.msra.mxu0 0.0
        %1733 = vmatprep.subr.mxu0 0.0
        %1734 = vmatpush1.msra.mxu0 0.0
        %1735 = vmatprep.subr.mxu0 0.0
        %1736 = vmatpush1.msra.mxu0 0.0
        %1737 = vmatprep.subr.mxu0 0.0
        %1738 = vmatpush1.msra.mxu0 0.0
        %1739 = vmatprep.subr.mxu0 0.0
        %1740 = vmatpush1.msra.mxu0 0.0
        %1741 = vmatprep.subr.mxu0 0.0
        %1742 = vmatpush1.msra.mxu0 0.0
        %1743 = vmatprep.subr.mxu0 0.0
        %1744 = vmatpush1.msra.mxu0 0.0
        %1745 = vmatprep.subr.mxu0 0.0
        %1746 = vmatpush1.msra.mxu0 0.0
        %1747 = vmatprep.subr.mxu0 0.0
        %1748 = vmatpush1.msra.mxu0 0.0
        %1749 = vmatprep.subr.mxu0 0.0
        %1750 = vmatpush1.msra.mxu0 0.0
        %1751 = vmatprep.subr.mxu0 0.0
        %1752 = vmatpush1.msra.mxu0 0.0
        %1753 = vmatprep.subr.mxu0 0.0
        %1754 = vmatpush1.msra.mxu0 0.0
        %1755 = vmatprep.subr.mxu0 0.0
        %1756 = vmatpush1.msra.mxu0 0.0
        %1757 = vmatprep.subr.mxu0 0.0
        %1758 = vmatpush1.msra.mxu0 0.0
        %1759 = vmatprep.subr.mxu0 0.0
        %1760 = vmatpush1.msra.mxu0 0.0
        %1761 = vmatprep.subr.mxu0 0.0
        %1762 = vmatpush1.msra.mxu0 0.0
        %1763 = vmatprep.subr.mxu0 0.0
        %1764 = vmatpush1.msra.mxu0 0.0
        %1765 = vmatprep.subr.mxu0 0.0
        %1766 = vmatpush1.msra.mxu0 0.0
        %1767 = vmatprep.subr.mxu0 0.0
        %1768 = vmatpush1.msra.mxu0 0.0
        %1769 = vmatprep.subr.mxu0 0.0
        %1770 = vmatpush1.msra.mxu0 0.0
        %1771 = vmatprep.subr.mxu0 0.0
        %1772 = vmatpush1.msra.mxu0 0.0
        %1773 = vmatprep.subr.mxu0 0.0
        %1774 = vmatpush1.msra.mxu0 0.0
        %1775 = vmatprep.subr.mxu0 0.0
        %1776 = vmatpush1.msra.mxu0 0.0
        %1777 = vmatprep.subr.mxu0 0.0
        %1778 = vmatpush1.msra.mxu0 0.0
        %1779 = vmatprep.subr.mxu0 0.0
        %1780 = vmatpush1.msra.mxu0 0.0
        %1781 = vmatprep.mubr.f32.mxu0 0.0
        %1782 = vmatmul.mubr.f32.gmra.mrb[0].mxu0 %v1715
        %v1783 = vpop.f32.mrb[0].mxu0
        %v1784 = vadd.f32 0.0, %v1783
        %v1785 = vpop.f32.mrb[0].mxu0
        %1786 = vdwg.mxu0
        %v1787 = vadd.f32 %v1545, %v1784
        %1788 = vrot.lane.b32.xlu0 %v1063, 104
        %v1789 = vpop.permute.xlu0 %1788
        %1790 = vrot.lane.b32.xlu0 %v1063, 72
        %v1791 = vpop.permute.xlu0 %1790
        %v1792 = vsel %vm1073, %v1789, 0
        %v1794 = vsel %vm1073, %v1791, 0
        %1796 = vmatprep.subr.mxu0 0.0
        %1797 = vmatpush1.xpose.msra.mxu0 %v1794
        %1798 = vmatprep.subr.mxu0 0.0
        %1799 = vmatpush1.xpose.msra.mxu0 0.0
        %1800 = vmatprep.subr.mxu0 0.0
        %1801 = vmatpush1.xpose.msra.mxu0 0.0
        %1802 = vmatprep.subr.mxu0 0.0
        %1803 = vmatpush1.xpose.msra.mxu0 0.0
        %1804 = vmatprep.subr.mxu0 0.0
        %1805 = vmatpush1.xpose.msra.mxu0 0.0
        %1806 = vmatprep.subr.mxu0 0.0
        %1807 = vmatpush1.xpose.msra.mxu0 0.0
        %1808 = vmatprep.subr.mxu0 0.0
        %1809 = vmatpush1.xpose.msra.mxu0 0.0
        %1810 = vmatprep.subr.mxu0 0.0
        %1811 = vmatpush1.xpose.msra.mxu0 0.0
        %1812 = vmatprep.subr.mxu0 0.0
        %1813 = vmatpush1.xpose.msra.mxu0 0.0
        %1814 = vmatprep.subr.mxu0 0.0
        %1815 = vmatpush1.xpose.msra.mxu0 0.0
        %1816 = vmatprep.subr.mxu0 0.0
        %1817 = vmatpush1.xpose.msra.mxu0 0.0
        %1818 = vmatprep.subr.mxu0 0.0
        %1819 = vmatpush1.xpose.msra.mxu0 0.0
        %1820 = vmatprep.subr.mxu0 0.0
        %1821 = vmatpush1.xpose.msra.mxu0 0.0
        %1822 = vmatprep.subr.mxu0 0.0
        %1823 = vmatpush1.xpose.msra.mxu0 0.0
        %1824 = vmatprep.subr.mxu0 0.0
        %1825 = vmatpush1.xpose.msra.mxu0 0.0
        %1826 = vmatprep.subr.mxu0 0.0
        %1827 = vmatpush1.xpose.msra.mxu0 0.0
        %1828 = vmatprep.subr.mxu0 0.0
        %1829 = vmatpush1.xpose.msra.mxu0 0.0
        %1830 = vmatprep.subr.mxu0 0.0
        %1831 = vmatpush1.xpose.msra.mxu0 0.0
        %1832 = vmatprep.subr.mxu0 0.0
        %1833 = vmatpush1.xpose.msra.mxu0 0.0
        %1834 = vmatprep.subr.mxu0 0.0
        %1835 = vmatpush1.xpose.msra.mxu0 0.0
        %1836 = vmatprep.subr.mxu0 0.0
        %1837 = vmatpush1.xpose.msra.mxu0 0.0
        %1838 = vmatprep.subr.mxu0 0.0
        %1839 = vmatpush1.xpose.msra.mxu0 0.0
        %1840 = vmatprep.subr.mxu0 0.0
        %1841 = vmatpush1.xpose.msra.mxu0 0.0
        %1842 = vmatprep.subr.mxu0 0.0
        %1843 = vmatpush1.xpose.msra.mxu0 0.0
        %1844 = vmatprep.subr.mxu0 0.0
        %1845 = vmatpush1.xpose.msra.mxu0 0.0
        %1846 = vmatprep.subr.mxu0 0.0
        %1847 = vmatpush1.xpose.msra.mxu0 0.0
        %1848 = vmatprep.subr.mxu0 0.0
        %1849 = vmatpush1.xpose.msra.mxu0 0.0
        %1850 = vmatprep.subr.mxu0 0.0
        %1851 = vmatpush1.xpose.msra.mxu0 0.0
        %1852 = vmatprep.subr.mxu0 0.0
        %1853 = vmatpush1.xpose.msra.mxu0 0.0
        %1854 = vmatprep.subr.mxu0 0.0
        %1855 = vmatpush1.xpose.msra.mxu0 0.0
        %1856 = vmatprep.subr.mxu0 0.0
        %1857 = vmatpush1.xpose.msra.mxu0 0.0
        %1858 = vmatprep.subr.mxu0 0.0
        %1859 = vmatpush1.xpose.msra.mxu0 0.0
        %1860 = vmatprep.mubr.f32.mxu0 0.0
        %1861 = vmatmul.mubr.f32.gmra.mrb[0].mxu0 %v1792
        %v1862 = vpop.f32.mrb[0].mxu0
        %v1863 = vadd.f32 0.0, %v1862
        %v1864 = vpop.f32.mrb[0].mxu0
        %1865 = vdwg.mxu0
        %v1866 = vmul.f32 %v1863, 0.35355338
        %v1867 = vsel %vm1073, %v1866, -inf
        %1868 = vmax.xlane.f32.xlu0 %v1867
        %v1869 = vpop.xlane.xlu0 %1868
        %v1870 = vsub.f32 %v1866, %v1869
        %v1871 = vmul.f32 %v1870, 1.442695
        %v1872 = vpow.pop %v1871
        %v1873 = vsel %vm1073, %v1872, 0.0
        %1874 = vadd.xlane.f32.xlu0 %v1873
        %v1875 = vpop.xlane.xlu0 %1874
        %v1876 = vrcp.pop %v1875
        %v1877 = vmul.f32 %v1872, %v1876
        %1878 = vrot.lane.b32.xlu0 %v1063, 40
        %v1879 = vpop.permute.xlu0 %1878
        %v1882 = vsel %vm1073, %v1877, 0
        %1884 = vmatprep.subr.mxu0 0.0
        %1885 = vmatpush1.msra.mxu0 %v1879
        %1886 = vmatprep.subr.mxu0 0.0
        %1887 = vmatpush1.msra.mxu0 0.0
        %1888 = vmatprep.subr.mxu0 0.0
        %1889 = vmatpush1.msra.mxu0 0.0
        %1890 = vmatprep.subr.mxu0 0.0
        %1891 = vmatpush1.msra.mxu0 0.0
        %1892 = vmatprep.subr.mxu0 0.0
        %1893 = vmatpush1.msra.mxu0 0.0
        %1894 = vmatprep.subr.mxu0 0.0
        %1895 = vmatpush1.msra.mxu0 0.0
        %1896 = vmatprep.subr.mxu0 0.0
        %1897 = vmatpush1.msra.mxu0 0.0
        %1898 = vmatprep.subr.mxu0 0.0
        %1899 = vmatpush1.msra.mxu0 0.0
        %1900 = vmatprep.subr.mxu0 0.0
        %1901 = vmatpush1.msra.mxu0 0.0
        %1902 = vmatprep.subr.mxu0 0.0
        %1903 = vmatpush1.msra.mxu0 0.0
        %1904 = vmatprep.subr.mxu0 0.0
        %1905 = vmatpush1.msra.mxu0 0.0
        %1906 = vmatprep.subr.mxu0 0.0
        %1907 = vmatpush1.msra.mxu0 0.0
        %1908 = vmatprep.subr.mxu0 0.0
        %1909 = vmatpush1.msra.mxu0 0.0
        %1910 = vmatprep.subr.mxu0 0.0
        %1911 = vmatpush1.msra.mxu0 0.0
        %1912 = vmatprep.subr.mxu0 0.0
        %1913 = vmatpush1.msra.mxu0 0.0
        %1914 = vmatprep.subr.mxu0 0.0
        %1915 = vmatpush1.msra.mxu0 0.0
        %1916 = vmatprep.subr.mxu0 0.0
        %1917 = vmatpush1.msra.mxu0 0.0
        %1918 = vmatprep.subr.mxu0 0.0
        %1919 = vmatpush1.msra.mxu0 0.0
        %1920 = vmatprep.subr.mxu0 0.0
        %1921 = vmatpush1.msra.mxu0 0.0
        %1922 = vmatprep.subr.mxu0 0.0
        %1923 = vmatpush1.msra.mxu0 0.0
        %1924 = vmatprep.subr.mxu0 0.0
        %1925 = vmatpush1.msra.mxu0 0.0
        %1926 = vmatprep.subr.mxu0 0.0
        %1927 = vmatpush1.msra.mxu0 0.0
        %1928 = vmatprep.subr.mxu0 0.0
        %1929 = vmatpush1.msra.mxu0 0.0
        %1930 = vmatprep.subr.mxu0 0.0
        %1931 = vmatpush1.msra.mxu0 0.0
        %1932 = vmatprep.subr.mxu0 0.0
        %1933 = vmatpush1.msra.mxu0 0.0
        %1934 = vmatprep.subr.mxu0 0.0
        %1935 = vmatpush1.msra.mxu0 0.0
        %1936 = vmatprep.subr.mxu0 0.0
        %1937 = vmatpush1.msra.mxu0 0.0
        %1938 = vmatprep.subr.mxu0 0.0
        %1939 = vmatpush1.msra.mxu0 0.0
        %1940 = vmatprep.subr.mxu0 0.0
        %1941 = vmatpush1.msra.mxu0 0.0
        %1942 = vmatprep.subr.mxu0 0.0
        %1943 = vmatpush1.msra.mxu0 0.0
        %1944 = vmatprep.subr.mxu0 0.0
        %1945 = vmatpush1.msra.mxu0 0.0
        %1946 = vmatprep.subr.mxu0 0.0
        %1947 = vmatpush1.msra.mxu0 0.0
        %1948 = vmatprep.mubr.f32.mxu0 0.0
        %1949 = vmatmul.mubr.f32.gmra.mrb[0].mxu0 %v1882
        %v1950 = vpop.f32.mrb[0].mxu0
        %v1951 = vadd.f32 0.0, %v1950
        %v1952 = vpop.f32.mrb[0].mxu0
        %1953 = vdwg.mxu0
        %v1955 = vsel %vm1073, %v1951, 0
        %1957 = vmatprep.subr.mxu0 0.0
        %1958 = vmatpush1.msra.mxu0 %v1069
        %1959 = vmatprep.subr.mxu0 0.0
        %1960 = vmatpush1.msra.mxu0 0.0
        %1961 = vmatprep.subr.mxu0 0.0
        %1962 = vmatpush1.msra.mxu0 0.0
        %1963 = vmatprep.subr.mxu0 0.0
        %1964 = vmatpush1.msra.mxu0 0.0
        %1965 = vmatprep.subr.mxu0 0.0
        %1966 = vmatpush1.msra.mxu0 0.0
        %1967 = vmatprep.subr.mxu0 0.0
        %1968 = vmatpush1.msra.mxu0 0.0
        %1969 = vmatprep.subr.mxu0 0.0
        %1970 = vmatpush1.msra.mxu0 0.0
        %1971 = vmatprep.subr.mxu0 0.0
        %1972 = vmatpush1.msra.mxu0 0.0
        %1973 = vmatprep.subr.mxu0 0.0
        %1974 = vmatpush1.msra.mxu0 0.0
        %1975 = vmatprep.subr.mxu0 0.0
        %1976 = vmatpush1.msra.mxu0 0.0
        %1977 = vmatprep.subr.mxu0 0.0
        %1978 = vmatpush1.msra.mxu0 0.0
        %1979 = vmatprep.subr.mxu0 0.0
        %1980 = vmatpush1.msra.mxu0 0.0
        %1981 = vmatprep.subr.mxu0 0.0
        %1982 = vmatpush1.msra.mxu0 0.0
        %1983 = vmatprep.subr.mxu0 0.0
        %1984 = vmatpush1.msra.mxu0 0.0
        %1985 = vmatprep.subr.mxu0 0.0
        %1986 = vmatpush1.msra.mxu0 0.0
        %1987 = vmatprep.subr.mxu0 0.0
        %1988 = vmatpush1.msra.mxu0 0.0
        %1989 = vmatprep.subr.mxu0 0.0
        %1990 = vmatpush1.msra.mxu0 0.0
        %1991 = vmatprep.subr.mxu0 0.0
        %1992 = vmatpush1.msra.mxu0 0.0
        %1993 = vmatprep.subr.mxu0 0.0
        %1994 = vmatpush1.msra.mxu0 0.0
        %1995 = vmatprep.subr.mxu0 0.0
        %1996 = vmatpush1.msra.mxu0 0.0
        %1997 = vmatprep.subr.mxu0 0.0
        %1998 = vmatpush1.msra.mxu0 0.0
        %1999 = vmatprep.subr.mxu0 0.0
        %2000 = vmatpush1.msra.mxu0 0.0
        %2001 = vmatprep.subr.mxu0 0.0
        %2002 = vmatpush1.msra.mxu0 0.0
        %2003 = vmatprep.subr.mxu0 0.0
        %2004 = vmatpush1.msra.mxu0 0.0
        %2005 = vmatprep.subr.mxu0 0.0
        %2006 = vmatpush1.msra.mxu0 0.0
        %2007 = vmatprep.subr.mxu0 0.0
        %2008 = vmatpush1.msra.mxu0 0.0
        %2009 = vmatprep.subr.mxu0 0.0
        %2010 = vmatpush1.msra.mxu0 0.0
        %2011 = vmatprep.subr.mxu0 0.0
        %2012 = vmatpush1.msra.mxu0 0.0
        %2013 = vmatprep.subr.mxu0 0.0
        %2014 = vmatpush1.msra.mxu0 0.0
        %2015 = vmatprep.subr.mxu0 0.0
        %2016 = vmatpush1.msra.mxu0 0.0
        %2017 = vmatprep.subr.mxu0 0.0
        %2018 = vmatpush1.msra.mxu0 0.0
        %2019 = vmatprep.subr.mxu0 0.0
        %2020 = vmatpush1.msra.mxu0 0.0
        %2021 = vmatprep.mubr.f32.mxu0 0.0
        %2022 = vmatmul.mubr.f32.gmra.mrb[0].mxu0 %v1955
        %v2023 = vpop.f32.mrb[0].mxu0
        %v2024 = vadd.f32 0.0, %v2023
        %v2025 = vpop.f32.mrb[0].mxu0
        %2026 = vdwg.mxu0
        %v2027 = vadd.f32 %v1787, %v2024
        %v2028 = vld [vmem:[%s13] sm:$0x1]
        %v2030 = vlaneseq
        %v2031 = vshrl.u32 %v2030, 7
        %v2032 = vsub.s32 0, %v2031
        %v2033 = vrot.slane %v2028, %v2032
        %v2035 = vadd.f32 %v2027, %v2033
        %v2036 = vadd.f32 %v978, %v2035
        %v2037 = vld [vmem:[%s15] sm:$0x1]
        %v2038 = vld [vmem:[%s17] sm:$0x1]
        %v2039 = vsel %vm992, %v2036, 0.0
        %2040 = vadd.xlane.f32.xlu0 %v2039
        %v2041 = vpop.xlane.xlu0 %2040
        %v2042 = vrcp.pop 32.0
        %v2043 = vmul.f32 %v2041, %v2042
        %v2044 = vsub.f32 %v2036, %v2043
        %v2045 = vmul.f32 %v2044, %v2044
        %v2046 = vsel %vm992, %v2045, 0.0
        %2047 = vadd.xlane.f32.xlu0 %v2046
        %v2048 = vpop.xlane.xlu0 %2047
        %v2049 = vmul.f32 %v2048, %v2042
        %v2050 = vadd.f32 %v2049, 1e-05
        %v2051 = vrsqrt.pop %v2050
        %v2052 = vmul.f32 %v2044, %v2051
        %v2054 = vlaneseq
        %v2055 = vshrl.u32 %v2054, 7
        %v2056 = vsub.s32 0, %v2055
        %v2057 = vrot.slane %v2037, %v2056
        %v2059 = vmul.f32 %v2052, %v2057
        %v2061 = vlaneseq
        %v2062 = vshrl.u32 %v2061, 7
        %v2063 = vsub.s32 0, %v2062
        %v2064 = vrot.slane %v2038, %v2063
        %v2066 = vadd.f32 %v2059, %v2064
        %v2067 = vld [vmem:[%s19] sm:$0xff]
        %v2068 = vld [vmem:[%s19 + $0x8] sm:$0xff]
        %v2069 = vld [vmem:[%s19 + $0x10] sm:$0xff]
        %v2070 = vld [vmem:[%s19 + $0x18] sm:$0xff]
        %v2071 = vld [vmem:[%s21] sm:$0x1]
        %v2073 = vlaneseq
        %v2074 = vshrl.u32 %v2073, 7
        %v2075 = vsub.s32 0, %v2074
        %v2076 = vrot.slane %v2071, %v2075
        %v2079 = vsel %vm992, %v2066, 0
        %2081 = vmatprep.subr.mxu0 0.0
        %2082 = vmatpush1.msra.mxu0 %v2067
        %2083 = vmatprep.subr.mxu0 0.0
        %2084 = vmatpush1.msra.mxu0 %v2068
        %2085 = vmatprep.subr.mxu0 0.0
        %2086 = vmatpush1.msra.mxu0 %v2069
        %2087 = vmatprep.subr.mxu0 0.0
        %2088 = vmatpush1.msra.mxu0 %v2070
        %2089 = vmatprep.subr.mxu0 0.0
        %2090 = vmatpush1.msra.mxu0 0.0
        %2091 = vmatprep.subr.mxu0 0.0
        %2092 = vmatpush1.msra.mxu0 0.0
        %2093 = vmatprep.subr.mxu0 0.0
        %2094 = vmatpush1.msra.mxu0 0.0
        %2095 = vmatprep.subr.mxu0 0.0
        %2096 = vmatpush1.msra.mxu0 0.0
        %2097 = vmatprep.subr.mxu0 0.0
        %2098 = vmatpush1.msra.mxu0 0.0
        %2099 = vmatprep.subr.mxu0 0.0
        %2100 = vmatpush1.msra.mxu0 0.0
        %2101 = vmatprep.subr.mxu0 0.0
        %2102 = vmatpush1.msra.mxu0 0.0
        %2103 = vmatprep.subr.mxu0 0.0
        %2104 = vmatpush1.msra.mxu0 0.0
        %2105 = vmatprep.subr.mxu0 0.0
        %2106 = vmatpush1.msra.mxu0 0.0
        %2107 = vmatprep.subr.mxu0 0.0
        %2108 = vmatpush1.msra.mxu0 0.0
        %2109 = vmatprep.subr.mxu0 0.0
        %2110 = vmatpush1.msra.mxu0 0.0
        %2111 = vmatprep.subr.mxu0 0.0
        %2112 = vmatpush1.msra.mxu0 0.0
        %2113 = vmatprep.subr.mxu0 0.0
        %2114 = vmatpush1.msra.mxu0 0.0
        %2115 = vmatprep.subr.mxu0 0.0
        %2116 = vmatpush1.msra.mxu0 0.0
        %2117 = vmatprep.subr.mxu0 0.0
        %2118 = vmatpush1.msra.mxu0 0.0
        %2119 = vmatprep.subr.mxu0 0.0
        %2120 = vmatpush1.msra.mxu0 0.0
        %2121 = vmatprep.subr.mxu0 0.0
        %2122 = vmatpush1.msra.mxu0 0.0
        %2123 = vmatprep.subr.mxu0 0.0
        %2124 = vmatpush1.msra.mxu0 0.0
        %2125 = vmatprep.subr.mxu0 0.0
        %2126 = vmatpush1.msra.mxu0 0.0
        %2127 = vmatprep.subr.mxu0 0.0
        %2128 = vmatpush1.msra.mxu0 0.0
        %2129 = vmatprep.subr.mxu0 0.0
        %2130 = vmatpush1.msra.mxu0 0.0
        %2131 = vmatprep.subr.mxu0 0.0
        %2132 = vmatpush1.msra.mxu0 0.0
        %2133 = vmatprep.subr.mxu0 0.0
        %2134 = vmatpush1.msra.mxu0 0.0
        %2135 = vmatprep.subr.mxu0 0.0
        %2136 = vmatpush1.msra.mxu0 0.0
        %2137 = vmatprep.subr.mxu0 0.0
        %2138 = vmatpush1.msra.mxu0 0.0
        %2139 = vmatprep.subr.mxu0 0.0
        %2140 = vmatpush1.msra.mxu0 0.0
        %2141 = vmatprep.subr.mxu0 0.0
        %2142 = vmatpush1.msra.mxu0 0.0
        %2143 = vmatprep.subr.mxu0 0.0
        %2144 = vmatpush1.msra.mxu0 0.0
        %2145 = vmatprep.mubr.f32.mxu0 0.0
        %2146 = vmatmul.mubr.f32.gmra.mrb[0].mxu0 %v2079
        %v2147 = vpop.f32.mrb[0].mxu0
        %v2148 = vadd.f32 %v2076, %v2147
        %v2149 = vpop.f32.mrb[0].mxu0
        %2150 = vdwg.mxu0
        %v2151 = vmax.f32 %v2148, 0.0
        %v2152 = vld [vmem:[%s23] sm:$0xff]
        %v2153 = vld [vmem:[%s23 + $0x8] sm:$0xff]
        %v2154 = vld [vmem:[%s23 + $0x10] sm:$0xff]
        %v2155 = vld [vmem:[%s23 + $0x18] sm:$0xff]
        %v2156 = vld [vmem:[%s23 + $0x20] sm:$0xff]
        %v2157 = vld [vmem:[%s23 + $0x28] sm:$0xff]
        %v2158 = vld [vmem:[%s23 + $0x30] sm:$0xff]
        %v2159 = vld [vmem:[%s23 + $0x38] sm:$0xff]
        %v2160 = vld [vmem:[%s25] sm:$0x1]
        %v2162 = vlaneseq
        %v2163 = vshrl.u32 %v2162, 7
        %v2164 = vsub.s32 0, %v2163
        %v2165 = vrot.slane %v2160, %v2164
        %vm2167 = vcmask 523264
        %v2169 = vsel %vm2167, %v2151, 0
        %2171 = vmatprep.subr.mxu0 0.0
        %2172 = vmatpush1.msra.mxu0 %v2152
        %2173 = vmatprep.subr.mxu0 0.0
        %2174 = vmatpush1.msra.mxu0 %v2153
        %2175 = vmatprep.subr.mxu0 0.0
        %2176 = vmatpush1.msra.mxu0 %v2154
        %2177 = vmatprep.subr.mxu0 0.0
        %2178 = vmatpush1.msra.mxu0 %v2155
        %2179 = vmatprep.subr.mxu0 0.0
        %2180 = vmatpush1.msra.mxu0 %v2156
        %2181 = vmatprep.subr.mxu0 0.0
        %2182 = vmatpush1.msra.mxu0 %v2157
        %2183 = vmatprep.subr.mxu0 0.0
        %2184 = vmatpush1.msra.mxu0 %v2158
        %2185 = vmatprep.subr.mxu0 0.0
        %2186 = vmatpush1.msra.mxu0 %v2159
        %2187 = vmatprep.subr.mxu0 0.0
        %2188 = vmatpush1.msra.mxu0 0.0
        %2189 = vmatprep.subr.mxu0 0.0
        %2190 = vmatpush1.msra.mxu0 0.0
        %2191 = vmatprep.subr.mxu0 0.0
        %2192 = vmatpush1.msra.mxu0 0.0
        %2193 = vmatprep.subr.mxu0 0.0
        %2194 = vmatpush1.msra.mxu0 0.0
        %2195 = vmatprep.subr.mxu0 0.0
        %2196 = vmatpush1.msra.mxu0 0.0
        %2197 = vmatprep.subr.mxu0 0.0
        %2198 = vmatpush1.msra.mxu0 0.0
        %2199 = vmatprep.subr.mxu0 0.0
        %2200 = vmatpush1.msra.mxu0 0.0
        %2201 = vmatprep.subr.mxu0 0.0
        %2202 = vmatpush1.msra.mxu0 0.0
        %2203 = vmatprep.subr.mxu0 0.0
        %2204 = vmatpush1.msra.mxu0 0.0
        %2205 = vmatprep.subr.mxu0 0.0
        %2206 = vmatpush1.msra.mxu0 0.0
        %2207 = vmatprep.subr.mxu0 0.0
        %2208 = vmatpush1.msra.mxu0 0.0
        %2209 = vmatprep.subr.mxu0 0.0
        %2210 = vmatpush1.msra.mxu0 0.0
        %2211 = vmatprep.subr.mxu0 0.0
        %2212 = vmatpush1.msra.mxu0 0.0
        %2213 = vmatprep.subr.mxu0 0.0
        %2214 = vmatpush1.msra.mxu0 0.0
        %2215 = vmatprep.subr.mxu0 0.0
        %2216 = vmatpush1.msra.mxu0 0.0
        %2217 = vmatprep.subr.mxu0 0.0
        %2218 = vmatpush1.msra.mxu0 0.0
        %2219 = vmatprep.subr.mxu0 0.0
        %2220 = vmatpush1.msra.mxu0 0.0
        %2221 = vmatprep.subr.mxu0 0.0
        %2222 = vmatpush1.msra.mxu0 0.0
        %2223 = vmatprep.subr.mxu0 0.0
        %2224 = vmatpush1.msra.mxu0 0.0
        %2225 = vmatprep.subr.mxu0 0.0
        %2226 = vmatpush1.msra.mxu0 0.0
        %2227 = vmatprep.subr.mxu0 0.0
        %2228 = vmatpush1.msra.mxu0 0.0
        %2229 = vmatprep.subr.mxu0 0.0
        %2230 = vmatpush1.msra.mxu0 0.0
        %2231 = vmatprep.subr.mxu0 0.0
        %2232 = vmatpush1.msra.mxu0 0.0
        %2233 = vmatprep.subr.mxu0 0.0
        %2234 = vmatpush1.msra.mxu0 0.0
        %2235 = vmatprep.mubr.f32.mxu0 0.0
        %2236 = vmatmul.mubr.f32.gmra.mrb[0].mxu0 %v2169
        %v2237 = vpop.f32.mrb[0].mxu0
        %v2238 = vadd.f32 %v2165, %v2237
        %v2239 = vpop.f32.mrb[0].mxu0
        %2240 = vdwg.mxu0
        %v2241 = vadd.f32 %v2066, %v2238
        %v2242 = vld [vmem:[%s27] sm:$0x1]
        %v2243 = vld [vmem:[%s29] sm:$0x1]
        %v2244 = vsel %vm992, %v2241, 0.0
        %2245 = vadd.xlane.f32.xlu0 %v2244
        %v2246 = vpop.xlane.xlu0 %2245
        %v2247 = vmul.f32 %v2246, %v2042
        %v2248 = vsub.f32 %v2241, %v2247
        %v2249 = vmul.f32 %v2248, %v2248
        %v2250 = vsel %vm992, %v2249, 0.0
        %2251 = vadd.xlane.f32.xlu0 %v2250
        %v2252 = vpop.xlane.xlu0 %2251
        %v2253 = vmul.f32 %v2252, %v2042
        %v2254 = vadd.f32 %v2253, 1e-05
        %v2255 = vrsqrt.pop %v2254
        %v2256 = vmul.f32 %v2248, %v2255
        %v2258 = vlaneseq
        %v2259 = vshrl.u32 %v2258, 7
        %v2260 = vsub.s32 0, %v2259
        %v2261 = vrot.slane %v2242, %v2260
        %v2263 = vmul.f32 %v2256, %v2261
        %v2265 = vlaneseq
        %v2266 = vshrl.u32 %v2265, 7
        %v2267 = vsub.s32 0, %v2266
        %v2268 = vrot.slane %v2243, %v2267
        %v2270 = vadd.f32 %v2263, %v2268
        %v2271 = vld [vmem:[%s31] sm:$0xff]
        %v2272 = vld [vmem:[%s31 + $0x8] sm:$0xff]
        %v2273 = vld [vmem:[%s31 + $0x10] sm:$0xff]
        %v2274 = vld [vmem:[%s31 + $0x18] sm:$0xff]
        %v2275 = vld [vmem:[%s33] sm:$0x1]
        %v2277 = vlaneseq
        %v2278 = vshrl.u32 %v2277, 7
        %v2279 = vsub.s32 0, %v2278
        %v2280 = vrot.slane %v2275, %v2279
        %v2283 = vsel %vm992, %v2270, 0
        %2285 = vmatprep.subr.mxu0 0.0
        %2286 = vmatpush1.msra.mxu0 %v2271
        %2287 = vmatprep.subr.mxu0 0.0
        %2288 = vmatpush1.msra.mxu0 %v2272
        %2289 = vmatprep.subr.mxu0 0.0
        %2290 = vmatpush1.msra.mxu0 %v2273
        %2291 = vmatprep.subr.mxu0 0.0
        %2292 = vmatpush1.msra.mxu0 %v2274
        %2293 = vmatprep.subr.mxu0 0.0
        %2294 = vmatpush1.msra.mxu0 0.0
        %2295 = vmatprep.subr.mxu0 0.0
        %2296 = vmatpush1.msra.mxu0 0.0
        %2297 = vmatprep.subr.mxu0 0.0
        %2298 = vmatpush1.msra.mxu0 0.0
        %2299 = vmatprep.subr.mxu0 0.0
        %2300 = vmatpush1.msra.mxu0 0.0
        %2301 = vmatprep.subr.mxu0 0.0
        %2302 = vmatpush1.msra.mxu0 0.0
        %2303 = vmatprep.subr.mxu0 0.0
        %2304 = vmatpush1.msra.mxu0 0.0
        %2305 = vmatprep.subr.mxu0 0.0
        %2306 = vmatpush1.msra.mxu0 0.0
        %2307 = vmatprep.subr.mxu0 0.0
        %2308 = vmatpush1.msra.mxu0 0.0
        %2309 = vmatprep.subr.mxu0 0.0
        %2310 = vmatpush1.msra.mxu0 0.0
        %2311 = vmatprep.subr.mxu0 0.0
        %2312 = vmatpush1.msra.mxu0 0.0
        %2313 = vmatprep.subr.mxu0 0.0
        %2314 = vmatpush1.msra.mxu0 0.0
        %2315 = vmatprep.subr.mxu0 0.0
        %2316 = vmatpush1.msra.mxu0 0.0
        %2317 = vmatprep.subr.mxu0 0.0
        %2318 = vmatpush1.msra.mxu0 0.0
        %2319 = vmatprep.subr.mxu0 0.0
        %2320 = vmatpush1.msra.mxu0 0.0
        %2321 = vmatprep.subr.mxu0 0.0
        %2322 = vmatpush1.msra.mxu0 0.0
        %2323 = vmatprep.subr.mxu0 0.0
        %2324 = vmatpush1.msra.mxu0 0.0
        %2325 = vmatprep.subr.mxu0 0.0
        %2326 = vmatpush1.msra.mxu0 0.0
        %2327 = vmatprep.subr.mxu0 0.0
        %2328 = vmatpush1.msra.mxu0 0.0
        %2329 = vmatprep.subr.mxu0 0.0
        %2330 = vmatpush1.msra.mxu0 0.0
        %2331 = vmatprep.subr.mxu0 0.0
        %2332 = vmatpush1.msra.mxu0 0.0
        %2333 = vmatprep.subr.mxu0 0.0
        %2334 = vmatpush1.msra.mxu0 0.0
        %2335 = vmatprep.subr.mxu0 0.0
        %2336 = vmatpush1.msra.mxu0 0.0
        %2337 = vmatprep.subr.mxu0 0.0
        %2338 = vmatpush1.msra.mxu0 0.0
        %2339 = vmatprep.subr.mxu0 0.0
        %2340 = vmatpush1.msra.mxu0 0.0
        %2341 = vmatprep.subr.mxu0 0.0
        %2342 = vmatpush1.msra.mxu0 0.0
        %2343 = vmatprep.subr.mxu0 0.0
        %2344 = vmatpush1.msra.mxu0 0.0
        %2345 = vmatprep.subr.mxu0 0.0
        %2346 = vmatpush1.msra.mxu0 0.0
        %2347 = vmatprep.subr.mxu0 0.0
        %2348 = vmatpush1.msra.mxu0 0.0
        %2349 = vmatprep.mubr.f32.mxu0 0.0
        %2350 = vmatmul.mubr.f32.gmra.mrb[0].mxu0 %v2283
        %v2351 = vpop.f32.mrb[0].mxu0
        %v2352 = vadd.f32 %v2280, %v2351
        %v2353 = vpop.f32.mrb[0].mxu0
        %2354 = vdwg.mxu0
        %v2355 = vld [vmem:[%s35] sm:$0xff]
        %v2356 = vld [vmem:[%s35 + $0x8] sm:$0xff]
        %v2357 = vld [vmem:[%s35 + $0x10] sm:$0xff]
        %v2358 = vld [vmem:[%s35 + $0x18] sm:$0xff]
        %2360 = vrot.lane.b32.xlu0 %v2352, 96
        %v2361 = vpop.permute.xlu0 %2360
        %v2362 = vsel %vm1073, %v2352, 0
        %v2364 = vsel %vm1073, %v2361, 0
        %2366 = vmatprep.subr.mxu0 0.0
        %2367 = vmatpush1.xpose.msra.mxu0 %v2364
        %2368 = vmatprep.subr.mxu0 0.0
        %2369 = vmatpush1.xpose.msra.mxu0 0.0
        %2370 = vmatprep.subr.mxu0 0.0
        %2371 = vmatpush1.xpose.msra.mxu0 0.0
        %2372 = vmatprep.subr.mxu0 0.0
        %2373 = vmatpush1.xpose.msra.mxu0 0.0
        %2374 = vmatprep.subr.mxu0 0.0
        %2375 = vmatpush1.xpose.msra.mxu0 0.0
        %2376 = vmatprep.subr.mxu0 0.0
        %2377 = vmatpush1.xpose.msra.mxu0 0.0
        %2378 = vmatprep.subr.mxu0 0.0
        %2379 = vmatpush1.xpose.msra.mxu0 0.0
        %2380 = vmatprep.subr.mxu0 0.0
        %2381 = vmatpush1.xpose.msra.mxu0 0.0
        %2382 = vmatprep.subr.mxu0 0.0
        %2383 = vmatpush1.xpose.msra.mxu0 0.0
        %2384 = vmatprep.subr.mxu0 0.0
        %2385 = vmatpush1.xpose.msra.mxu0 0.0
        %2386 = vmatprep.subr.mxu0 0.0
        %2387 = vmatpush1.xpose.msra.mxu0 0.0
        %2388 = vmatprep.subr.mxu0 0.0
        %2389 = vmatpush1.xpose.msra.mxu0 0.0
        %2390 = vmatprep.subr.mxu0 0.0
        %2391 = vmatpush1.xpose.msra.mxu0 0.0
        %2392 = vmatprep.subr.mxu0 0.0
        %2393 = vmatpush1.xpose.msra.mxu0 0.0
        %2394 = vmatprep.subr.mxu0 0.0
        %2395 = vmatpush1.xpose.msra.mxu0 0.0
        %2396 = vmatprep.subr.mxu0 0.0
        %2397 = vmatpush1.xpose.msra.mxu0 0.0
        %2398 = vmatprep.subr.mxu0 0.0
        %2399 = vmatpush1.xpose.msra.mxu0 0.0
        %2400 = vmatprep.subr.mxu0 0.0
        %2401 = vmatpush1.xpose.msra.mxu0 0.0
        %2402 = vmatprep.subr.mxu0 0.0
        %2403 = vmatpush1.xpose.msra.mxu0 0.0
        %2404 = vmatprep.subr.mxu0 0.0
        %2405 = vmatpush1.xpose.msra.mxu0 0.0
        %2406 = vmatprep.subr.mxu0 0.0
        %2407 = vmatpush1.xpose.msra.mxu0 0.0
        %2408 = vmatprep.subr.mxu0 0.0
        %2409 = vmatpush1.xpose.msra.mxu0 0.0
        %2410 = vmatprep.subr.mxu0 0.0
        %2411 = vmatpush1.xpose.msra.mxu0 0.0
        %2412 = vmatprep.subr.mxu0 0.0
        %2413 = vmatpush1.xpose.msra.mxu0 0.0
        %2414 = vmatprep.subr.mxu0 0.0
        %2415 = vmatpush1.xpose.msra.mxu0 0.0
        %2416 = vmatprep.subr.mxu0 0.0
        %2417 = vmatpush1.xpose.msra.mxu0 0.0
        %2418 = vmatprep.subr.mxu0 0.0
        %2419 = vmatpush1.xpose.msra.mxu0 0.0
        %2420 = vmatprep.subr.mxu0 0.0
        %2421 = vmatpush1.xpose.msra.mxu0 0.0
        %2422 = vmatprep.subr.mxu0 0.0
        %2423 = vmatpush1.xpose.msra.mxu0 0.0
        %2424 = vmatprep.subr.mxu0 0.0
        %2425 = vmatpush1.xpose.msra.mxu0 0.0
        %2426 = vmatprep.subr.mxu0 0.0
        %2427 = vmatpush1.xpose.msra.mxu0 0.0
        %2428 = vmatprep.subr.mxu0 0.0
        %2429 = vmatpush1.xpose.msra.mxu0 0.0
        %2430 = vmatprep.mubr.f32.mxu0 0.0
        %2431 = vmatmul.mubr.f32.gmra.mrb[0].mxu0 %v2362
        %v2432 = vpop.f32.mrb[0].mxu0
        %v2433 = vadd.f32 0.0, %v2432
        %v2434 = vpop.f32.mrb[0].mxu0
        %2435 = vdwg.mxu0
        %v2436 = vmul.f32 %v2433, 0.35355338
        %v2437 = vsel %vm1073, %v2436, -inf
        %2438 = vmax.xlane.f32.xlu0 %v2437
        %v2439 = vpop.xlane.xlu0 %2438
        %v2440 = vsub.f32 %v2436, %v2439
        %v2441 = vmul.f32 %v2440, 1.442695
        %v2442 = vpow.pop %v2441
        %v2443 = vsel %vm1073, %v2442, 0.0
        %2444 = vadd.xlane.f32.xlu0 %v2443
        %v2445 = vpop.xlane.xlu0 %2444
        %v2446 = vrcp.pop %v2445
        %v2447 = vmul.f32 %v2442, %v2446
        %2448 = vrot.lane.b32.xlu0 %v2352, 64
        %v2449 = vpop.permute.xlu0 %2448
        %v2452 = vsel %vm1073, %v2447, 0
        %2454 = vmatprep.subr.mxu0 0.0
        %2455 = vmatpush1.msra.mxu0 %v2449
        %2456 = vmatprep.subr.mxu0 0.0
        %2457 = vmatpush1.msra.mxu0 0.0
        %2458 = vmatprep.subr.mxu0 0.0
        %2459 = vmatpush1.msra.mxu0 0.0
        %2460 = vmatprep.subr.mxu0 0.0
        %2461 = vmatpush1.msra.mxu0 0.0
        %2462 = vmatprep.subr.mxu0 0.0
        %2463 = vmatpush1.msra.mxu0 0.0
        %2464 = vmatprep.subr.mxu0 0.0
        %2465 = vmatpush1.msra.mxu0 0.0
        %2466 = vmatprep.subr.mxu0 0.0
        %2467 = vmatpush1.msra.mxu0 0.0
        %2468 = vmatprep.subr.mxu0 0.0
        %2469 = vmatpush1.msra.mxu0 0.0
        %2470 = vmatprep.subr.mxu0 0.0
        %2471 = vmatpush1.msra.mxu0 0.0
        %2472 = vmatprep.subr.mxu0 0.0
        %2473 = vmatpush1.msra.mxu0 0.0
        %2474 = vmatprep.subr.mxu0 0.0
        %2475 = vmatpush1.msra.mxu0 0.0
        %2476 = vmatprep.subr.mxu0 0.0
        %2477 = vmatpush1.msra.mxu0 0.0
        %2478 = vmatprep.subr.mxu0 0.0
        %2479 = vmatpush1.msra.mxu0 0.0
        %2480 = vmatprep.subr.mxu0 0.0
        %2481 = vmatpush1.msra.mxu0 0.0
        %2482 = vmatprep.subr.mxu0 0.0
        %2483 = vmatpush1.msra.mxu0 0.0
        %2484 = vmatprep.subr.mxu0 0.0
        %2485 = vmatpush1.msra.mxu0 0.0
        %2486 = vmatprep.subr.mxu0 0.0
        %2487 = vmatpush1.msra.mxu0 0.0
        %2488 = vmatprep.subr.mxu0 0.0
        %2489 = vmatpush1.msra.mxu0 0.0
        %2490 = vmatprep.subr.mxu0 0.0
        %2491 = vmatpush1.msra.mxu0 0.0
        %2492 = vmatprep.subr.mxu0 0.0
        %2493 = vmatpush1.msra.mxu0 0.0
        %2494 = vmatprep.subr.mxu0 0.0
        %2495 = vmatpush1.msra.mxu0 0.0
        %2496 = vmatprep.subr.mxu0 0.0
        %2497 = vmatpush1.msra.mxu0 0.0
        %2498 = vmatprep.subr.mxu0 0.0
        %2499 = vmatpush1.msra.mxu0 0.0
        %2500 = vmatprep.subr.mxu0 0.0
        %2501 = vmatpush1.msra.mxu0 0.0
        %2502 = vmatprep.subr.mxu0 0.0
        %2503 = vmatpush1.msra.mxu0 0.0
        %2504 = vmatprep.subr.mxu0 0.0
        %2505 = vmatpush1.msra.mxu0 0.0
        %2506 = vmatprep.subr.mxu0 0.0
        %2507 = vmatpush1.msra.mxu0 0.0
        %2508 = vmatprep.subr.mxu0 0.0
        %2509 = vmatpush1.msra.mxu0 0.0
        %2510 = vmatprep.subr.mxu0 0.0
        %2511 = vmatpush1.msra.mxu0 0.0
        %2512 = vmatprep.subr.mxu0 0.0
        %2513 = vmatpush1.msra.mxu0 0.0
        %2514 = vmatprep.subr.mxu0 0.0
        %2515 = vmatpush1.msra.mxu0 0.0
        %2516 = vmatprep.subr.mxu0 0.0
        %2517 = vmatpush1.msra.mxu0 0.0
        %2518 = vmatprep.mubr.f32.mxu0 0.0
        %2519 = vmatmul.mubr.f32.gmra.mrb[0].mxu0 %v2452
        %v2520 = vpop.f32.mrb[0].mxu0
        %v2521 = vadd.f32 0.0, %v2520
        %v2522 = vpop.f32.mrb[0].mxu0
        %2523 = vdwg.mxu0
        %2524 = vrot.lane.b32.xlu0 %v2352, 120
        %v2525 = vpop.permute.xlu0 %2524
        %2526 = vrot.lane.b32.xlu0 %v2352, 88
        %v2527 = vpop.permute.xlu0 %2526
        %v2528 = vsel %vm1073, %v2525, 0
        %v2530 = vsel %vm1073, %v2527, 0
        %2532 = vmatprep.subr.mxu0 0.0
        %2533 = vmatpush1.xpose.msra.mxu0 %v2530
        %2534 = vmatprep.subr.mxu0 0.0
        %2535 = vmatpush1.xpose.msra.mxu0 0.0
        %2536 = vmatprep.subr.mxu0 0.0
        %2537 = vmatpush1.xpose.msra.mxu0 0.0
        %2538 = vmatprep.subr.mxu0 0.0
        %2539 = vmatpush1.xpose.msra.mxu0 0.0
        %2540 = vmatprep.subr.mxu0 0.0
        %2541 = vmatpush1.xpose.msra.mxu0 0.0
        %2542 = vmatprep.subr.mxu0 0.0
        %2543 = vmatpush1.xpose.msra.mxu0 0.0
        %2544 = vmatprep.subr.mxu0 0.0
        %2545 = vmatpush1.xpose.msra.mxu0 0.0
        %2546 = vmatprep.subr.mxu0 0.0
        %2547 = vmatpush1.xpose.msra.mxu0 0.0
        %2548 = vmatprep.subr.mxu0 0.0
        %2549 = vmatpush1.xpose.msra.mxu0 0.0
        %2550 = vmatprep.subr.mxu0 0.0
        %2551 = vmatpush1.xpose.msra.mxu0 0.0
        %2552 = vmatprep.subr.mxu0 0.0
        %2553 = vmatpush1.xpose.msra.mxu0 0.0
        %2554 = vmatprep.subr.mxu0 0.0
        %2555 = vmatpush1.xpose.msra.mxu0 0.0
        %2556 = vmatprep.subr.mxu0 0.0
        %2557 = vmatpush1.xpose.msra.mxu0 0.0
        %2558 = vmatprep.subr.mxu0 0.0
        %2559 = vmatpush1.xpose.msra.mxu0 0.0
        %2560 = vmatprep.subr.mxu0 0.0
        %2561 = vmatpush1.xpose.msra.mxu0 0.0
        %2562 = vmatprep.subr.mxu0 0.0
        %2563 = vmatpush1.xpose.msra.mxu0 0.0
        %2564 = vmatprep.subr.mxu0 0.0
        %2565 = vmatpush1.xpose.msra.mxu0 0.0
        %2566 = vmatprep.subr.mxu0 0.0
        %2567 = vmatpush1.xpose.msra.mxu0 0.0
        %2568 = vmatprep.subr.mxu0 0.0
        %2569 = vmatpush1.xpose.msra.mxu0 0.0
        %2570 = vmatprep.subr.mxu0 0.0
        %2571 = vmatpush1.xpose.msra.mxu0 0.0
        %2572 = vmatprep.subr.mxu0 0.0
        %2573 = vmatpush1.xpose.msra.mxu0 0.0
        %2574 = vmatprep.subr.mxu0 0.0
        %2575 = vmatpush1.xpose.msra.mxu0 0.0
        %2576 = vmatprep.subr.mxu0 0.0
        %2577 = vmatpush1.xpose.msra.mxu0 0.0
        %2578 = vmatprep.subr.mxu0 0.0
        %2579 = vmatpush1.xpose.msra.mxu0 0.0
        %2580 = vmatprep.subr.mxu0 0.0
        %2581 = vmatpush1.xpose.msra.mxu0 0.0
        %2582 = vmatprep.subr.mxu0 0.0
        %2583 = vmatpush1.xpose.msra.mxu0 0.0
        %2584 = vmatprep.subr.mxu0 0.0
        %2585 = vmatpush1.xpose.msra.mxu0 0.0
        %2586 = vmatprep.subr.mxu0 0.0
        %2587 = vmatpush1.xpose.msra.mxu0 0.0
        %2588 = vmatprep.subr.mxu0 0.0
        %2589 = vmatpush1.xpose.msra.mxu0 0.0
        %2590 = vmatprep.subr.mxu0 0.0
        %2591 = vmatpush1.xpose.msra.mxu0 0.0
        %2592 = vmatprep.subr.mxu0 0.0
        %2593 = vmatpush1.xpose.msra.mxu0 0.0
        %2594 = vmatprep.subr.mxu0 0.0
        %2595 = vmatpush1.xpose.msra.mxu0 0.0
        %2596 = vmatprep.mubr.f32.mxu0 0.0
        %2597 = vmatmul.mubr.f32.gmra.mrb[0].mxu0 %v2528
        %v2598 = vpop.f32.mrb[0].mxu0
        %v2599 = vadd.f32 0.0, %v2598
        %v2600 = vpop.f32.mrb[0].mxu0
        %2601 = vdwg.mxu0
        %v2602 = vmul.f32 %v2599, 0.35355338
        %v2603 = vsel %vm1073, %v2602, -inf
        %2604 = vmax.xlane.f32.xlu0 %v2603
        %v2605 = vpop.xlane.xlu0 %2604
        %v2606 = vsub.f32 %v2602, %v2605
        %v2607 = vmul.f32 %v2606, 1.442695
        %v2608 = vpow.pop %v2607
        %v2609 = vsel %vm1073, %v2608, 0.0
        %2610 = vadd.xlane.f32.xlu0 %v2609
        %v2611 = vpop.xlane.xlu0 %2610
        %v2612 = vrcp.pop %v2611
        %v2613 = vmul.f32 %v2608, %v2612
        %2614 = vrot.lane.b32.xlu0 %v2352, 56
        %v2615 = vpop.permute.xlu0 %2614
        %v2618 = vsel %vm1073, %v2613, 0
        %2620 = vmatprep.subr.mxu0 0.0
        %2621 = vmatpush1.msra.mxu0 %v2615
        %2622 = vmatprep.subr.mxu0 0.0
        %2623 = vmatpush1.msra.mxu0 0.0
        %2624 = vmatprep.subr.mxu0 0.0
        %2625 = vmatpush1.msra.mxu0 0.0
        %2626 = vmatprep.subr.mxu0 0.0
        %2627 = vmatpush1.msra.mxu0 0.0
        %2628 = vmatprep.subr.mxu0 0.0
        %2629 = vmatpush1.msra.mxu0 0.0
        %2630 = vmatprep.subr.mxu0 0.0
        %2631 = vmatpush1.msra.mxu0 0.0
        %2632 = vmatprep.subr.mxu0 0.0
        %2633 = vmatpush1.msra.mxu0 0.0
        %2634 = vmatprep.subr.mxu0 0.0
        %2635 = vmatpush1.msra.mxu0 0.0
        %2636 = vmatprep.subr.mxu0 0.0
        %2637 = vmatpush1.msra.mxu0 0.0
        %2638 = vmatprep.subr.mxu0 0.0
        %2639 = vmatpush1.msra.mxu0 0.0
        %2640 = vmatprep.subr.mxu0 0.0
        %2641 = vmatpush1.msra.mxu0 0.0
        %2642 = vmatprep.subr.mxu0 0.0
        %2643 = vmatpush1.msra.mxu0 0.0
        %2644 = vmatprep.subr.mxu0 0.0
        %2645 = vmatpush1.msra.mxu0 0.0
        %2646 = vmatprep.subr.mxu0 0.0
        %2647 = vmatpush1.msra.mxu0 0.0
        %2648 = vmatprep.subr.mxu0 0.0
        %2649 = vmatpush1.msra.mxu0 0.0
        %2650 = vmatprep.subr.mxu0 0.0
        %2651 = vmatpush1.msra.mxu0 0.0
        %2652 = vmatprep.subr.mxu0 0.0
        %2653 = vmatpush1.msra.mxu0 0.0
        %2654 = vmatprep.subr.mxu0 0.0
        %2655 = vmatpush1.msra.mxu0 0.0
        %2656 = vmatprep.subr.mxu0 0.0
        %2657 = vmatpush1.msra.mxu0 0.0
        %2658 = vmatprep.subr.mxu0 0.0
        %2659 = vmatpush1.msra.mxu0 0.0
        %2660 = vmatprep.subr.mxu0 0.0
        %2661 = vmatpush1.msra.mxu0 0.0
        %2662 = vmatprep.subr.mxu0 0.0
        %2663 = vmatpush1.msra.mxu0 0.0
        %2664 = vmatprep.subr.mxu0 0.0
        %2665 = vmatpush1.msra.mxu0 0.0
        %2666 = vmatprep.subr.mxu0 0.0
        %2667 = vmatpush1.msra.mxu0 0.0
        %2668 = vmatprep.subr.mxu0 0.0
        %2669 = vmatpush1.msra.mxu0 0.0
        %2670 = vmatprep.subr.mxu0 0.0
        %2671 = vmatpush1.msra.mxu0 0.0
        %2672 = vmatprep.subr.mxu0 0.0
        %2673 = vmatpush1.msra.mxu0 0.0
        %2674 = vmatprep.subr.mxu0 0.0
        %2675 = vmatpush1.msra.mxu0 0.0
        %2676 = vmatprep.subr.mxu0 0.0
        %2677 = vmatpush1.msra.mxu0 0.0
        %2678 = vmatprep.subr.mxu0 0.0
        %2679 = vmatpush1.msra.mxu0 0.0
        %2680 = vmatprep.subr.mxu0 0.0
        %2681 = vmatpush1.msra.mxu0 0.0
        %2682 = vmatprep.subr.mxu0 0.0
        %2683 = vmatpush1.msra.mxu0 0.0
        %2684 = vmatprep.mubr.f32.mxu0 0.0
        %2685 = vmatmul.mubr.f32.gmra.mrb[0].mxu0 %v2618
        %v2686 = vpop.f32.mrb[0].mxu0
        %v2687 = vadd.f32 0.0, %v2686
        %v2688 = vpop.f32.mrb[0].mxu0
        %2689 = vdwg.mxu0
        %v2691 = vsel %vm1073, %v2687, 0
        %2693 = vmatprep.subr.mxu0 0.0
        %2694 = vmatpush1.msra.mxu0 %v2356
        %2695 = vmatprep.subr.mxu0 0.0
        %2696 = vmatpush1.msra.mxu0 0.0
        %2697 = vmatprep.subr.mxu0 0.0
        %2698 = vmatpush1.msra.mxu0 0.0
        %2699 = vmatprep.subr.mxu0 0.0
        %2700 = vmatpush1.msra.mxu0 0.0
        %2701 = vmatprep.subr.mxu0 0.0
        %2702 = vmatpush1.msra.mxu0 0.0
        %2703 = vmatprep.subr.mxu0 0.0
        %2704 = vmatpush1.msra.mxu0 0.0
        %2705 = vmatprep.subr.mxu0 0.0
        %2706 = vmatpush1.msra.mxu0 0.0
        %2707 = vmatprep.subr.mxu0 0.0
        %2708 = vmatpush1.msra.mxu0 0.0
        %2709 = vmatprep.subr.mxu0 0.0
        %2710 = vmatpush1.msra.mxu0 0.0
        %2711 = vmatprep.subr.mxu0 0.0
        %2712 = vmatpush1.msra.mxu0 0.0
        %2713 = vmatprep.subr.mxu0 0.0
        %2714 = vmatpush1.msra.mxu0 0.0
        %2715 = vmatprep.subr.mxu0 0.0
        %2716 = vmatpush1.msra.mxu0 0.0
        %2717 = vmatprep.subr.mxu0 0.0
        %2718 = vmatpush1.msra.mxu0 0.0
        %2719 = vmatprep.subr.mxu0 0.0
        %2720 = vmatpush1.msra.mxu0 0.0
        %2721 = vmatprep.subr.mxu0 0.0
        %2722 = vmatpush1.msra.mxu0 0.0
        %2723 = vmatprep.subr.mxu0 0.0
        %2724 = vmatpush1.msra.mxu0 0.0
        %2725 = vmatprep.subr.mxu0 0.0
        %2726 = vmatpush1.msra.mxu0 0.0
        %2727 = vmatprep.subr.mxu0 0.0
        %2728 = vmatpush1.msra.mxu0 0.0
        %2729 = vmatprep.subr.mxu0 0.0
        %2730 = vmatpush1.msra.mxu0 0.0
        %2731 = vmatprep.subr.mxu0 0.0
        %2732 = vmatpush1.msra.mxu0 0.0
        %2733 = vmatprep.subr.mxu0 0.0
        %2734 = vmatpush1.msra.mxu0 0.0
        %2735 = vmatprep.subr.mxu0 0.0
        %2736 = vmatpush1.msra.mxu0 0.0
        %2737 = vmatprep.subr.mxu0 0.0
        %2738 = vmatpush1.msra.mxu0 0.0
        %2739 = vmatprep.subr.mxu0 0.0
        %2740 = vmatpush1.msra.mxu0 0.0
        %2741 = vmatprep.subr.mxu0 0.0
        %2742 = vmatpush1.msra.mxu0 0.0
        %2743 = vmatprep.subr.mxu0 0.0
        %2744 = vmatpush1.msra.mxu0 0.0
        %2745 = vmatprep.subr.mxu0 0.0
        %2746 = vmatpush1.msra.mxu0 0.0
        %2747 = vmatprep.subr.mxu0 0.0
        %2748 = vmatpush1.msra.mxu0 0.0
        %2749 = vmatprep.subr.mxu0 0.0
        %2750 = vmatpush1.msra.mxu0 0.0
        %2751 = vmatprep.subr.mxu0 0.0
        %2752 = vmatpush1.msra.mxu0 0.0
        %2753 = vmatprep.subr.mxu0 0.0
        %2754 = vmatpush1.msra.mxu0 0.0
        %2755 = vmatprep.subr.mxu0 0.0
        %2756 = vmatpush1.msra.mxu0 0.0
        %2757 = vmatprep.mubr.f32.mxu0 0.0
        %2758 = vmatmul.mubr.f32.gmra.mrb[0].mxu0 %v2691
        %v2759 = vpop.f32.mrb[0].mxu0
        %v2760 = vadd.f32 0.0, %v2759
        %v2761 = vpop.f32.mrb[0].mxu0
        %2762 = vdwg.mxu0
        %v2764 = vsel %vm1073, %v2521, 0
        %2766 = vmatprep.subr.mxu0 0.0
        %2767 = vmatpush1.msra.mxu0 %v2355
        %2768 = vmatprep.subr.mxu0 0.0
        %2769 = vmatpush1.msra.mxu0 0.0
        %2770 = vmatprep.subr.mxu0 0.0
        %2771 = vmatpush1.msra.mxu0 0.0
        %2772 = vmatprep.subr.mxu0 0.0
        %2773 = vmatpush1.msra.mxu0 0.0
        %2774 = vmatprep.subr.mxu0 0.0
        %2775 = vmatpush1.msra.mxu0 0.0
        %2776 = vmatprep.subr.mxu0 0.0
        %2777 = vmatpush1.msra.mxu0 0.0
        %2778 = vmatprep.subr.mxu0 0.0
        %2779 = vmatpush1.msra.mxu0 0.0
        %2780 = vmatprep.subr.mxu0 0.0
        %2781 = vmatpush1.msra.mxu0 0.0
        %2782 = vmatprep.subr.mxu0 0.0
        %2783 = vmatpush1.msra.mxu0 0.0
        %2784 = vmatprep.subr.mxu0 0.0
        %2785 = vmatpush1.msra.mxu0 0.0
        %2786 = vmatprep.subr.mxu0 0.0
        %2787 = vmatpush1.msra.mxu0 0.0
        %2788 = vmatprep.subr.mxu0 0.0
        %2789 = vmatpush1.msra.mxu0 0.0
        %2790 = vmatprep.subr.mxu0 0.0
        %2791 = vmatpush1.msra.mxu0 0.0
        %2792 = vmatprep.subr.mxu0 0.0
        %2793 = vmatpush1.msra.mxu0 0.0
        %2794 = vmatprep.subr.mxu0 0.0
        %2795 = vmatpush1.msra.mxu0 0.0
        %2796 = vmatprep.subr.mxu0 0.0
        %2797 = vmatpush1.msra.mxu0 0.0
        %2798 = vmatprep.subr.mxu0 0.0
        %2799 = vmatpush1.msra.mxu0 0.0
        %2800 = vmatprep.subr.mxu0 0.0
        %2801 = vmatpush1.msra.mxu0 0.0
        %2802 = vmatprep.subr.mxu0 0.0
        %2803 = vmatpush1.msra.mxu0 0.0
        %2804 = vmatprep.subr.mxu0 0.0
        %2805 = vmatpush1.msra.mxu0 0.0
        %2806 = vmatprep.subr.mxu0 0.0
        %2807 = vmatpush1.msra.mxu0 0.0
        %2808 = vmatprep.subr.mxu0 0.0
        %2809 = vmatpush1.msra.mxu0 0.0
        %2810 = vmatprep.subr.mxu0 0.0
        %2811 = vmatpush1.msra.mxu0 0.0
        %2812 = vmatprep.subr.mxu0 0.0
        %2813 = vmatpush1.msra.mxu0 0.0
        %2814 = vmatprep.subr.mxu0 0.0
        %2815 = vmatpush1.msra.mxu0 0.0
        %2816 = vmatprep.subr.mxu0 0.0
        %2817 = vmatpush1.msra.mxu0 0.0
        %2818 = vmatprep.subr.mxu0 0.0
        %2819 = vmatpush1.msra.mxu0 0.0
        %2820 = vmatprep.subr.mxu0 0.0
        %2821 = vmatpush1.msra.mxu0 0.0
        %2822 = vmatprep.subr.mxu0 0.0
        %2823 = vmatpush1.msra.mxu0 0.0
        %2824 = vmatprep.subr.mxu0 0.0
        %2825 = vmatpush1.msra.mxu0 0.0
        %2826 = vmatprep.subr.mxu0 0.0
        %2827 = vmatpush1.msra.mxu0 0.0
        %2828 = vmatprep.subr.mxu0 0.0
        %2829 = vmatpush1.msra.mxu0 0.0
        %2830 = vmatprep.mubr.f32.mxu0 0.0
        %2831 = vmatmul.mubr.f32.gmra.mrb[0].mxu0 %v2764
        %v2832 = vpop.f32.mrb[0].mxu0
        %v2833 = vadd.f32 %v2760, %v2832
        %v2834 = vpop.f32.mrb[0].mxu0
        %2835 = vdwg.mxu0
        %2836 = vrot.lane.b32.xlu0 %v2352, 112
        %v2837 = vpop.permute.xlu0 %2836
        %2838 = vrot.lane.b32.xlu0 %v2352, 80
        %v2839 = vpop.permute.xlu0 %2838
        %v2840 = vsel %vm1073, %v2837, 0
        %v2842 = vsel %vm1073, %v2839, 0
        %2844 = vmatprep.subr.mxu0 0.0
        %2845 = vmatpush1.xpose.msra.mxu0 %v2842
        %2846 = vmatprep.subr.mxu0 0.0
        %2847 = vmatpush1.xpose.msra.mxu0 0.0
        %2848 = vmatprep.subr.mxu0 0.0
        %2849 = vmatpush1.xpose.msra.mxu0 0.0
        %2850 = vmatprep.subr.mxu0 0.0
        %2851 = vmatpush1.xpose.msra.mxu0 0.0
        %2852 = vmatprep.subr.mxu0 0.0
        %2853 = vmatpush1.xpose.msra.mxu0 0.0
        %2854 = vmatprep.subr.mxu0 0.0
        %2855 = vmatpush1.xpose.msra.mxu0 0.0
        %2856 = vmatprep.subr.mxu0 0.0
        %2857 = vmatpush1.xpose.msra.mxu0 0.0
        %2858 = vmatprep.subr.mxu0 0.0
        %2859 = vmatpush1.xpose.msra.mxu0 0.0
        %2860 = vmatprep.subr.mxu0 0.0
        %2861 = vmatpush1.xpose.msra.mxu0 0.0
        %2862 = vmatprep.subr.mxu0 0.0
        %2863 = vmatpush1.xpose.msra.mxu0 0.0
        %2864 = vmatprep.subr.mxu0 0.0
        %2865 = vmatpush1.xpose.msra.mxu0 0.0
        %2866 = vmatprep.subr.mxu0 0.0
        %2867 = vmatpush1.xpose.msra.mxu0 0.0
        %2868 = vmatprep.subr.mxu0 0.0
        %2869 = vmatpush1.xpose.msra.mxu0 0.0
        %2870 = vmatprep.subr.mxu0 0.0
        %2871 = vmatpush1.xpose.msra.mxu0 0.0
        %2872 = vmatprep.subr.mxu0 0.0
        %2873 = vmatpush1.xpose.msra.mxu0 0.0
        %2874 = vmatprep.subr.mxu0 0.0
        %2875 = vmatpush1.xpose.msra.mxu0 0.0
        %2876 = vmatprep.subr.mxu0 0.0
        %2877 = vmatpush1.xpose.msra.mxu0 0.0
        %2878 = vmatprep.subr.mxu0 0.0
        %2879 = vmatpush1.xpose.msra.mxu0 0.0
        %2880 = vmatprep.subr.mxu0 0.0
        %2881 = vmatpush1.xpose.msra.mxu0 0.0
        %2882 = vmatprep.subr.mxu0 0.0
        %2883 = vmatpush1.xpose.msra.mxu0 0.0
        %2884 = vmatprep.subr.mxu0 0.0
        %2885 = vmatpush1.xpose.msra.mxu0 0.0
        %2886 = vmatprep.subr.mxu0 0.0
        %2887 = vmatpush1.xpose.msra.mxu0 0.0
        %2888 = vmatprep.subr.mxu0 0.0
        %2889 = vmatpush1.xpose.msra.mxu0 0.0
        %2890 = vmatprep.subr.mxu0 0.0
        %2891 = vmatpush1.xpose.msra.mxu0 0.0
        %2892 = vmatprep.subr.mxu0 0.0
        %2893 = vmatpush1.xpose.msra.mxu0 0.0
        %2894 = vmatprep.subr.mxu0 0.0
        %2895 = vmatpush1.xpose.msra.mxu0 0.0
        %2896 = vmatprep.subr.mxu0 0.0
        %2897 = vmatpush1.xpose.msra.mxu0 0.0
        %2898 = vmatprep.subr.mxu0 0.0
        %2899 = vmatpush1.xpose.msra.mxu0 0.0
        %2900 = vmatprep.subr.mxu0 0.0
        %2901 = vmatpush1.xpose.msra.mxu0 0.0
        %2902 = vmatprep.subr.mxu0 0.0
        %2903 = vmatpush1.xpose.msra.mxu0 0.0
        %2904 = vmatprep.subr.mxu0 0.0
        %2905 = vmatpush1.xpose.msra.mxu0 0.0
        %2906 = vmatprep.subr.mxu0 0.0
        %2907 = vmatpush1.xpose.msra.mxu0 0.0
        %2908 = vmatprep.mubr.f32.mxu0 0.0
        %2909 = vmatmul.mubr.f32.gmra.mrb[0].mxu0 %v2840
        %v2910 = vpop.f32.mrb[0].mxu0
        %v2911 = vadd.f32 0.0, %v2910
        %v2912 = vpop.f32.mrb[0].mxu0
        %2913 = vdwg.mxu0
        %v2914 = vmul.f32 %v2911, 0.35355338
        %v2915 = vsel %vm1073, %v2914, -inf
        %2916 = vmax.xlane.f32.xlu0 %v2915
        %v2917 = vpop.xlane.xlu0 %2916
        %v2918 = vsub.f32 %v2914, %v2917
        %v2919 = vmul.f32 %v2918, 1.442695
        %v2920 = vpow.pop %v2919
        %v2921 = vsel %vm1073, %v2920, 0.0
        %2922 = vadd.xlane.f32.xlu0 %v2921
        %v2923 = vpop.xlane.xlu0 %2922
        %v2924 = vrcp.pop %v2923
        %v2925 = vmul.f32 %v2920, %v2924
        %2926 = vrot.lane.b32.xlu0 %v2352, 48
        %v2927 = vpop.permute.xlu0 %2926
        %v2930 = vsel %vm1073, %v2925, 0
        %2932 = vmatprep.subr.mxu0 0.0
        %2933 = vmatpush1.msra.mxu0 %v2927
        %2934 = vmatprep.subr.mxu0 0.0
        %2935 = vmatpush1.msra.mxu0 0.0
        %2936 = vmatprep.subr.mxu0 0.0
        %2937 = vmatpush1.msra.mxu0 0.0
        %2938 = vmatprep.subr.mxu0 0.0
        %2939 = vmatpush1.msra.mxu0 0.0
        %2940 = vmatprep.subr.mxu0 0.0
        %2941 = vmatpush1.msra.mxu0 0.0
        %2942 = vmatprep.subr.mxu0 0.0
        %2943 = vmatpush1.msra.mxu0 0.0
        %2944 = vmatprep.subr.mxu0 0.0
        %2945 = vmatpush1.msra.mxu0 0.0
        %2946 = vmatprep.subr.mxu0 0.0
        %2947 = vmatpush1.msra.mxu0 0.0
        %2948 = vmatprep.subr.mxu0 0.0
        %2949 = vmatpush1.msra.mxu0 0.0
        %2950 = vmatprep.subr.mxu0 0.0
        %2951 = vmatpush1.msra.mxu0 0.0
        %2952 = vmatprep.subr.mxu0 0.0
        %2953 = vmatpush1.msra.mxu0 0.0
        %2954 = vmatprep.subr.mxu0 0.0
        %2955 = vmatpush1.msra.mxu0 0.0
        %2956 = vmatprep.subr.mxu0 0.0
        %2957 = vmatpush1.msra.mxu0 0.0
        %2958 = vmatprep.subr.mxu0 0.0
        %2959 = vmatpush1.msra.mxu0 0.0
        %2960 = vmatprep.subr.mxu0 0.0
        %2961 = vmatpush1.msra.mxu0 0.0
        %2962 = vmatprep.subr.mxu0 0.0
        %2963 = vmatpush1.msra.mxu0 0.0
        %2964 = vmatprep.subr.mxu0 0.0
        %2965 = vmatpush1.msra.mxu0 0.0
        %2966 = vmatprep.subr.mxu0 0.0
        %2967 = vmatpush1.msra.mxu0 0.0
        %2968 = vmatprep.subr.mxu0 0.0
        %2969 = vmatpush1.msra.mxu0 0.0
        %2970 = vmatprep.subr.mxu0 0.0
        %2971 = vmatpush1.msra.mxu0 0.0
        %2972 = vmatprep.subr.mxu0 0.0
        %2973 = vmatpush1.msra.mxu0 0.0
        %2974 = vmatprep.subr.mxu0 0.0
        %2975 = vmatpush1.msra.mxu0 0.0
        %2976 = vmatprep.subr.mxu0 0.0
        %2977 = vmatpush1.msra.mxu0 0.0
        %2978 = vmatprep.subr.mxu0 0.0
        %2979 = vmatpush1.msra.mxu0 0.0
        %2980 = vmatprep.subr.mxu0 0.0
        %2981 = vmatpush1.msra.mxu0 0.0
        %2982 = vmatprep.subr.mxu0 0.0
        %2983 = vmatpush1.msra.mxu0 0.0
        %2984 = vmatprep.subr.mxu0 0.0
        %2985 = vmatpush1.msra.mxu0 0.0
        %2986 = vmatprep.subr.mxu0 0.0
        %2987 = vmatpush1.msra.mxu0 0.0
        %2988 = vmatprep.subr.mxu0 0.0
        %2989 = vmatpush1.msra.mxu0 0.0
        %2990 = vmatprep.subr.mxu0 0.0
        %2991 = vmatpush1.msra.mxu0 0.0
        %2992 = vmatprep.subr.mxu0 0.0
        %2993 = vmatpush1.msra.mxu0 0.0
        %2994 = vmatprep.subr.mxu0 0.0
        %2995 = vmatpush1.msra.mxu0 0.0
        %2996 = vmatprep.mubr.f32.mxu0 0.0
        %2997 = vmatmul.mubr.f32.gmra.mrb[0].mxu0 %v2930
        %v2998 = vpop.f32.mrb[0].mxu0
        %v2999 = vadd.f32 0.0, %v2998
        %v3000 = vpop.f32.mrb[0].mxu0
        %3001 = vdwg.mxu0
        %v3003 = vsel %vm1073, %v2999, 0
        %3005 = vmatprep.subr.mxu0 0.0
        %3006 = vmatpush1.msra.mxu0 %v2357
        %3007 = vmatprep.subr.mxu0 0.0
        %3008 = vmatpush1.msra.mxu0 0.0
        %3009 = vmatprep.subr.mxu0 0.0
        %3010 = vmatpush1.msra.mxu0 0.0
        %3011 = vmatprep.subr.mxu0 0.0
        %3012 = vmatpush1.msra.mxu0 0.0
        %3013 = vmatprep.subr.mxu0 0.0
        %3014 = vmatpush1.msra.mxu0 0.0
        %3015 = vmatprep.subr.mxu0 0.0
        %3016 = vmatpush1.msra.mxu0 0.0
        %3017 = vmatprep.subr.mxu0 0.0
        %3018 = vmatpush1.msra.mxu0 0.0
        %3019 = vmatprep.subr.mxu0 0.0
        %3020 = vmatpush1.msra.mxu0 0.0
        %3021 = vmatprep.subr.mxu0 0.0
        %3022 = vmatpush1.msra.mxu0 0.0
        %3023 = vmatprep.subr.mxu0 0.0
        %3024 = vmatpush1.msra.mxu0 0.0
        %3025 = vmatprep.subr.mxu0 0.0
        %3026 = vmatpush1.msra.mxu0 0.0
        %3027 = vmatprep.subr.mxu0 0.0
        %3028 = vmatpush1.msra.mxu0 0.0
        %3029 = vmatprep.subr.mxu0 0.0
        %3030 = vmatpush1.msra.mxu0 0.0
        %3031 = vmatprep.subr.mxu0 0.0
        %3032 = vmatpush1.msra.mxu0 0.0
        %3033 = vmatprep.subr.mxu0 0.0
        %3034 = vmatpush1.msra.mxu0 0.0
        %3035 = vmatprep.subr.mxu0 0.0
        %3036 = vmatpush1.msra.mxu0 0.0
        %3037 = vmatprep.subr.mxu0 0.0
        %3038 = vmatpush1.msra.mxu0 0.0
        %3039 = vmatprep.subr.mxu0 0.0
        %3040 = vmatpush1.msra.mxu0 0.0
        %3041 = vmatprep.subr.mxu0 0.0
        %3042 = vmatpush1.msra.mxu0 0.0
        %3043 = vmatprep.subr.mxu0 0.0
        %3044 = vmatpush1.msra.mxu0 0.0
        %3045 = vmatprep.subr.mxu0 0.0
        %3046 = vmatpush1.msra.mxu0 0.0
        %3047 = vmatprep.subr.mxu0 0.0
        %3048 = vmatpush1.msra.mxu0 0.0
        %3049 = vmatprep.subr.mxu0 0.0
        %3050 = vmatpush1.msra.mxu0 0.0
        %3051 = vmatprep.subr.mxu0 0.0
        %3052 = vmatpush1.msra.mxu0 0.0
        %3053 = vmatprep.subr.mxu0 0.0
        %3054 = vmatpush1.msra.mxu0 0.0
        %3055 = vmatprep.subr.mxu0 0.0
        %3056 = vmatpush1.msra.mxu0 0.0
        %3057 = vmatprep.subr.mxu0 0.0
        %3058 = vmatpush1.msra.mxu0 0.0
        %3059 = vmatprep.subr.mxu0 0.0
        %3060 = vmatpush1.msra.mxu0 0.0
        %3061 = vmatprep.subr.mxu0 0.0
        %3062 = vmatpush1.msra.mxu0 0.0
        %3063 = vmatprep.subr.mxu0 0.0
        %3064 = vmatpush1.msra.mxu0 0.0
        %3065 = vmatprep.subr.mxu0 0.0
        %3066 = vmatpush1.msra.mxu0 0.0
        %3067 = vmatprep.subr.mxu0 0.0
        %3068 = vmatpush1.msra.mxu0 0.0
        %3069 = vmatprep.mubr.f32.mxu0 0.0
        %3070 = vmatmul.mubr.f32.gmra.mrb[0].mxu0 %v3003
        %v3071 = vpop.f32.mrb[0].mxu0
        %v3072 = vadd.f32 0.0, %v3071
        %v3073 = vpop.f32.mrb[0].mxu0
        %3074 = vdwg.mxu0
        %v3075 = vadd.f32 %v2833, %v3072
        %3076 = vrot.lane.b32.xlu0 %v2352, 104
        %v3077 = vpop.permute.xlu0 %3076
        %3078 = vrot.lane.b32.xlu0 %v2352, 72
        %v3079 = vpop.permute.xlu0 %3078
        %v3080 = vsel %vm1073, %v3077, 0
        %v3082 = vsel %vm1073, %v3079, 0
        %3084 = vmatprep.subr.mxu0 0.0
        %3085 = vmatpush1.xpose.msra.mxu0 %v3082
        %3086 = vmatprep.subr.mxu0 0.0
        %3087 = vmatpush1.xpose.msra.mxu0 0.0
        %3088 = vmatprep.subr.mxu0 0.0
        %3089 = vmatpush1.xpose.msra.mxu0 0.0
        %3090 = vmatprep.subr.mxu0 0.0
        %3091 = vmatpush1.xpose.msra.mxu0 0.0
        %3092 = vmatprep.subr.mxu0 0.0
        %3093 = vmatpush1.xpose.msra.mxu0 0.0
        %3094 = vmatprep.subr.mxu0 0.0
        %3095 = vmatpush1.xpose.msra.mxu0 0.0
        %3096 = vmatprep.subr.mxu0 0.0
        %3097 = vmatpush1.xpose.msra.mxu0 0.0
        %3098 = vmatprep.subr.mxu0 0.0
        %3099 = vmatpush1.xpose.msra.mxu0 0.0
        %3100 = vmatprep.subr.mxu0 0.0
        %3101 = vmatpush1.xpose.msra.mxu0 0.0
        %3102 = vmatprep.subr.mxu0 0.0
        %3103 = vmatpush1.xpose.msra.mxu0 0.0
        %3104 = vmatprep.subr.mxu0 0.0
        %3105 = vmatpush1.xpose.msra.mxu0 0.0
        %3106 = vmatprep.subr.mxu0 0.0
        %3107 = vmatpush1.xpose.msra.mxu0 0.0
        %3108 = vmatprep.subr.mxu0 0.0
        %3109 = vmatpush1.xpose.msra.mxu0 0.0
        %3110 = vmatprep.subr.mxu0 0.0
        %3111 = vmatpush1.xpose.msra.mxu0 0.0
        %3112 = vmatprep.subr.mxu0 0.0
        %3113 = vmatpush1.xpose.msra.mxu0 0.0
        %3114 = vmatprep.subr.mxu0 0.0
        %3115 = vmatpush1.xpose.msra.mxu0 0.0
        %3116 = vmatprep.subr.mxu0 0.0
        %3117 = vmatpush1.xpose.msra.mxu0 0.0
        %3118 = vmatprep.subr.mxu0 0.0
        %3119 = vmatpush1.xpose.msra.mxu0 0.0
        %3120 = vmatprep.subr.mxu0 0.0
        %3121 = vmatpush1.xpose.msra.mxu0 0.0
        %3122 = vmatprep.subr.mxu0 0.0
        %3123 = vmatpush1.xpose.msra.mxu0 0.0
        %3124 = vmatprep.subr.mxu0 0.0
        %3125 = vmatpush1.xpose.msra.mxu0 0.0
        %3126 = vmatprep.subr.mxu0 0.0
        %3127 = vmatpush1.xpose.msra.mxu0 0.0
        %3128 = vmatprep.subr.mxu0 0.0
        %3129 = vmatpush1.xpose.msra.mxu0 0.0
        %3130 = vmatprep.subr.mxu0 0.0
        %3131 = vmatpush1.xpose.msra.mxu0 0.0
        %3132 = vmatprep.subr.mxu0 0.0
        %3133 = vmatpush1.xpose.msra.mxu0 0.0
        %3134 = vmatprep.subr.mxu0 0.0
        %3135 = vmatpush1.xpose.msra.mxu0 0.0
        %3136 = vmatprep.subr.mxu0 0.0
        %3137 = vmatpush1.xpose.msra.mxu0 0.0
        %3138 = vmatprep.subr.mxu0 0.0
        %3139 = vmatpush1.xpose.msra.mxu0 0.0
        %3140 = vmatprep.subr.mxu0 0.0
        %3141 = vmatpush1.xpose.msra.mxu0 0.0
        %3142 = vmatprep.subr.mxu0 0.0
        %3143 = vmatpush1.xpose.msra.mxu0 0.0
        %3144 = vmatprep.subr.mxu0 0.0
        %3145 = vmatpush1.xpose.msra.mxu0 0.0
        %3146 = vmatprep.subr.mxu0 0.0
        %3147 = vmatpush1.xpose.msra.mxu0 0.0
        %3148 = vmatprep.mubr.f32.mxu0 0.0
        %3149 = vmatmul.mubr.f32.gmra.mrb[0].mxu0 %v3080
        %v3150 = vpop.f32.mrb[0].mxu0
        %v3151 = vadd.f32 0.0, %v3150
        %v3152 = vpop.f32.mrb[0].mxu0
        %3153 = vdwg.mxu0
        %v3154 = vmul.f32 %v3151, 0.35355338
        %v3155 = vsel %vm1073, %v3154, -inf
        %3156 = vmax.xlane.f32.xlu0 %v3155
        %v3157 = vpop.xlane.xlu0 %3156
        %v3158 = vsub.f32 %v3154, %v3157
        %v3159 = vmul.f32 %v3158, 1.442695
        %v3160 = vpow.pop %v3159
        %v3161 = vsel %vm1073, %v3160, 0.0
        %3162 = vadd.xlane.f32.xlu0 %v3161
        %v3163 = vpop.xlane.xlu0 %3162
        %v3164 = vrcp.pop %v3163
        %v3165 = vmul.f32 %v3160, %v3164
        %3166 = vrot.lane.b32.xlu0 %v2352, 40
        %v3167 = vpop.permute.xlu0 %3166
        %v3170 = vsel %vm1073, %v3165, 0
        %3172 = vmatprep.subr.mxu0 0.0
        %3173 = vmatpush1.msra.mxu0 %v3167
        %3174 = vmatprep.subr.mxu0 0.0
        %3175 = vmatpush1.msra.mxu0 0.0
        %3176 = vmatprep.subr.mxu0 0.0
        %3177 = vmatpush1.msra.mxu0 0.0
        %3178 = vmatprep.subr.mxu0 0.0
        %3179 = vmatpush1.msra.mxu0 0.0
        %3180 = vmatprep.subr.mxu0 0.0
        %3181 = vmatpush1.msra.mxu0 0.0
        %3182 = vmatprep.subr.mxu0 0.0
        %3183 = vmatpush1.msra.mxu0 0.0
        %3184 = vmatprep.subr.mxu0 0.0
        %3185 = vmatpush1.msra.mxu0 0.0
        %3186 = vmatprep.subr.mxu0 0.0
        %3187 = vmatpush1.msra.mxu0 0.0
        %3188 = vmatprep.subr.mxu0 0.0
        %3189 = vmatpush1.msra.mxu0 0.0
        %3190 = vmatprep.subr.mxu0 0.0
        %3191 = vmatpush1.msra.mxu0 0.0
        %3192 = vmatprep.subr.mxu0 0.0
        %3193 = vmatpush1.msra.mxu0 0.0
        %3194 = vmatprep.subr.mxu0 0.0
        %3195 = vmatpush1.msra.mxu0 0.0
        %3196 = vmatprep.subr.mxu0 0.0
        %3197 = vmatpush1.msra.mxu0 0.0
        %3198 = vmatprep.subr.mxu0 0.0
        %3199 = vmatpush1.msra.mxu0 0.0
        %3200 = vmatprep.subr.mxu0 0.0
        %3201 = vmatpush1.msra.mxu0 0.0
        %3202 = vmatprep.subr.mxu0 0.0
        %3203 = vmatpush1.msra.mxu0 0.0
        %3204 = vmatprep.subr.mxu0 0.0
        %3205 = vmatpush1.msra.mxu0 0.0
        %3206 = vmatprep.subr.mxu0 0.0
        %3207 = vmatpush1.msra.mxu0 0.0
        %3208 = vmatprep.subr.mxu0 0.0
        %3209 = vmatpush1.msra.mxu0 0.0
        %3210 = vmatprep.subr.mxu0 0.0
        %3211 = vmatpush1.msra.mxu0 0.0
        %3212 = vmatprep.subr.mxu0 0.0
        %3213 = vmatpush1.msra.mxu0 0.0
        %3214 = vmatprep.subr.mxu0 0.0
        %3215 = vmatpush1.msra.mxu0 0.0
        %3216 = vmatprep.subr.mxu0 0.0
        %3217 = vmatpush1.msra.mxu0 0.0
        %3218 = vmatprep.subr.mxu0 0.0
        %3219 = vmatpush1.msra.mxu0 0.0
        %3220 = vmatprep.subr.mxu0 0.0
        %3221 = vmatpush1.msra.mxu0 0.0
        %3222 = vmatprep.subr.mxu0 0.0
        %3223 = vmatpush1.msra.mxu0 0.0
        %3224 = vmatprep.subr.mxu0 0.0
        %3225 = vmatpush1.msra.mxu0 0.0
        %3226 = vmatprep.subr.mxu0 0.0
        %3227 = vmatpush1.msra.mxu0 0.0
        %3228 = vmatprep.subr.mxu0 0.0
        %3229 = vmatpush1.msra.mxu0 0.0
        %3230 = vmatprep.subr.mxu0 0.0
        %3231 = vmatpush1.msra.mxu0 0.0
        %3232 = vmatprep.subr.mxu0 0.0
        %3233 = vmatpush1.msra.mxu0 0.0
        %3234 = vmatprep.subr.mxu0 0.0
        %3235 = vmatpush1.msra.mxu0 0.0
        %3236 = vmatprep.mubr.f32.mxu0 0.0
        %3237 = vmatmul.mubr.f32.gmra.mrb[0].mxu0 %v3170
        %v3238 = vpop.f32.mrb[0].mxu0
        %v3239 = vadd.f32 0.0, %v3238
        %v3240 = vpop.f32.mrb[0].mxu0
        %3241 = vdwg.mxu0
        %v3243 = vsel %vm1073, %v3239, 0
        %3245 = vmatprep.subr.mxu0 0.0
        %3246 = vmatpush1.msra.mxu0 %v2358
        %3247 = vmatprep.subr.mxu0 0.0
        %3248 = vmatpush1.msra.mxu0 0.0
        %3249 = vmatprep.subr.mxu0 0.0
        %3250 = vmatpush1.msra.mxu0 0.0
        %3251 = vmatprep.subr.mxu0 0.0
        %3252 = vmatpush1.msra.mxu0 0.0
        %3253 = vmatprep.subr.mxu0 0.0
        %3254 = vmatpush1.msra.mxu0 0.0
        %3255 = vmatprep.subr.mxu0 0.0
        %3256 = vmatpush1.msra.mxu0 0.0
        %3257 = vmatprep.subr.mxu0 0.0
        %3258 = vmatpush1.msra.mxu0 0.0
        %3259 = vmatprep.subr.mxu0 0.0
        %3260 = vmatpush1.msra.mxu0 0.0
        %3261 = vmatprep.subr.mxu0 0.0
        %3262 = vmatpush1.msra.mxu0 0.0
        %3263 = vmatprep.subr.mxu0 0.0
        %3264 = vmatpush1.msra.mxu0 0.0
        %3265 = vmatprep.subr.mxu0 0.0
        %3266 = vmatpush1.msra.mxu0 0.0
        %3267 = vmatprep.subr.mxu0 0.0
        %3268 = vmatpush1.msra.mxu0 0.0
        %3269 = vmatprep.subr.mxu0 0.0
        %3270 = vmatpush1.msra.mxu0 0.0
        %3271 = vmatprep.subr.mxu0 0.0
        %3272 = vmatpush1.msra.mxu0 0.0
        %3273 = vmatprep.subr.mxu0 0.0
        %3274 = vmatpush1.msra.mxu0 0.0
        %3275 = vmatprep.subr.mxu0 0.0
        %3276 = vmatpush1.msra.mxu0 0.0
        %3277 = vmatprep.subr.mxu0 0.0
        %3278 = vmatpush1.msra.mxu0 0.0
        %3279 = vmatprep.subr.mxu0 0.0
        %3280 = vmatpush1.msra.mxu0 0.0
        %3281 = vmatprep.subr.mxu0 0.0
        %3282 = vmatpush1.msra.mxu0 0.0
        %3283 = vmatprep.subr.mxu0 0.0
        %3284 = vmatpush1.msra.mxu0 0.0
        %3285 = vmatprep.subr.mxu0 0.0
        %3286 = vmatpush1.msra.mxu0 0.0
        %3287 = vmatprep.subr.mxu0 0.0
        %3288 = vmatpush1.msra.mxu0 0.0
        %3289 = vmatprep.subr.mxu0 0.0
        %3290 = vmatpush1.msra.mxu0 0.0
        %3291 = vmatprep.subr.mxu0 0.0
        %3292 = vmatpush1.msra.mxu0 0.0
        %3293 = vmatprep.subr.mxu0 0.0
        %3294 = vmatpush1.msra.mxu0 0.0
        %3295 = vmatprep.subr.mxu0 0.0
        %3296 = vmatpush1.msra.mxu0 0.0
        %3297 = vmatprep.subr.mxu0 0.0
        %3298 = vmatpush1.msra.mxu0 0.0
        %3299 = vmatprep.subr.mxu0 0.0
        %3300 = vmatpush1.msra.mxu0 0.0
        %3301 = vmatprep.subr.mxu0 0.0
        %3302 = vmatpush1.msra.mxu0 0.0
        %3303 = vmatprep.subr.mxu0 0.0
        %3304 = vmatpush1.msra.mxu0 0.0
        %3305 = vmatprep.subr.mxu0 0.0
        %3306 = vmatpush1.msra.mxu0 0.0
        %3307 = vmatprep.subr.mxu0 0.0
        %3308 = vmatpush1.msra.mxu0 0.0
        %3309 = vmatprep.mubr.f32.mxu0 0.0
        %3310 = vmatmul.mubr.f32.gmra.mrb[0].mxu0 %v3243
        %v3311 = vpop.f32.mrb[0].mxu0
        %v3312 = vadd.f32 0.0, %v3311
        %v3313 = vpop.f32.mrb[0].mxu0
        %3314 = vdwg.mxu0
        %v3315 = vadd.f32 %v3075, %v3312
        %v3316 = vld [vmem:[%s37] sm:$0x1]
        %v3318 = vlaneseq
        %v3319 = vshrl.u32 %v3318, 7
        %v3320 = vsub.s32 0, %v3319
        %v3321 = vrot.slane %v3316, %v3320
        %v3323 = vadd.f32 %v3315, %v3321
        %v3324 = vadd.f32 %v2270, %v3323
        %v3325 = vld [vmem:[%s39] sm:$0x1]
        %v3326 = vld [vmem:[%s41] sm:$0x1]
        %v3327 = vsel %vm992, %v3324, 0.0
        %3328 = vadd.xlane.f32.xlu0 %v3327
        %v3329 = vpop.xlane.xlu0 %3328
        %v3330 = vmul.f32 %v3329, %v2042
        %v3331 = vsub.f32 %v3324, %v3330
        %v3332 = vmul.f32 %v3331, %v3331
        %v3333 = vsel %vm992, %v3332, 0.0
        %3334 = vadd.xlane.f32.xlu0 %v3333
        %v3335 = vpop.xlane.xlu0 %3334
        %v3336 = vmul.f32 %v3335, %v2042
        %v3337 = vadd.f32 %v3336, 1e-05
        %v3338 = vrsqrt.pop %v3337
        %v3339 = vmul.f32 %v3331, %v3338
        %v3341 = vlaneseq
        %v3342 = vshrl.u32 %v3341, 7
        %v3343 = vsub.s32 0, %v3342
        %v3344 = vrot.slane %v3325, %v3343
        %v3346 = vmul.f32 %v3339, %v3344
        %v3348 = vlaneseq
        %v3349 = vshrl.u32 %v3348, 7
        %v3350 = vsub.s32 0, %v3349
        %v3351 = vrot.slane %v3326, %v3350
        %v3353 = vadd.f32 %v3346, %v3351
        %v3354 = vld [vmem:[%s43] sm:$0xff]
        %v3355 = vld [vmem:[%s43 + $0x8] sm:$0xff]
        %v3356 = vld [vmem:[%s43 + $0x10] sm:$0xff]
        %v3357 = vld [vmem:[%s43 + $0x18] sm:$0xff]
        %v3358 = vld [vmem:[%s45] sm:$0x1]
        %v3360 = vlaneseq
        %v3361 = vshrl.u32 %v3360, 7
        %v3362 = vsub.s32 0, %v3361
        %v3363 = vrot.slane %v3358, %v3362
        %v3366 = vsel %vm992, %v3353, 0
        %3368 = vmatprep.subr.mxu0 0.0
        %3369 = vmatpush1.msra.mxu0 %v3354
        %3370 = vmatprep.subr.mxu0 0.0
        %3371 = vmatpush1.msra.mxu0 %v3355
        %3372 = vmatprep.subr.mxu0 0.0
        %3373 = vmatpush1.msra.mxu0 %v3356
        %3374 = vmatprep.subr.mxu0 0.0
        %3375 = vmatpush1.msra.mxu0 %v3357
        %3376 = vmatprep.subr.mxu0 0.0
        %3377 = vmatpush1.msra.mxu0 0.0
        %3378 = vmatprep.subr.mxu0 0.0
        %3379 = vmatpush1.msra.mxu0 0.0
        %3380 = vmatprep.subr.mxu0 0.0
        %3381 = vmatpush1.msra.mxu0 0.0
        %3382 = vmatprep.subr.mxu0 0.0
        %3383 = vmatpush1.msra.mxu0 0.0
        %3384 = vmatprep.subr.mxu0 0.0
        %3385 = vmatpush1.msra.mxu0 0.0
        %3386 = vmatprep.subr.mxu0 0.0
        %3387 = vmatpush1.msra.mxu0 0.0
        %3388 = vmatprep.subr.mxu0 0.0
        %3389 = vmatpush1.msra.mxu0 0.0
        %3390 = vmatprep.subr.mxu0 0.0
        %3391 = vmatpush1.msra.mxu0 0.0
        %3392 = vmatprep.subr.mxu0 0.0
        %3393 = vmatpush1.msra.mxu0 0.0
        %3394 = vmatprep.subr.mxu0 0.0
        %3395 = vmatpush1.msra.mxu0 0.0
        %3396 = vmatprep.subr.mxu0 0.0
        %3397 = vmatpush1.msra.mxu0 0.0
        %3398 = vmatprep.subr.mxu0 0.0
        %3399 = vmatpush1.msra.mxu0 0.0
        %3400 = vmatprep.subr.mxu0 0.0
        %3401 = vmatpush1.msra.mxu0 0.0
        %3402 = vmatprep.subr.mxu0 0.0
        %3403 = vmatpush1.msra.mxu0 0.0
        %3404 = vmatprep.subr.mxu0 0.0
        %3405 = vmatpush1.msra.mxu0 0.0
        %3406 = vmatprep.subr.mxu0 0.0
        %3407 = vmatpush1.msra.mxu0 0.0
        %3408 = vmatprep.subr.mxu0 0.0
        %3409 = vmatpush1.msra.mxu0 0.0
        %3410 = vmatprep.subr.mxu0 0.0
        %3411 = vmatpush1.msra.mxu0 0.0
        %3412 = vmatprep.subr.mxu0 0.0
        %3413 = vmatpush1.msra.mxu0 0.0
        %3414 = vmatprep.subr.mxu0 0.0
        %3415 = vmatpush1.msra.mxu0 0.0
        %3416 = vmatprep.subr.mxu0 0.0
        %3417 = vmatpush1.msra.mxu0 0.0
        %3418 = vmatprep.subr.mxu0 0.0
        %3419 = vmatpush1.msra.mxu0 0.0
        %3420 = vmatprep.subr.mxu0 0.0
        %3421 = vmatpush1.msra.mxu0 0.0
        %3422 = vmatprep.subr.mxu0 0.0
        %3423 = vmatpush1.msra.mxu0 0.0
        %3424 = vmatprep.subr.mxu0 0.0
        %3425 = vmatpush1.msra.mxu0 0.0
        %3426 = vmatprep.subr.mxu0 0.0
        %3427 = vmatpush1.msra.mxu0 0.0
        %3428 = vmatprep.subr.mxu0 0.0
        %3429 = vmatpush1.msra.mxu0 0.0
        %3430 = vmatprep.subr.mxu0 0.0
        %3431 = vmatpush1.msra.mxu0 0.0
        %3432 = vmatprep.mubr.f32.mxu0 0.0
        %3433 = vmatmul.mubr.f32.gmra.mrb[0].mxu0 %v3366
        %v3434 = vpop.f32.mrb[0].mxu0
        %v3435 = vadd.f32 %v3363, %v3434
        %v3436 = vpop.f32.mrb[0].mxu0
        %3437 = vdwg.mxu0
        %v3438 = vmax.f32 %v3435, 0.0
        %v3439 = vld [vmem:[%s47] sm:$0xff]
        %v3440 = vld [vmem:[%s47 + $0x8] sm:$0xff]
        %v3441 = vld [vmem:[%s47 + $0x10] sm:$0xff]
        %v3442 = vld [vmem:[%s47 + $0x18] sm:$0xff]
        %v3443 = vld [vmem:[%s47 + $0x20] sm:$0xff]
        %v3444 = vld [vmem:[%s47 + $0x28] sm:$0xff]
        %v3445 = vld [vmem:[%s47 + $0x30] sm:$0xff]
        %v3446 = vld [vmem:[%s47 + $0x38] sm:$0xff]
        %v3447 = vld [vmem:[%s49] sm:$0x1]
        %v3449 = vlaneseq
        %v3450 = vshrl.u32 %v3449, 7
        %v3451 = vsub.s32 0, %v3450
        %v3452 = vrot.slane %v3447, %v3451
        %v3455 = vsel %vm2167, %v3438, 0
        %3457 = vmatprep.subr.mxu0 0.0
        %3458 = vmatpush1.msra.mxu0 %v3439
        %3459 = vmatprep.subr.mxu0 0.0
        %3460 = vmatpush1.msra.mxu0 %v3440
        %3461 = vmatprep.subr.mxu0 0.0
        %3462 = vmatpush1.msra.mxu0 %v3441
        %3463 = vmatprep.subr.mxu0 0.0
        %3464 = vmatpush1.msra.mxu0 %v3442
        %3465 = vmatprep.subr.mxu0 0.0
        %3466 = vmatpush1.msra.mxu0 %v3443
        %3467 = vmatprep.subr.mxu0 0.0
        %3468 = vmatpush1.msra.mxu0 %v3444
        %3469 = vmatprep.subr.mxu0 0.0
        %3470 = vmatpush1.msra.mxu0 %v3445
        %3471 = vmatprep.subr.mxu0 0.0
        %3472 = vmatpush1.msra.mxu0 %v3446
        %3473 = vmatprep.subr.mxu0 0.0
        %3474 = vmatpush1.msra.mxu0 0.0
        %3475 = vmatprep.subr.mxu0 0.0
        %3476 = vmatpush1.msra.mxu0 0.0
        %3477 = vmatprep.subr.mxu0 0.0
        %3478 = vmatpush1.msra.mxu0 0.0
        %3479 = vmatprep.subr.mxu0 0.0
        %3480 = vmatpush1.msra.mxu0 0.0
        %3481 = vmatprep.subr.mxu0 0.0
        %3482 = vmatpush1.msra.mxu0 0.0
        %3483 = vmatprep.subr.mxu0 0.0
        %3484 = vmatpush1.msra.mxu0 0.0
        %3485 = vmatprep.subr.mxu0 0.0
        %3486 = vmatpush1.msra.mxu0 0.0
        %3487 = vmatprep.subr.mxu0 0.0
        %3488 = vmatpush1.msra.mxu0 0.0
        %3489 = vmatprep.subr.mxu0 0.0
        %3490 = vmatpush1.msra.mxu0 0.0
        %3491 = vmatprep.subr.mxu0 0.0
        %3492 = vmatpush1.msra.mxu0 0.0
        %3493 = vmatprep.subr.mxu0 0.0
        %3494 = vmatpush1.msra.mxu0 0.0
        %3495 = vmatprep.subr.mxu0 0.0
        %3496 = vmatpush1.msra.mxu0 0.0
        %3497 = vmatprep.subr.mxu0 0.0
        %3498 = vmatpush1.msra.mxu0 0.0
        %3499 = vmatprep.subr.mxu0 0.0
        %3500 = vmatpush1.msra.mxu0 0.0
        %3501 = vmatprep.subr.mxu0 0.0
        %3502 = vmatpush1.msra.mxu0 0.0
        %3503 = vmatprep.subr.mxu0 0.0
        %3504 = vmatpush1.msra.mxu0 0.0
        %3505 = vmatprep.subr.mxu0 0.0
        %3506 = vmatpush1.msra.mxu0 0.0
        %3507 = vmatprep.subr.mxu0 0.0
        %3508 = vmatpush1.msra.mxu0 0.0
        %3509 = vmatprep.subr.mxu0 0.0
        %3510 = vmatpush1.msra.mxu0 0.0
        %3511 = vmatprep.subr.mxu0 0.0
        %3512 = vmatpush1.msra.mxu0 0.0
        %3513 = vmatprep.subr.mxu0 0.0
        %3514 = vmatpush1.msra.mxu0 0.0
        %3515 = vmatprep.subr.mxu0 0.0
        %3516 = vmatpush1.msra.mxu0 0.0
        %3517 = vmatprep.subr.mxu0 0.0
        %3518 = vmatpush1.msra.mxu0 0.0
        %3519 = vmatprep.subr.mxu0 0.0
        %3520 = vmatpush1.msra.mxu0 0.0
        %3521 = vmatprep.mubr.f32.mxu0 0.0
        %3522 = vmatmul.mubr.f32.gmra.mrb[0].mxu0 %v3455
        %v3523 = vpop.f32.mrb[0].mxu0
        %v3524 = vadd.f32 %v3452, %v3523
        %v3525 = vpop.f32.mrb[0].mxu0
        %3526 = vdwg.mxu0
        %v3527 = vadd.f32 %v3353, %v3524
        %v3528 = vld [vmem:[%s51] sm:$0x1]
        %v3529 = vld [vmem:[%s53] sm:$0x1]
        %v3530 = vsel %vm992, %v3527, 0.0
        %3531 = vadd.xlane.f32.xlu0 %v3530
        %v3532 = vpop.xlane.xlu0 %3531
        %v3533 = vmul.f32 %v3532, %v2042
        %v3534 = vsub.f32 %v3527, %v3533
        %v3535 = vmul.f32 %v3534, %v3534
        %v3536 = vsel %vm992, %v3535, 0.0
        %3537 = vadd.xlane.f32.xlu0 %v3536
        %v3538 = vpop.xlane.xlu0 %3537
        %v3539 = vmul.f32 %v3538, %v2042
        %v3540 = vadd.f32 %v3539, 1e-05
        %v3541 = vrsqrt.pop %v3540
        %v3542 = vmul.f32 %v3534, %v3541
        %v3544 = vlaneseq
        %v3545 = vshrl.u32 %v3544, 7
        %v3546 = vsub.s32 0, %v3545
        %v3547 = vrot.slane %v3528, %v3546
        %v3549 = vmul.f32 %v3542, %v3547
        %v3551 = vlaneseq
        %v3552 = vshrl.u32 %v3551, 7
        %v3553 = vsub.s32 0, %v3552
        %v3554 = vrot.slane %v3529, %v3553
        %v3556 = vadd.f32 %v3549, %v3554
        %v3557 = vld [vmem:[%s55] sm:$0xff]
        %v3558 = vld [vmem:[%s55 + $0x8] sm:$0xff]
        %v3559 = vld [vmem:[%s55 + $0x10] sm:$0xff]
        %v3560 = vld [vmem:[%s55 + $0x18] sm:$0xff]
        %v3561 = vld [vmem:[%s57] sm:$0x1]
        %v3563 = vrot.slane %v3556, 7
        %v3564 = vsel %vm992, %v3563, 0
        %3566 = vmatprep.subr.mxu0 0.0
        %3567 = vmatpush1.msra.mxu0 %v3557
        %3568 = vmatprep.subr.mxu0 0.0
        %3569 = vmatpush1.msra.mxu0 %v3558
        %3570 = vmatprep.subr.mxu0 0.0
        %3571 = vmatpush1.msra.mxu0 %v3559
        %3572 = vmatprep.subr.mxu0 0.0
        %3573 = vmatpush1.msra.mxu0 %v3560
        %3574 = vmatprep.subr.mxu0 0.0
        %3575 = vmatpush1.msra.mxu0 0.0
        %3576 = vmatprep.subr.mxu0 0.0
        %3577 = vmatpush1.msra.mxu0 0.0
        %3578 = vmatprep.subr.mxu0 0.0
        %3579 = vmatpush1.msra.mxu0 0.0
        %3580 = vmatprep.subr.mxu0 0.0
        %3581 = vmatpush1.msra.mxu0 0.0
        %3582 = vmatprep.subr.mxu0 0.0
        %3583 = vmatpush1.msra.mxu0 0.0
        %3584 = vmatprep.subr.mxu0 0.0
        %3585 = vmatpush1.msra.mxu0 0.0
        %3586 = vmatprep.subr.mxu0 0.0
        %3587 = vmatpush1.msra.mxu0 0.0
        %3588 = vmatprep.subr.mxu0 0.0
        %3589 = vmatpush1.msra.mxu0 0.0
        %3590 = vmatprep.subr.mxu0 0.0
        %3591 = vmatpush1.msra.mxu0 0.0
        %3592 = vmatprep.subr.mxu0 0.0
        %3593 = vmatpush1.msra.mxu0 0.0
        %3594 = vmatprep.subr.mxu0 0.0
        %3595 = vmatpush1.msra.mxu0 0.0
        %3596 = vmatprep.subr.mxu0 0.0
        %3597 = vmatpush1.msra.mxu0 0.0
        %3598 = vmatprep.subr.mxu0 0.0
        %3599 = vmatpush1.msra.mxu0 0.0
        %3600 = vmatprep.subr.mxu0 0.0
        %3601 = vmatpush1.msra.mxu0 0.0
        %3602 = vmatprep.subr.mxu0 0.0
        %3603 = vmatpush1.msra.mxu0 0.0
        %3604 = vmatprep.subr.mxu0 0.0
        %3605 = vmatpush1.msra.mxu0 0.0
        %3606 = vmatprep.subr.mxu0 0.0
        %3607 = vmatpush1.msra.mxu0 0.0
        %3608 = vmatprep.subr.mxu0 0.0
        %3609 = vmatpush1.msra.mxu0 0.0
        %3610 = vmatprep.subr.mxu0 0.0
        %3611 = vmatpush1.msra.mxu0 0.0
        %3612 = vmatprep.subr.mxu0 0.0
        %3613 = vmatpush1.msra.mxu0 0.0
        %3614 = vmatprep.subr.mxu0 0.0
        %3615 = vmatpush1.msra.mxu0 0.0
        %3616 = vmatprep.subr.mxu0 0.0
        %3617 = vmatpush1.msra.mxu0 0.0
        %3618 = vmatprep.subr.mxu0 0.0
        %3619 = vmatpush1.msra.mxu0 0.0
        %3620 = vmatprep.subr.mxu0 0.0
        %3621 = vmatpush1.msra.mxu0 0.0
        %3622 = vmatprep.subr.mxu0 0.0
        %3623 = vmatpush1.msra.mxu0 0.0
        %3624 = vmatprep.subr.mxu0 0.0
        %3625 = vmatpush1.msra.mxu0 0.0
        %3626 = vmatprep.subr.mxu0 0.0
        %3627 = vmatpush1.msra.mxu0 0.0
        %3628 = vmatprep.subr.mxu0 0.0
        %3629 = vmatpush1.msra.mxu0 0.0
        %3630 = vmatprep.mubr.f32.mxu0 0.0
        %3631 = vmatmul.mubr.f32.gmra.mrb[0].mxu0 %v3564
        %v3632 = vpop.f32.mrb[0].mxu0
        %v3633 = vadd.f32 %v3561, %v3632
        %v3634 = vpop.f32.mrb[0].mxu0
        %3635 = vdwg.mxu0
        %v3636 = vmul.f32 %v3633, %v3633
        %vm3637 = vcmask 122880
        %v3638 = vsel %vm3637, %v3636, 0.0
        %3639 = vadd.xlane.f32.xlu0 %v3638
        %v3640 = vpop.xlane.xlu0 %3639
        %v3641 = vrsqrt.pop %v3640
        %v3642 = vmul.f32 %v3640, %v3641
        %vm3643 = vcmp.eq.f32.partialorder %v3640, inf
        %v3644 = vsel %vm3643, %v3640, %v3642
        %vm3645 = vcmp.eq.f32.partialorder %v3640, 0.0
        %v3646 = vand.u32 %v3640, 2147483648
        %v3647 = vsel %vm3645, %v3646, %v3644
        %v3648 = vmax.f32 %v3647, 1e-12
        %v3649 = vrcp.pop %v3648
        %v3650 = vmul.f32 %v3633, %v3649
        %3651 = vst.msk [vmem:[%s892] sm:$0x1] %vm3637, %v3650
        %s3652 = sand.u32 %s695, 1
        %s3653 = scalar_lea.sflag [#allocation3], %s3652
        %s3654 = sand.u32 %s695, 1
        %s3655 = scalar_lea.vmem [#allocation2], %s3654
        // Predicated region
        $region137: #{transformer_embedding_generator.1} parent=135 // pred_check
          %p3656 = pneg %p705
        $region138: #{transformer_embedding_generator.1} parent=135 // pred_check_branch
          %3658 = sbr.rel (%p3656) target = $region140
        $region139: #{transformer_embedding_generator.1} parent=135 // pred_region
          %s3660 = ssub.s32 16, 16
          %3661 = vsyncadd %s3653, %s3660
          %s3662 = smul.addr %s73, 16
          %s3663 = scalar_lea.hbm %s59, %s3662
          %s3665 = sshll.u32 %s3655, 4
          %s3666 = int_to_ptr.vmem [resolvable:$true] %s3665
          %3668 = dma.vmem_to_hbm [thread:$0]  %s3666, 16, %s3663, %s3653
        $region140: #{transformer_embedding_generator.1} parent=135 // pred_fallthru
          _
      $region136: #{transformer_embedding_generator.1} parent=5 // pred_fallthru
        _
      %p3669 = scmp.le.s32.totalorder 2, %s68
      // Predicated region
      $region141: #{transformer_embedding_generator.1} parent=5 // pred_check
        %p3670 = pneg %p3669
      $region142: #{transformer_embedding_generator.1} parent=5 // pred_check_branch
        %3672 = sbr.rel (%p3670) target = $region144
      $region143: #{transformer_embedding_generator.1} parent=5 // pred_region
        %s3673 = ssub.s32 %s68, 2
        // Predicated region
        $region145: #{transformer_embedding_generator.1} parent=143 // pred_check
          %p3674 = pneg %p711
        $region146: #{transformer_embedding_generator.1} parent=143 // pred_check_branch
          %3676 = sbr.rel (%p3674) target = $region148
        $region147: #{transformer_embedding_generator.1} parent=143 // pred_region
          %s3677 = sand.u32 %s696, 1
          %s3678 = scalar_lea.sflag [#allocation3], %s3677
          %s3679 = sand.u32 %s696, 1
          %s3680 = scalar_lea.vmem [#allocation2], %s3679
          %3681 = dma.done %s3678, 16
        $region148: #{transformer_embedding_generator.1} parent=143 // pred_fallthru
          _
      $region144: #{transformer_embedding_generator.1} parent=5 // pred_fallthru
        _
    $region6: #{transformer_embedding_generator.1} parent=1 // loop_footer
      %s72 = sadd.s32 1, %s68
    $region7: #{transformer_embedding_generator.1} parent=1 // loop_footer_branch
      %67 = sbr.rel target = $region3
    $region8: #{transformer_embedding_generator.1} parent=1 // loop_exit
      _
    %3682 = vsyncpa [#allocation3], 1
    %s3683 = scalar_lea.sflag [#allocation3], 1
    %3684 = vsyncpa %s3683, 1

</llo_original>
